<compile_context>
chip_gen: v5e
topology: v5e:2x2
jax: 0.10.0
libtpu: 0.0.40
codegen_flags: <defaults>
</compile_context>

<pallas_src>
import functools

import jax
import jax.numpy as jnp
from jax.experimental import pallas as pl
from jax.experimental.pallas import tpu as pltpu

# ---------------- small deterministic config (lane-dense: dims are 128-multiples) ---
B = 2
IMG = 32            # image_size (scaled down from 224)
P = 16              # patch_size (same as BLIP)
C_IN = 3
NPATCH = (IMG // P) ** 2            # 4
NVIS = NPATCH + 1                   # + cls token = 5
TV = 8              # image-token axis padded 5 -> 8 (full sublane tile); pads masked
V_DIM = 256         # vision_width (scaled down from 768, kept a multiple of 128)
V_DEPTH = 2         # ViT depth (scaled down from 12)
V_HEADS = 2
DH_V = V_DIM // V_HEADS             # 128
V_MLP = 4 * V_DIM                   # 1024

T_HID = 256         # BERT hidden (scaled down from 768, multiple of 128)
T_LAYERS = 2
T_HEADS = 2
DH_T = T_HID // T_HEADS             # 128
T_INTER = 512
VOCAB = 128
MAX_POS = 32
SEQ = 8
ENC_TOKEN_ID = 2    # stand-in for tokenizer.enc_token_id

VIT_EPS = 1e-6      # timm LayerNorm eps
BERT_EPS = 1e-12    # BERT LayerNorm eps
NEG_INF = -1e9

WVEC_V = V_MLP                      # row width of the packed ViT vector params
WVEC_T = max(T_HID, T_INTER)        # row width of the packed BERT vector params

# packed-vector row indices (ViT)
VIT_LN1_G, VIT_LN1_B, VIT_B_PROJ, VIT_LN2_G, VIT_LN2_B, VIT_B_FC1, VIT_B_FC2 = range(7)
# packed-vector row indices (BERT)
(BRT_B_SAO, BRT_SA_LN_G, BRT_SA_LN_B, BRT_B_CAO, BRT_CA_LN_G, BRT_CA_LN_B,
 BRT_B_FFI, BRT_B_FFO, BRT_FF_LN_G, BRT_FF_LN_B) = range(10)

_VMEM = pl.BlockSpec(memory_space=pltpu.MemorySpace.VMEM)


# ---------------- in-kernel helpers (traced inside Pallas bodies) ----------------
def _ln(x, g, b, eps):
    mu = jnp.mean(x, axis=-1, keepdims=True)
    var = jnp.mean(jnp.square(x - mu), axis=-1, keepdims=True)
    return (x - mu) * jax.lax.rsqrt(var + eps) * g + b


def _gelu(x):  # exact (erf) GELU, as nn.GELU / BERT "gelu"
    return 0.5 * x * (1.0 + jax.lax.erf(x * 0.7071067811865476))


def _row(vec, r, w):
    return vec[r:r + 1, :w]


def _mha(q, k, v, w_o, scale, mask_add=None):
    """All heads, batch-leading batched matmuls (no per-head loop, no transposes).
    q, v: (H, Tq, dh) f32; k: (H, Tk, dh) f32; w_o: (H, dh, Dout) bf16.
    Head merge is folded into the out-projection: sum_h ctx_h @ W_o[h]."""
    s = jnp.einsum("hqd,hkd->hqk", q.astype(jnp.bfloat16), k.astype(jnp.bfloat16),
                   preferred_element_type=jnp.float32) * scale
    if mask_add is not None:
        s = s + mask_add[None]                         # (1, Tk) -> (1, 1, Tk)
    s = s - jnp.max(s, axis=-1, keepdims=True)
    p = jnp.exp(s)
    p = p * pl.reciprocal(jnp.sum(p, axis=-1, keepdims=True), approx=True)
    ctx = jnp.einsum("hqk,hkd->hqd", p.astype(jnp.bfloat16), v.astype(jnp.bfloat16),
                     preferred_element_type=jnp.float32)
    out = jnp.einsum("hqd,hdo->hqo", ctx.astype(jnp.bfloat16), w_o,
                     preferred_element_type=jnp.float32)
    return jnp.sum(out, axis=0)                        # (Tq, Dout)


def _proj_heads(x_bf16, w_heads, b_heads):
    """x (T, Din) bf16, w (N, Din, dh) bf16, b (N, dh) f32 -> (N, T, dh) f32."""
    n = w_heads.shape[0]
    x3 = jnp.broadcast_to(x_bf16[None], (n,) + x_bf16.shape)
    y = jnp.einsum("ntd,ndk->ntk", x3, w_heads, preferred_element_type=jnp.float32)
    return y + b_heads[:, None, :]


# ---------------- Pallas kernels ----------------
def _patch_embed_kernel(patches_ref, w_ref, vec_ref, o_ref):
    """Patch-embed conv-as-matmul (batch flattened into the row dim) + cls/pos add;
    the padded (B, TV, D) block is assembled in vregs and stored once."""
    b, npatch, cpp = patches_ref.shape
    d = w_ref.shape[1]
    x = patches_ref[...].reshape(b * npatch, cpp).astype(jnp.bfloat16)
    y = jnp.dot(x, w_ref[...], preferred_element_type=jnp.float32)   # (B*NPATCH, D)
    bias = vec_ref[0:1, :]                                            # conv bias
    cls = vec_ref[1:2, :]                                             # cls token
    pos = vec_ref[2:2 + NVIS, :]                                      # (NVIS, D)
    y = (y + bias).reshape(b, npatch, d) + pos[1:][None]              # patch rows
    cls_rows = jnp.broadcast_to((cls + pos[0:1])[None], (b, 1, d))
    pad_rows = jnp.zeros((b, TV - 1 - npatch, d), jnp.float32)
    o_ref[...] = jnp.concatenate([cls_rows, y, pad_rows], axis=1)     # single store


def _vit_blocks_kernel(nh, x0_ref, mask_ref, wqkv_ref, bqkv_ref, wo_ref,
                       wfc1_ref, wfc2_ref, vec_ref, fin_ref, o_ref):
    """One fused ViT block per (batch, layer) grid step; hidden state lives in the
    output VMEM block across the layer ("arbitrary") axis.  Final LN folded in."""
    l = pl.program_id(1)
    depth = pl.num_programs(1)
    tv, d = x0_ref.shape[1], x0_ref.shape[2]
    dh = d // nh
    scale = float(dh) ** -0.5

    @pl.when(l == 0)
    def _():
        o_ref[...] = x0_ref[...]

    x = o_ref[0]                                   # (TV, D) f32, carried across layers
    vec = vec_ref[0]                               # (8, 4D) packed vectors
    mask = mask_ref[...]                           # (1, TV) additive pad-key mask
    g1, b1 = _row(vec, VIT_LN1_G, d), _row(vec, VIT_LN1_B, d)
    g2, b2 = _row(vec, VIT_LN2_G, d), _row(vec, VIT_LN2_B, d)
    b_proj = _row(vec, VIT_B_PROJ, d)
    b_fc1 = _row(vec, VIT_B_FC1, wfc1_ref.shape[-1])
    b_fc2 = _row(vec, VIT_B_FC2, d)

    # --- self-attention (real ViT has no mask; ours only hides the padded rows) ---
    xb = _ln(x, g1, b1, VIT_EPS).astype(jnp.bfloat16)
    qkv = _proj_heads(xb, wqkv_ref[0], bqkv_ref[0])      # (3H, TV, dh)
    q, k, v = qkv[:nh], qkv[nh:2 * nh], qkv[2 * nh:]
    x = x + _mha(q, k, v, wo_ref[0], scale, mask) + b_proj
    # --- MLP ---
    h2 = _ln(x, g2, b2, VIT_EPS).astype(jnp.bfloat16)
    inter = _gelu(jnp.dot(h2, wfc1_ref[0], preferred_element_type=jnp.float32) + b_fc1)
    x = x + jnp.dot(inter.astype(jnp.bfloat16), wfc2_ref[0],
                    preferred_element_type=jnp.float32) + b_fc2
    o_ref[0] = x

    @pl.when(l == depth - 1)                       # model's final LayerNorm
    def _():
        o_ref[0] = _ln(x, fin_ref[0:1], fin_ref[1:2], VIT_EPS)


def _bert_layers_kernel(nh, has_cross, *refs):
    """One fused BERT layer per (batch, layer) grid step:
    [emb-LN @ l==0] -> self-attn(+LN) -> [cross-attn(+LN)] -> FFN(+LN)."""
    if has_cross:
        (emb_ref, tmask_ref, enc_ref, vmask_ref, embln_ref,
         wsaqkv_ref, wsao_ref, wcaq_ref, wcakv_ref, wcao_ref,
         wffi_ref, wffo_ref, hb_ref, vec_ref, o_ref) = refs
    else:
        (emb_ref, tmask_ref, embln_ref,
         wsaqkv_ref, wsao_ref,
         wffi_ref, wffo_ref, hb_ref, vec_ref, o_ref) = refs

    l = pl.program_id(1)
    t, h = emb_ref.shape[1], emb_ref.shape[2]
    dh = h // nh
    scale = float(dh) ** -0.5

    @pl.when(l == 0)                               # embedding LayerNorm folded in
    def _():
        o_ref[0] = _ln(emb_ref[0], embln_ref[0:1], embln_ref[1:2], BERT_EPS)

    x = o_ref[0]                                   # (T, H) f32, carried across layers
    tmask = tmask_ref[0]                           # (1, T) additive key mask
    vec = vec_ref[0]                               # (16, WVEC_T)
    hbias = hb_ref[0]                              # (6*nh, dh) per-head biases

    b_sao = _row(vec, BRT_B_SAO, h)
    sag, sab = _row(vec, BRT_SA_LN_G, h), _row(vec, BRT_SA_LN_B, h)
    b_ffi = _row(vec, BRT_B_FFI, wffi_ref.shape[-1])
    b_ffo = _row(vec, BRT_B_FFO, h)
    ffg, ffb = _row(vec, BRT_FF_LN_G, h), _row(vec, BRT_FF_LN_B, h)

    # --- self-attention ---
    xb = x.astype(jnp.bfloat16)
    qkv = _proj_heads(xb, wsaqkv_ref[0], hbias[0:3 * nh])          # (3H, T, dh)
    q, k, v = qkv[:nh], qkv[nh:2 * nh], qkv[2 * nh:]
    so = _mha(q, k, v, wsao_ref[0], scale, tmask) + b_sao
    x = _ln(x + so, sag, sab, BERT_EPS)

    # --- cross-attention over the (padded) image embeds ---
    if has_cross:
        b_cao = _row(vec, BRT_B_CAO, h)
        cag, cab = _row(vec, BRT_CA_LN_G, h), _row(vec, BRT_CA_LN_B, h)
        enc = enc_ref[0]                           # (TV, V_DIM) bf16
        vmask = vmask_ref[...]                     # (1, TV) pad-key mask
        xb = x.astype(jnp.bfloat16)
        qc = _proj_heads(xb, wcaq_ref[0], hbias[3 * nh:4 * nh])    # (H, T, dh)
        kvc = _proj_heads(enc, wcakv_ref[0], hbias[4 * nh:6 * nh])  # (2H, TV, dh)
        kc, vc = kvc[:nh], kvc[nh:]
        co = _mha(qc, kc, vc, wcao_ref[0], scale, vmask) + b_cao
        x = _ln(x + co, cag, cab, BERT_EPS)

    # --- feed-forward ---
    xb = x.astype(jnp.bfloat16)
    inter = _gelu(jnp.dot(xb, wffi_ref[0], preferred_element_type=jnp.float32) + b_ffi)
    ffo = jnp.dot(inter.astype(jnp.bfloat16), wffo_ref[0],
                  preferred_element_type=jnp.float32) + b_ffo
    x = _ln(x + ffo, ffg, ffb, BERT_EPS)
    o_ref[0] = x


# ---------------- parameter init (deterministic, synthetic, layer-stacked) ----------
def init_params(key):
    keys = iter(jax.random.split(key, 32))

    def nxt():
        return next(keys)

    def w(shape):  # matmul weights live in bf16 (native MXU dtype, half the DMA)
        return (0.02 * jax.random.normal(nxt(), shape, jnp.float32)).astype(jnp.bfloat16)

    # ---- visual encoder ----
    patch_vec = jnp.concatenate([
        jnp.zeros((1, V_DIM), jnp.float32),                              # conv bias
        0.02 * jax.random.normal(nxt(), (1, V_DIM), jnp.float32),        # cls token
        0.02 * jax.random.normal(nxt(), (NVIS, V_DIM), jnp.float32),     # pos embed
        jnp.zeros((8 - 2 - NVIS, V_DIM), jnp.float32),                   # pad
    ], axis=0)
    vit_vec = jnp.zeros((V_DEPTH, 8, WVEC_V), jnp.float32)
    vit_vec = vit_vec.at[:, VIT_LN1_G, :V_DIM].set(1.0)
    vit_vec = vit_vec.at[:, VIT_LN2_G, :V_DIM].set(1.0)
    visual = {
        "patch_w": w((C_IN * P * P, V_DIM)),
        "patch_vec": patch_vec,
        "w_qkv": w((V_DEPTH, 3 * V_HEADS, V_DIM, DH_V)),
        "b_qkv": jnp.zeros((V_DEPTH, 3 * V_HEADS, DH_V), jnp.float32),
        "w_proj": w((V_DEPTH, V_HEADS, DH_V, V_DIM)),
        "w_fc1": w((V_DEPTH, V_DIM, V_MLP)),
        "w_fc2": w((V_DEPTH, V_MLP, V_DIM)),
        "vecs": vit_vec,
        "final_ln": jnp.concatenate([jnp.ones((1, V_DIM), jnp.float32),
                                     jnp.zeros((1, V_DIM), jnp.float32)], axis=0),
    }

    # ---- text encoder ----
    bert_vec = jnp.zeros((T_LAYERS, 16, WVEC_T), jnp.float32)
    for r in (BRT_SA_LN_G, BRT_CA_LN_G, BRT_FF_LN_G):
        bert_vec = bert_vec.at[:, r, :T_HID].set(1.0)
    text = {
        "word_emb": 0.02 * jax.random.normal(nxt(), (VOCAB, T_HID), jnp.float32),
        "pos_emb": 0.02 * jax.random.normal(nxt(), (MAX_POS, T_HID), jnp.float32),
        "emb_ln": jnp.concatenate([jnp.ones((1, T_HID), jnp.float32),
                                   jnp.zeros((1, T_HID), jnp.float32)], axis=0),
        "w_sa_qkv": w((T_LAYERS, 3 * T_HEADS, T_HID, DH_T)),
        "w_sa_o": w((T_LAYERS, T_HEADS, DH_T, T_HID)),
        "w_ca_q": w((T_LAYERS, T_HEADS, T_HID, DH_T)),
        "w_ca_kv": w((T_LAYERS, 2 * T_HEADS, V_DIM, DH_T)),
        "w_ca_o": w((T_LAYERS, T_HEADS, DH_T, T_HID)),
        "w_ffn_i": w((T_LAYERS, T_HID, T_INTER)),
        "w_ffn_o": w((T_LAYERS, T_INTER, T_HID)),
        "head_bias": jnp.zeros((T_LAYERS, 6 * T_HEADS, DH_T), jnp.float32),
        "vecs": bert_vec,
    }
    return {"visual": visual, "text": text}


# ---------------- forward passes ----------------
def _vis_pad_mask():
    # additive key mask hiding the padded image rows (rows NVIS..TV-1)
    return jnp.where(jnp.arange(TV)[None, :] < NVIS, 0.0, NEG_INF).astype(jnp.float32)


def vit_forward(vp, image):
    """VisionTransformer: patch-embed (conv as matmul) + cls/pos, then one
    layer-stacked pallas_call with grid=(batch, depth)."""
    b = image.shape[0]
    # NCHW -> (B, num_patches, C*P*P) patch rows (conv with kernel==stride==P)
    x = image.reshape(b, C_IN, IMG // P, P, IMG // P, P)
    x = x.transpose(0, 2, 4, 1, 3, 5).reshape(b, NPATCH, C_IN * P * P)

    x = pl.pallas_call(
        _patch_embed_kernel,
        out_shape=jax.ShapeDtypeStruct((b, TV, V_DIM), jnp.float32),
        in_specs=[_VMEM, _VMEM, _VMEM],
        out_specs=_VMEM,
    )(x, vp["patch_w"], vp["patch_vec"])

    out = pl.pallas_call(
        functools.partial(_vit_blocks_kernel, V_HEADS),
        out_shape=jax.ShapeDtypeStruct((b, TV, V_DIM), jnp.float32),
        grid=(b, V_DEPTH),
        in_specs=[
            pl.BlockSpec((1, TV, V_DIM), lambda bb, l: (bb, 0, 0)),
            pl.BlockSpec((1, TV), lambda bb, l: (0, 0)),
            pl.BlockSpec((1, 3 * V_HEADS, V_DIM, DH_V), lambda bb, l: (l, 0, 0, 0)),
            pl.BlockSpec((1, 3 * V_HEADS, DH_V), lambda bb, l: (l, 0, 0)),
            pl.BlockSpec((1, V_HEADS, DH_V, V_DIM), lambda bb, l: (l, 0, 0, 0)),
            pl.BlockSpec((1, V_DIM, V_MLP), lambda bb, l: (l, 0, 0)),
            pl.BlockSpec((1, V_MLP, V_DIM), lambda bb, l: (l, 0, 0)),
            pl.BlockSpec((1, 8, WVEC_V), lambda bb, l: (l, 0, 0)),
            pl.BlockSpec((2, V_DIM), lambda bb, l: (0, 0)),
        ],
        out_specs=pl.BlockSpec((1, TV, V_DIM), lambda bb, l: (bb, 0, 0)),
        compiler_params=pltpu.CompilerParams(
            dimension_semantics=("parallel", "arbitrary"),
            vmem_limit_bytes=32 * 1024 * 1024),
    )(x, _vis_pad_mask(), vp["w_qkv"], vp["b_qkv"], vp["w_proj"],
      vp["w_fc1"], vp["w_fc2"], vp["vecs"], vp["final_ln"])
    return out                                       # padded: (B, TV, V_DIM)


def bert_forward(tp, input_ids, attention_mask, enc_hidden=None, vis_mask=None):
    """BLIP med BertModel (no pooler): embeddings + one layer-stacked pallas_call
    with grid=(batch, layers); cross-attention iff enc_hidden is given."""
    b, t = input_ids.shape
    # Embedding-table gather stays as plain-JAX glue; the embedding LayerNorm is
    # folded into the layer-0 grid step of the fused kernel.
    emb = jnp.take(tp["word_emb"], input_ids, axis=0) + tp["pos_emb"][None, :t, :]
    tmask = ((1.0 - attention_mask.astype(jnp.float32)) * -10000.0)[:, None, :]
    has_cross = enc_hidden is not None
    nh = T_HEADS

    inputs = [emb, tmask]
    in_specs = [
        pl.BlockSpec((1, t, T_HID), lambda bb, l: (bb, 0, 0)),
        pl.BlockSpec((1, 1, t), lambda bb, l: (bb, 0, 0)),
    ]
    if has_cross:
        inputs += [enc_hidden.astype(jnp.bfloat16), vis_mask]
        in_specs += [
            pl.BlockSpec((1, TV, V_DIM), lambda bb, l: (bb, 0, 0)),
            pl.BlockSpec((1, TV), lambda bb, l: (0, 0)),
        ]
    inputs += [tp["emb_ln"], tp["w_sa_qkv"], tp["w_sa_o"]]
    in_specs += [
        pl.BlockSpec((2, T_HID), lambda bb, l: (0, 0)),
        pl.BlockSpec((1, 3 * nh, T_HID, DH_T), lambda bb, l: (l, 0, 0, 0)),
        pl.BlockSpec((1, nh, DH_T, T_HID), lambda bb, l: (l, 0, 0, 0)),
    ]
    if has_cross:
        inputs += [tp["w_ca_q"], tp["w_ca_kv"], tp["w_ca_o"]]
        in_specs += [
            pl.BlockSpec((1, nh, T_HID, DH_T), lambda bb, l: (l, 0, 0, 0)),
            pl.BlockSpec((1, 2 * nh, V_DIM, DH_T), lambda bb, l: (l, 0, 0, 0)),
            pl.BlockSpec((1, nh, DH_T, T_HID), lambda bb, l: (l, 0, 0, 0)),
        ]
    inputs += [tp["w_ffn_i"], tp["w_ffn_o"], tp["head_bias"], tp["vecs"]]
    in_specs += [
        pl.BlockSpec((1, T_HID, T_INTER), lambda bb, l: (l, 0, 0)),
        pl.BlockSpec((1, T_INTER, T_HID), lambda bb, l: (l, 0, 0)),
        pl.BlockSpec((1, 6 * nh, DH_T), lambda bb, l: (l, 0, 0)),
        pl.BlockSpec((1, 16, WVEC_T), lambda bb, l: (l, 0, 0)),
    ]

    return pl.pallas_call(
        functools.partial(_bert_layers_kernel, nh, has_cross),
        out_shape=jax.ShapeDtypeStruct((b, t, T_HID), jnp.float32),
        grid=(b, T_LAYERS),
        in_specs=in_specs,
        out_specs=pl.BlockSpec((1, t, T_HID), lambda bb, l: (bb, 0, 0)),
        compiler_params=pltpu.CompilerParams(
            dimension_semantics=("parallel", "arbitrary"),
            vmem_limit_bytes=32 * 1024 * 1024),
    )(*inputs)


def blip_base_forward(params, image, input_ids, attention_mask, mode):
    assert mode in ("image", "text", "multimodal"), \
        "mode parameter must be image, text, or multimodal"
    if mode == "image":
        x = vit_forward(params["visual"], image)
        return x[:, :NVIS, :]                         # drop the pad rows
    if mode == "text":
        return bert_forward(params["text"], input_ids, attention_mask)
    # multimodal
    image_embeds = vit_forward(params["visual"], image)          # padded (B, TV, D)
    ids = input_ids.at[:, 0].set(ENC_TOKEN_ID)        # text.input_ids[:, 0] = enc_token
    return bert_forward(params["text"], ids, attention_mask,
                        enc_hidden=image_embeds, vis_mask=_vis_pad_mask())


# ---------------- main ----------------
if __name__ == "__main__":
    key = jax.random.PRNGKey(0)
    pkey, ikey, tkey = jax.random.split(key, 3)
    params = init_params(pkey)

    image = jax.random.normal(ikey, (B, C_IN, IMG, IMG), jnp.float32)    # NCHW
    input_ids = jax.random.randint(tkey, (B, SEQ), 5, VOCAB, dtype=jnp.int32)
    attention_mask = jnp.ones((B, SEQ), jnp.int32)

    fwd = jax.jit(blip_base_forward, static_argnames=("mode",))
    img_out = fwd(params, image, input_ids, attention_mask, mode="image")
    txt_out = fwd(params, image, input_ids, attention_mask, mode="text")
    mm_out = fwd(params, image, input_ids, attention_mask, mode="multimodal")
    jax.block_until_ready((img_out, txt_out, mm_out))

    assert img_out.shape == (B, NVIS, V_DIM)
    assert txt_out.shape == (B, SEQ, T_HID)
    assert mm_out.shape == (B, SEQ, T_HID)
    for o in (img_out, txt_out, mm_out):
        assert bool(jnp.all(jnp.isfinite(o)))
    print("KERNEL_OK")
</pallas_src>

<mosaic_0001>
module attributes {stable_mosaic.version = 11 : i64} {
  func.func @_patch_embed_kernel(%arg0: memref<2x4x768xf32, #tpu.memory_space<vmem>>, %arg1: memref<768x256xbf16, #tpu.memory_space<vmem>>, %arg2: memref<8x256xf32, #tpu.memory_space<vmem>>, %arg3: memref<2x8x256xf32, #tpu.memory_space<vmem>>) attributes {dimension_semantics = [], scalar_prefetch = 0 : i64, scratch_operands = 0 : i64, tpu.core_type = #tpu.core_type<tc>} {
    %c0 = arith.constant 0 : index
    %c0_0 = arith.constant 0 : index
    %c0_1 = arith.constant 0 : index
    %0 = vector.load %arg0[%c0, %c0_0, %c0_1] : memref<2x4x768xf32, #tpu.memory_space<vmem>>, vector<2x4x768xf32>
    %1 = vector.shape_cast %0 : vector<2x4x768xf32> to vector<8x768xf32>
    %2 = arith.truncf %1 : vector<8x768xf32> to vector<8x768xbf16>
    %c0_2 = arith.constant 0 : index
    %c0_3 = arith.constant 0 : index
    %3 = vector.load %arg1[%c0_2, %c0_3] : memref<768x256xbf16, #tpu.memory_space<vmem>>, vector<768x256xbf16>
    %cst = arith.constant dense<0.000000e+00> : vector<8x256xf32>
    %4 = tpu.matmul %2, %3, %cst {dimension_numbers = #tpu.dot_dimension_numbers<[1], [0], [0], [1], [0, 0, 1, 1], [], []>} : vector<8x768xbf16>, vector<768x256xbf16>, vector<8x256xf32> -> vector<8x256xf32>
    %c0_4 = arith.constant 0 : index
    %c0_5 = arith.constant 0 : index
    %5 = vector.load %arg2[%c0_4, %c0_5] : memref<8x256xf32, #tpu.memory_space<vmem>>, vector<1x256xf32>
    %c1 = arith.constant 1 : index
    %c0_6 = arith.constant 0 : index
    %6 = vector.load %arg2[%c1, %c0_6] : memref<8x256xf32, #tpu.memory_space<vmem>>, vector<1x256xf32>
    %c2 = arith.constant 2 : index
    %c0_7 = arith.constant 0 : index
    %7 = vector.load %arg2[%c2, %c0_7] : memref<8x256xf32, #tpu.memory_space<vmem>>, vector<5x256xf32>
    %8 = vector.broadcast %5 : vector<1x256xf32> to vector<8x256xf32>
    %9 = arith.addf %4, %8 : vector<8x256xf32>
    %10 = vector.shape_cast %9 : vector<8x256xf32> to vector<2x4x256xf32>
    %11 = vector.extract_strided_slice %7 {offsets = [1, 0], sizes = [4, 256], strides = [1, 1]} : vector<5x256xf32> to vector<4x256xf32>
    %12 = vector.shape_cast %11 : vector<4x256xf32> to vector<1x4x256xf32>
    %13 = vector.broadcast %12 : vector<1x4x256xf32> to vector<2x4x256xf32>
    %14 = arith.addf %10, %13 : vector<2x4x256xf32>
    %15 = vector.extract_strided_slice %7 {offsets = [0, 0], sizes = [1, 256], strides = [1, 1]} : vector<5x256xf32> to vector<1x256xf32>
    %16 = arith.addf %6, %15 : vector<1x256xf32>
    %17 = vector.shape_cast %16 : vector<1x256xf32> to vector<1x1x256xf32>
    %18 = vector.shape_cast %17 : vector<1x1x256xf32> to vector<1x1x256xf32>
    %19 = vector.broadcast %18 : vector<1x1x256xf32> to vector<2x1x256xf32>
    %cst_8 = arith.constant 0.000000e+00 : f32
    %20 = vector.broadcast %cst_8 : f32 to vector<2x3x256xf32>
    %21 = tpu.concatenate %19, %14, %20 in 1 : vector<2x1x256xf32>, vector<2x4x256xf32>, vector<2x3x256xf32> -> vector<2x8x256xf32>
    %c0_9 = arith.constant 0 : index
    %c0_10 = arith.constant 0 : index
    %c0_11 = arith.constant 0 : index
    %22 = vector.load %arg3[%c0_9, %c0_10, %c0_11] : memref<2x8x256xf32, #tpu.memory_space<vmem>>, vector<2x8x256xf32>
    tpu.vector_store %arg3[%c0_9, %c0_10, %c0_11], %21 {strides = array<i32>} : memref<2x8x256xf32, #tpu.memory_space<vmem>>, vector<2x8x256xf32>,
    return
  }
}

module attributes {stable_mosaic.version = 11 : i64} {
  func.func @_vit_blocks_kernel(%arg0: i32, %arg1: i32, %arg2: memref<1x8x256xf32, #tpu.memory_space<vmem>>, %arg3: memref<1x8xf32, #tpu.memory_space<vmem>>, %arg4: memref<1x6x256x128xbf16, #tpu.memory_space<vmem>>, %arg5: memref<1x6x128xf32, #tpu.memory_space<vmem>>, %arg6: memref<1x2x128x256xbf16, #tpu.memory_space<vmem>>, %arg7: memref<1x256x1024xbf16, #tpu.memory_space<vmem>>, %arg8: memref<1x1024x256xbf16, #tpu.memory_space<vmem>>, %arg9: memref<1x8x1024xf32, #tpu.memory_space<vmem>>, %arg10: memref<2x256xf32, #tpu.memory_space<vmem>>, %arg11: memref<1x8x256xf32, #tpu.memory_space<vmem>>) attributes {dimension_semantics = [#tpu.dimension_semantics<parallel>, #tpu.dimension_semantics<arbitrary>], iteration_bounds = array<i64: 2, 2>, scalar_prefetch = 0 : i64, scratch_operands = 0 : i64, tpu.core_type = #tpu.core_type<tc>, window_params = [{transform_indices = @transform_0, window_bounds = array<i64: 1, 8, 256>}, {pipeline_mode = #tpu.pipeline_mode<synchronous>, transform_indices = @transform_1, window_bounds = array<i64: 1, 8>}, {transform_indices = @transform_2, window_bounds = array<i64: 1, 6, 256, 128>}, {transform_indices = @transform_3, window_bounds = array<i64: 1, 6, 128>}, {transform_indices = @transform_4, window_bounds = array<i64: 1, 2, 128, 256>}, {transform_indices = @transform_5, window_bounds = array<i64: 1, 256, 1024>}, {transform_indices = @transform_6, window_bounds = array<i64: 1, 1024, 256>}, {transform_indices = @transform_7, window_bounds = array<i64: 1, 8, 1024>}, {pipeline_mode = #tpu.pipeline_mode<synchronous>, transform_indices = @transform_8, window_bounds = array<i64: 2, 256>}, {transform_indices = @transform_9, window_bounds = array<i64: 1, 8, 256>}]} {
    %c0_i32 = arith.constant 0 : i32
    %0 = arith.cmpi eq, %arg1, %c0_i32 : i32
    %1 = arith.extui %0 : i1 to i32
    %c0_i32_0 = arith.constant 0 : i32
    %2 = arith.cmpi ne, %1, %c0_i32_0 : i32
    scf.if %2 {
      %c0_51 = arith.constant 0 : index
      %c0_52 = arith.constant 0 : index
      %c0_53 = arith.constant 0 : index
      %130 = vector.load %arg2[%c0_51, %c0_52, %c0_53] : memref<1x8x256xf32, #tpu.memory_space<vmem>>, vector<1x8x256xf32>
      %c0_54 = arith.constant 0 : index
      %c0_55 = arith.constant 0 : index
      %c0_56 = arith.constant 0 : index
      %131 = vector.load %arg11[%c0_54, %c0_55, %c0_56] : memref<1x8x256xf32, #tpu.memory_space<vmem>>, vector<1x8x256xf32>
      tpu.vector_store %arg11[%c0_54, %c0_55, %c0_56], %130 {strides = array<i32>} : memref<1x8x256xf32, #tpu.memory_space<vmem>>, vector<1x8x256xf32>,
    } else {
    }
    %c0 = arith.constant 0 : index
    %c0_1 = arith.constant 0 : index
    %c0_2 = arith.constant 0 : index
    %3 = vector.load %arg11[%c0, %c0_1, %c0_2] : memref<1x8x256xf32, #tpu.memory_space<vmem>>, vector<1x8x256xf32>
    %4 = vector.shape_cast %3 : vector<1x8x256xf32> to vector<8x256xf32>
    %c0_3 = arith.constant 0 : index
    %c0_4 = arith.constant 0 : index
    %c0_5 = arith.constant 0 : index
    %5 = vector.load %arg9[%c0_3, %c0_4, %c0_5] : memref<1x8x1024xf32, #tpu.memory_space<vmem>>, vector<1x8x1024xf32>
    %6 = vector.shape_cast %5 : vector<1x8x1024xf32> to vector<8x1024xf32>
    %c0_6 = arith.constant 0 : index
    %c0_7 = arith.constant 0 : index
    %7 = vector.load %arg3[%c0_6, %c0_7] : memref<1x8xf32, #tpu.memory_space<vmem>>, vector<1x8xf32>
    %8 = vector.extract_strided_slice %6 {offsets = [0, 0], sizes = [1, 256], strides = [1, 1]} : vector<8x1024xf32> to vector<1x256xf32>
    %9 = vector.extract_strided_slice %6 {offsets = [1, 0], sizes = [1, 256], strides = [1, 1]} : vector<8x1024xf32> to vector<1x256xf32>
    %10 = vector.extract_strided_slice %6 {offsets = [3, 0], sizes = [1, 256], strides = [1, 1]} : vector<8x1024xf32> to vector<1x256xf32>
    %11 = vector.extract_strided_slice %6 {offsets = [4, 0], sizes = [1, 256], strides = [1, 1]} : vector<8x1024xf32> to vector<1x256xf32>
    %12 = vector.extract_strided_slice %6 {offsets = [2, 0], sizes = [1, 256], strides = [1, 1]} : vector<8x1024xf32> to vector<1x256xf32>
    %13 = vector.extract_strided_slice %6 {offsets = [5, 0], sizes = [1, 1024], strides = [1, 1]} : vector<8x1024xf32> to vector<1x1024xf32>
    %14 = vector.extract_strided_slice %6 {offsets = [6, 0], sizes = [1, 256], strides = [1, 1]} : vector<8x1024xf32> to vector<1x256xf32>
    %cst = arith.constant dense<0.000000e+00> : vector<8xf32>
    %15 = vector.multi_reduction <add>, %4, %cst [1] : vector<8x256xf32> to vector<8xf32>
    %16 = vector.shape_cast %15 : vector<8xf32> to vector<8x1xf32>
    %cst_8 = arith.constant 2.560000e+02 : f32
    %17 = vector.broadcast %cst_8 : f32 to vector<8x1xf32>
    %18 = arith.divf %16, %17 : vector<8x1xf32>
    %19 = vector.broadcast %18 : vector<8x1xf32> to vector<8x256xf32>
    %20 = arith.subf %4, %19 : vector<8x256xf32>
    %21 = arith.mulf %20, %20 : vector<8x256xf32>
    %cst_9 = arith.constant dense<0.000000e+00> : vector<8xf32>
    %22 = vector.multi_reduction <add>, %21, %cst_9 [1] : vector<8x256xf32> to vector<8xf32>
    %23 = vector.shape_cast %22 : vector<8xf32> to vector<8x1xf32>
    %cst_10 = arith.constant 2.560000e+02 : f32
    %24 = vector.broadcast %cst_10 : f32 to vector<8x1xf32>
    %25 = arith.divf %23, %24 : vector<8x1xf32>
    %26 = vector.broadcast %18 : vector<8x1xf32> to vector<8x256xf32>
    %27 = arith.subf %4, %26 : vector<8x256xf32>
    %cst_11 = arith.constant 9.99999997E-7 : f32
    %28 = vector.broadcast %cst_11 : f32 to vector<8x1xf32>
    %29 = arith.addf %25, %28 : vector<8x1xf32>
    %30 = math.rsqrt %29 : vector<8x1xf32>
    %31 = vector.broadcast %30 : vector<8x1xf32> to vector<8x256xf32>
    %32 = arith.mulf %27, %31 : vector<8x256xf32>
    %33 = vector.broadcast %8 : vector<1x256xf32> to vector<8x256xf32>
    %34 = arith.mulf %32, %33 : vector<8x256xf32>
    %35 = vector.broadcast %9 : vector<1x256xf32> to vector<8x256xf32>
    %36 = arith.addf %34, %35 : vector<8x256xf32>
    %37 = arith.truncf %36 : vector<8x256xf32> to vector<8x256xbf16>
    %c0_12 = arith.constant 0 : index
    %c0_13 = arith.constant 0 : index
    %c0_14 = arith.constant 0 : index
    %c0_15 = arith.constant 0 : index
    %38 = vector.load %arg4[%c0_12, %c0_13, %c0_14, %c0_15] : memref<1x6x256x128xbf16, #tpu.memory_space<vmem>>, vector<1x6x256x128xbf16>
    %39 = vector.shape_cast %38 : vector<1x6x256x128xbf16> to vector<6x256x128xbf16>
    %c0_16 = arith.constant 0 : index
    %c0_17 = arith.constant 0 : index
    %c0_18 = arith.constant 0 : index
    %40 = vector.load %arg5[%c0_16, %c0_17, %c0_18] : memref<1x6x128xf32, #tpu.memory_space<vmem>>, vector<1x6x128xf32>
    %41 = vector.shape_cast %40 : vector<1x6x128xf32> to vector<6x128xf32>
    %42 = vector.shape_cast %37 : vector<8x256xbf16> to vector<1x8x256xbf16>
    %43 = vector.shape_cast %42 : vector<1x8x256xbf16> to vector<1x8x256xbf16>
    %44 = vector.broadcast %43 : vector<1x8x256xbf16> to vector<6x8x256xbf16>
    "tpu.trace_start"() <{level = 10 : i32, message = "ntd,ndk->ntk"}> : () -> ()
    %cst_19 = arith.constant dense<0.000000e+00> : vector<6x8x128xf32>
    %45 = tpu.matmul %44, %39, %cst_19 {dimension_numbers = #tpu.dot_dimension_numbers<[2], [1], [1], [2], [0, 0, 0, 1, 1, 2], [0], [0]>} : vector<6x8x256xbf16>, vector<6x256x128xbf16>, vector<6x8x128xf32> -> vector<6x8x128xf32>
    "tpu.trace_stop"() : () -> ()
    %46 = vector.shape_cast %41 : vector<6x128xf32> to vector<6x1x128xf32>
    %47 = vector.broadcast %46 : vector<6x1x128xf32> to vector<6x8x128xf32>
    %48 = arith.addf %45, %47 : vector<6x8x128xf32>
    %49 = vector.extract_strided_slice %48 {offsets = [0, 0, 0], sizes = [2, 8, 128], strides = [1, 1, 1]} : vector<6x8x128xf32> to vector<2x8x128xf32>
    %50 = vector.extract_strided_slice %48 {offsets = [2, 0, 0], sizes = [2, 8, 128], strides = [1, 1, 1]} : vector<6x8x128xf32> to vector<2x8x128xf32>
    %51 = vector.extract_strided_slice %48 {offsets = [4, 0, 0], sizes = [2, 8, 128], strides = [1, 1, 1]} : vector<6x8x128xf32> to vector<2x8x128xf32>
    %c0_20 = arith.constant 0 : index
    %c0_21 = arith.constant 0 : index
    %c0_22 = arith.constant 0 : index
    %c0_23 = arith.constant 0 : index
    %52 = vector.load %arg6[%c0_20, %c0_21, %c0_22, %c0_23] : memref<1x2x128x256xbf16, #tpu.memory_space<vmem>>, vector<1x2x128x256xbf16>
    %53 = vector.shape_cast %52 : vector<1x2x128x256xbf16> to vector<2x128x256xbf16>
    %54 = arith.truncf %49 : vector<2x8x128xf32> to vector<2x8x128xbf16>
    %55 = arith.truncf %50 : vector<2x8x128xf32> to vector<2x8x128xbf16>
    "tpu.trace_start"() <{level = 10 : i32, message = "hqd,hkd->hqk"}> : () -> ()
    %cst_24 = arith.constant dense<0.000000e+00> : vector<2x8x8xf32>
    %56 = tpu.matmul %54, %55, %cst_24 {dimension_numbers = #tpu.dot_dimension_numbers<[2], [2], [1], [1], [0, 0, 0, 1, 1, 1], [0], [0]>} : vector<2x8x128xbf16>, vector<2x8x128xbf16>, vector<2x8x8xf32> -> vector<2x8x8xf32>
    "tpu.trace_stop"() : () -> ()
    %cst_25 = arith.constant 0.0883883461 : f32
    %57 = vector.broadcast %cst_25 : f32 to vector<2x8x8xf32>
    %58 = arith.mulf %56, %57 : vector<2x8x8xf32>
    %59 = vector.shape_cast %7 : vector<1x8xf32> to vector<1x1x8xf32>
    %60 = vector.broadcast %59 : vector<1x1x8xf32> to vector<2x8x8xf32>
    %61 = arith.addf %58, %60 : vector<2x8x8xf32>
    %cst_26 = arith.constant dense<0xFF800000> : vector<2x8xf32>
    %62 = vector.multi_reduction <maximumf>, %61, %cst_26 [2] : vector<2x8x8xf32> to vector<2x8xf32>
    %63 = vector.shape_cast %62 : vector<2x8xf32> to vector<2x8x1xf32>
    %64 = vector.broadcast %63 : vector<2x8x1xf32> to vector<2x8x8xf32>
    %65 = arith.subf %61, %64 : vector<2x8x8xf32>
    %66 = math.exp %65 : vector<2x8x8xf32>
    %cst_27 = arith.constant dense<0.000000e+00> : vector<2x8xf32>
    %67 = vector.multi_reduction <add>, %66, %cst_27 [2] : vector<2x8x8xf32> to vector<2x8xf32>
    %68 = vector.shape_cast %67 : vector<2x8xf32> to vector<2x8x1xf32>
    %69 = tpu.reciprocal %68 {approx = true} : vector<2x8x1xf32> -> vector<2x8x1xf32>
    %70 = vector.broadcast %69 : vector<2x8x1xf32> to vector<2x8x8xf32>
    %71 = arith.mulf %66, %70 : vector<2x8x8xf32>
    %72 = arith.truncf %71 : vector<2x8x8xf32> to vector<2x8x8xbf16>
    %73 = arith.truncf %51 : vector<2x8x128xf32> to vector<2x8x128xbf16>
    "tpu.trace_start"() <{level = 10 : i32, message = "hqk,hkd->hqd"}> : () -> ()
    %cst_28 = arith.constant dense<0.000000e+00> : vector<2x8x128xf32>
    %74 = tpu.matmul %72, %73, %cst_28 {dimension_numbers = #tpu.dot_dimension_numbers<[2], [1], [1], [2], [0, 0, 0, 1, 1, 2], [0], [0]>} : vector<2x8x8xbf16>, vector<2x8x128xbf16>, vector<2x8x128xf32> -> vector<2x8x128xf32>
    "tpu.trace_stop"() : () -> ()
    %75 = arith.truncf %74 : vector<2x8x128xf32> to vector<2x8x128xbf16>
    "tpu.trace_start"() <{level = 10 : i32, message = "hqd,hdo->hqo"}> : () -> ()
    %cst_29 = arith.constant dense<0.000000e+00> : vector<2x8x256xf32>
    %76 = tpu.matmul %75, %53, %cst_29 {dimension_numbers = #tpu.dot_dimension_numbers<[2], [1], [1], [2], [0, 0, 0, 1, 1, 2], [0], [0]>} : vector<2x8x128xbf16>, vector<2x128x256xbf16>, vector<2x8x256xf32> -> vector<2x8x256xf32>
    "tpu.trace_stop"() : () -> ()
    %cst_30 = arith.constant dense<0.000000e+00> : vector<8x256xf32>
    %77 = vector.multi_reduction <add>, %76, %cst_30 [0] : vector<2x8x256xf32> to vector<8x256xf32>
    %78 = arith.addf %4, %77 : vector<8x256xf32>
    %79 = vector.broadcast %12 : vector<1x256xf32> to vector<8x256xf32>
    %80 = arith.addf %78, %79 : vector<8x256xf32>
    %cst_31 = arith.constant dense<0.000000e+00> : vector<8xf32>
    %81 = vector.multi_reduction <add>, %80, %cst_31 [1] : vector<8x256xf32> to vector<8xf32>
    %82 = vector.shape_cast %81 : vector<8xf32> to vector<8x1xf32>
    %cst_32 = arith.constant 2.560000e+02 : f32
    %83 = vector.broadcast %cst_32 : f32 to vector<8x1xf32>
    %84 = arith.divf %82, %83 : vector<8x1xf32>
    %85 = vector.broadcast %84 : vector<8x1xf32> to vector<8x256xf32>
    %86 = arith.subf %80, %85 : vector<8x256xf32>
    %87 = arith.mulf %86, %86 : vector<8x256xf32>
    %cst_33 = arith.constant dense<0.000000e+00> : vector<8xf32>
    %88 = vector.multi_reduction <add>, %87, %cst_33 [1] : vector<8x256xf32> to vector<8xf32>
    %89 = vector.shape_cast %88 : vector<8xf32> to vector<8x1xf32>
    %cst_34 = arith.constant 2.560000e+02 : f32
    %90 = vector.broadcast %cst_34 : f32 to vector<8x1xf32>
    %91 = arith.divf %89, %90 : vector<8x1xf32>
    %92 = vector.broadcast %84 : vector<8x1xf32> to vector<8x256xf32>
    %93 = arith.subf %80, %92 : vector<8x256xf32>
    %cst_35 = arith.constant 9.99999997E-7 : f32
    %94 = vector.broadcast %cst_35 : f32 to vector<8x1xf32>
    %95 = arith.addf %91, %94 : vector<8x1xf32>
    %96 = math.rsqrt %95 : vector<8x1xf32>
    %97 = vector.broadcast %96 : vector<8x1xf32> to vector<8x256xf32>
    %98 = arith.mulf %93, %97 : vector<8x256xf32>
    %99 = vector.broadcast %10 : vector<1x256xf32> to vector<8x256xf32>
    %100 = arith.mulf %98, %99 : vector<8x256xf32>
    %101 = vector.broadcast %11 : vector<1x256xf32> to vector<8x256xf32>
    %102 = arith.addf %100, %101 : vector<8x256xf32>
    %103 = arith.truncf %102 : vector<8x256xf32> to vector<8x256xbf16>
    %c0_36 = arith.constant 0 : index
    %c0_37 = arith.constant 0 : index
    %c0_38 = arith.constant 0 : index
    %104 = vector.load %arg7[%c0_36, %c0_37, %c0_38] : memref<1x256x1024xbf16, #tpu.memory_space<vmem>>, vector<1x256x1024xbf16>
    %105 = vector.shape_cast %104 : vector<1x256x1024xbf16> to vector<256x1024xbf16>
    %cst_39 = arith.constant dense<0.000000e+00> : vector<8x1024xf32>
    %106 = tpu.matmul %103, %105, %cst_39 {dimension_numbers = #tpu.dot_dimension_numbers<[1], [0], [0], [1], [0, 0, 1, 1], [], []>} : vector<8x256xbf16>, vector<256x1024xbf16>, vector<8x1024xf32> -> vector<8x1024xf32>
    %107 = vector.broadcast %13 : vector<1x1024xf32> to vector<8x1024xf32>
    %108 = arith.addf %106, %107 : vector<8x1024xf32>
    %cst_40 = arith.constant 5.000000e-01 : f32
    %109 = vector.broadcast %cst_40 : f32 to vector<8x1024xf32>
    %110 = arith.mulf %109, %108 : vector<8x1024xf32>
    %cst_41 = arith.constant 0.707106769 : f32
    %111 = vector.broadcast %cst_41 : f32 to vector<8x1024xf32>
    %112 = arith.mulf %108, %111 : vector<8x1024xf32>
    %113 = math.erf %112 : vector<8x1024xf32>
    %cst_42 = arith.constant 1.000000e+00 : f32
    %114 = vector.broadcast %cst_42 : f32 to vector<8x1024xf32>
    %115 = arith.addf %114, %113 : vector<8x1024xf32>
    %116 = arith.mulf %110, %115 : vector<8x1024xf32>
    %117 = arith.truncf %116 : vector<8x1024xf32> to vector<8x1024xbf16>
    %c0_43 = arith.constant 0 : index
    %c0_44 = arith.constant 0 : index
    %c0_45 = arith.constant 0 : index
    %118 = vector.load %arg8[%c0_43, %c0_44, %c0_45] : memref<1x1024x256xbf16, #tpu.memory_space<vmem>>, vector<1x1024x256xbf16>
    %119 = vector.shape_cast %118 : vector<1x1024x256xbf16> to vector<1024x256xbf16>
    %cst_46 = arith.constant dense<0.000000e+00> : vector<8x256xf32>
    %120 = tpu.matmul %117, %119, %cst_46 {dimension_numbers = #tpu.dot_dimension_numbers<[1], [0], [0], [1], [0, 0, 1, 1], [], []>} : vector<8x1024xbf16>, vector<1024x256xbf16>, vector<8x256xf32> -> vector<8x256xf32>
    %121 = arith.addf %80, %120 : vector<8x256xf32>
    %122 = vector.broadcast %14 : vector<1x256xf32> to vector<8x256xf32>
    %123 = arith.addf %121, %122 : vector<8x256xf32>
    %c0_47 = arith.constant 0 : index
    %c0_48 = arith.constant 0 : index
    %c0_49 = arith.constant 0 : index
    %124 = vector.load %arg11[%c0_47, %c0_48, %c0_49] : memref<1x8x256xf32, #tpu.memory_space<vmem>>, vector<1x8x256xf32>
    %125 = vector.shape_cast %124 : vector<1x8x256xf32> to vector<8x256xf32>
    %126 = vector.shape_cast %123 : vector<8x256xf32> to vector<1x8x256xf32>
    tpu.vector_store %arg11[%c0_47, %c0_48, %c0_49], %126 {strides = array<i32>} : memref<1x8x256xf32, #tpu.memory_space<vmem>>, vector<1x8x256xf32>,
    %c1_i32 = arith.constant 1 : i32
    %127 = arith.cmpi eq, %arg1, %c1_i32 : i32
    %128 = arith.extui %127 : i1 to i32
    %c0_i32_50 = arith.constant 0 : i32
    %129 = arith.cmpi ne, %128, %c0_i32_50 : i32
    scf.if %129 {
      %c0_51 = arith.constant 0 : index
      %c0_52 = arith.constant 0 : index
      %130 = vector.load %arg10[%c0_51, %c0_52] : memref<2x256xf32, #tpu.memory_space<vmem>>, vector<1x256xf32>
      %c1 = arith.constant 1 : index
      %c0_53 = arith.constant 0 : index
      %131 = vector.load %arg10[%c1, %c0_53] : memref<2x256xf32, #tpu.memory_space<vmem>>, vector<1x256xf32>
      %cst_54 = arith.constant dense<0.000000e+00> : vector<8xf32>
      %132 = vector.multi_reduction <add>, %123, %cst_54 [1] : vector<8x256xf32> to vector<8xf32>
      %133 = vector.shape_cast %132 : vector<8xf32> to vector<8x1xf32>
      %cst_55 = arith.constant 2.560000e+02 : f32
      %134 = vector.broadcast %cst_55 : f32 to vector<8x1xf32>
      %135 = arith.divf %133, %134 : vector<8x1xf32>
      %136 = vector.broadcast %135 : vector<8x1xf32> to vector<8x256xf32>
      %137 = arith.subf %123, %136 : vector<8x256xf32>
      %138 = arith.mulf %137, %137 : vector<8x256xf32>
      %cst_56 = arith.constant dense<0.000000e+00> : vector<8xf32>
      %139 = vector.multi_reduction <add>, %138, %cst_56 [1] : vector<8x256xf32> to vector<8xf32>
      %140 = vector.shape_cast %139 : vector<8xf32> to vector<8x1xf32>
      %cst_57 = arith.constant 2.560000e+02 : f32
      %141 = vector.broadcast %cst_57 : f32 to vector<8x1xf32>
      %142 = arith.divf %140, %141 : vector<8x1xf32>
      %143 = vector.broadcast %135 : vector<8x1xf32> to vector<8x256xf32>
      %144 = arith.subf %123, %143 : vector<8x256xf32>
      %cst_58 = arith.constant 9.99999997E-7 : f32
      %145 = vector.broadcast %cst_58 : f32 to vector<8x1xf32>
      %146 = arith.addf %142, %145 : vector<8x1xf32>
      %147 = math.rsqrt %146 : vector<8x1xf32>
      %148 = vector.broadcast %147 : vector<8x1xf32> to vector<8x256xf32>
      %149 = arith.mulf %144, %148 : vector<8x256xf32>
      %150 = vector.broadcast %130 : vector<1x256xf32> to vector<8x256xf32>
      %151 = arith.mulf %149, %150 : vector<8x256xf32>
      %152 = vector.broadcast %131 : vector<1x256xf32> to vector<8x256xf32>
      %153 = arith.addf %151, %152 : vector<8x256xf32>
      %c0_59 = arith.constant 0 : index
      %c0_60 = arith.constant 0 : index
      %c0_61 = arith.constant 0 : index
      %154 = vector.load %arg11[%c0_59, %c0_60, %c0_61] : memref<1x8x256xf32, #tpu.memory_space<vmem>>, vector<1x8x256xf32>
      %155 = vector.shape_cast %154 : vector<1x8x256xf32> to vector<8x256xf32>
      %156 = vector.shape_cast %153 : vector<8x256xf32> to vector<1x8x256xf32>
      tpu.vector_store %arg11[%c0_59, %c0_60, %c0_61], %156 {strides = array<i32>} : memref<1x8x256xf32, #tpu.memory_space<vmem>>, vector<1x8x256xf32>,
    } else {
    }
    return
  }
  func.func @transform_0(%arg0: i32, %arg1: i32) -> (i32, i32, i32) {
    %c0_i32 = arith.constant 0 : i32
    %c0_i32_0 = arith.constant 0 : i32
    %c0_i32_1 = arith.constant 0 : i32
    return %arg0, %c0_i32, %c0_i32_0 : i32, i32, i32
  }
  func.func @transform_1(%arg0: i32, %arg1: i32) -> (i32, i32) {
    %c0_i32 = arith.constant 0 : i32
    %c0_i32_0 = arith.constant 0 : i32
    %c0_i32_1 = arith.constant 0 : i32
    return %c0_i32, %c0_i32_0 : i32, i32
  }
  func.func @transform_2(%arg0: i32, %arg1: i32) -> (i32, i32, i32, i32) {
    %c0_i32 = arith.constant 0 : i32
    %c0_i32_0 = arith.constant 0 : i32
    %c0_i32_1 = arith.constant 0 : i32
    %c0_i32_2 = arith.constant 0 : i32
    return %arg1, %c0_i32, %c0_i32_0, %c0_i32_1 : i32, i32, i32, i32
  }
  func.func @transform_3(%arg0: i32, %arg1: i32) -> (i32, i32, i32) {
    %c0_i32 = arith.constant 0 : i32
    %c0_i32_0 = arith.constant 0 : i32
    %c0_i32_1 = arith.constant 0 : i32
    return %arg1, %c0_i32, %c0_i32_0 : i32, i32, i32
  }
  func.func @transform_4(%arg0: i32, %arg1: i32) -> (i32, i32, i32, i32) {
    %c0_i32 = arith.constant 0 : i32
    %c0_i32_0 = arith.constant 0 : i32
    %c0_i32_1 = arith.constant 0 : i32
    %c0_i32_2 = arith.constant 0 : i32
    return %arg1, %c0_i32, %c0_i32_0, %c0_i32_1 : i32, i32, i32, i32
  }
  func.func @transform_5(%arg0: i32, %arg1: i32) -> (i32, i32, i32) {
    %c0_i32 = arith.constant 0 : i32
    %c0_i32_0 = arith.constant 0 : i32
    %c0_i32_1 = arith.constant 0 : i32
    return %arg1, %c0_i32, %c0_i32_0 : i32, i32, i32
  }
  func.func @transform_6(%arg0: i32, %arg1: i32) -> (i32, i32, i32) {
    %c0_i32 = arith.constant 0 : i32
    %c0_i32_0 = arith.constant 0 : i32
    %c0_i32_1 = arith.constant 0 : i32
    return %arg1, %c0_i32, %c0_i32_0 : i32, i32, i32
  }
  func.func @transform_7(%arg0: i32, %arg1: i32) -> (i32, i32, i32) {
    %c0_i32 = arith.constant 0 : i32
    %c0_i32_0 = arith.constant 0 : i32
    %c0_i32_1 = arith.constant 0 : i32
    return %arg1, %c0_i32, %c0_i32_0 : i32, i32, i32
  }
  func.func @transform_8(%arg0: i32, %arg1: i32) -> (i32, i32) {
    %c0_i32 = arith.constant 0 : i32
    %c0_i32_0 = arith.constant 0 : i32
    %c0_i32_1 = arith.constant 0 : i32
    return %c0_i32, %c0_i32_0 : i32, i32
  }
  func.func @transform_9(%arg0: i32, %arg1: i32) -> (i32, i32, i32) {
    %c0_i32 = arith.constant 0 : i32
    %c0_i32_0 = arith.constant 0 : i32
    %c0_i32_1 = arith.constant 0 : i32
    return %arg0, %c0_i32, %c0_i32_0 : i32, i32, i32
  }
}

</mosaic_0001>

<llo_original>
// kernel: blip_base_forward.2
$region0: #{blip_base_forward.2}
  #allocation0 [shape = 'u32[]', space=smem, size = 0x4, offset = 0x4, fixed_abs, tag = 'smem constant byte address 0x4 - core index']
  #allocation1 [shape = 'u32[72,128]{1,0:T(1,128)}', space=vmem, size = 0x9000, scoped, tag = 'internal scratch']
  %s0 = inlined_call_operand.vmem [shape: f32[2,4,768], index: 0, kind: input, shape index: {}]
  %s1 = inlined_call_operand.hbm [shape: bf16[768,256], index: 1, kind: input, shape index: {}]
  %s2 = inlined_call_operand.vmem [shape: f32[8,256], index: 2, kind: input, shape index: {}]
  %s3 = inlined_call_operand.vmem [shape: f32[2,8,256], index: 3, kind: output, shape index: {}]
  %s4 = sld [smem:[#allocation0]]
  $region26: #{blip_base_forward.2} parent=0
    _
  %s6 = ssub.s32 1, %s4
  %s7 = scalar_select 0, %s6, %s4
  $region1: #{blip_base_forward.2} parent=0
    #allocation2 [shape = 'u8[393216]{0}', space=vmem, size = 0x60000, scoped, tag = 'input window, operand 1, single buffered']
    #allocation3 [shape = 's32[1]{0}', space=sflag, size = 0x4, scoped, tag = 'scoped memory for blip_base_forward.2']
    %8 = vsyncpa [#allocation3], 0
    // Predicated region
    $region2: #{blip_base_forward.2} parent=1 // pred_check
      _
    $region3: #{blip_base_forward.2} parent=1 // pred_check_branch
      %10 = sbr.rel (0) target = $region5
    $region4: #{blip_base_forward.2} parent=1 // pred_region
      _
    $region5: #{blip_base_forward.2} parent=1 // pred_fallthru
      _
    // Predicated region
    $region6: #{blip_base_forward.2} parent=1 // pred_check
      _
    $region7: #{blip_base_forward.2} parent=1 // pred_check_branch
      %12 = sbr.rel (0) target = $region9
    $region8: #{blip_base_forward.2} parent=1 // pred_region
      %14 = vsyncadd [#allocation3], 0
      %s15 = sshll.u32 %s1, 4
      %s16 = int_to_ptr.hbm [resolvable:$true] %s15
      %s17 = sshll.u32 [#allocation2], 4
      %s18 = int_to_ptr.vmem [resolvable:$true] %s17
      %23 = dma.hbm_to_vmem [thread:$0]  %s16, 12288, %s18, [#allocation3], 128, 128, 8
    $region9: #{blip_base_forward.2} parent=1 // pred_fallthru
      _
    // Predicated region
    $region10: #{blip_base_forward.2} parent=1 // pred_check
      _
    $region11: #{blip_base_forward.2} parent=1 // pred_check_branch
      %25 = sbr.rel (0) target = $region13
    $region12: #{blip_base_forward.2} parent=1 // pred_region
      _
    $region13: #{blip_base_forward.2} parent=1 // pred_fallthru
      _
    // Predicated region
    $region14: #{blip_base_forward.2} parent=1 // pred_check
      _
    $region15: #{blip_base_forward.2} parent=1 // pred_check_branch
      %27 = sbr.rel (0) target = $region17
    $region16: #{blip_base_forward.2} parent=1 // pred_region
      %29 = dma.done [#allocation3], 12288
    $region17: #{blip_base_forward.2} parent=1 // pred_fallthru
      _
    %v30 = vld [vmem:[%s0] sm:$0xff]
    %v31 = vld [vmem:[%s0 + $0x8] sm:$0xff]
    %v32 = vld [vmem:[%s0 + $0x10] sm:$0xff]
    %v33 = vld [vmem:[%s0 + $0x18] sm:$0xff]
    %v34 = vld [vmem:[%s0 + $0x20] sm:$0xff]
    %v35 = vld [vmem:[%s0 + $0x28] sm:$0xff]
    %42 = vst [vmem:[#allocation1] ss:$2 sm:$0xff] %v30
    %s43 = scalar_lea.vmem [#allocation1], 1
    %44 = vst [vmem:[%s43] ss:$2 sm:$0xff] %v33
    %s45 = scalar_lea.vmem [#allocation1], 16
    %46 = vst [vmem:[%s45] ss:$2 sm:$0xff] %v31
    %s47 = scalar_lea.vmem [#allocation1], 17
    %48 = vst [vmem:[%s47] ss:$2 sm:$0xff] %v34
    %s49 = scalar_lea.vmem [#allocation1], 32
    %50 = vst [vmem:[%s49] ss:$2 sm:$0xff] %v32
    %s51 = scalar_lea.vmem [#allocation1], 33
    %52 = vst [vmem:[%s51] ss:$2 sm:$0xff] %v35
    %v53 = vld.sshfl [vmem:[#allocation1] sm:$0xff pattern:$0x75316420]
    %v54 = vld.sshfl [vmem:[#allocation1 + $0x8] sm:$0xff pattern:$0x75316420]
    %v55 = vld.sshfl [vmem:[#allocation1 + $0x10] sm:$0xff pattern:$0x75316420]
    %v56 = vld.sshfl [vmem:[#allocation1 + $0x18] sm:$0xff pattern:$0x75316420]
    %v57 = vld.sshfl [vmem:[#allocation1 + $0x20] sm:$0xff pattern:$0x75316420]
    %v58 = vld.sshfl [vmem:[#allocation1 + $0x28] sm:$0xff pattern:$0x75316420]
    %v65 = vpack.c.bf16 %v53, %v53
    %v66 = vpack.c.bf16 %v54, %v54
    %v67 = vpack.c.bf16 %v55, %v55
    %v68 = vpack.c.bf16 %v56, %v56
    %v69 = vpack.c.bf16 %v57, %v57
    %v70 = vpack.c.bf16 %v58, %v58
    %v71 = vld [vmem:[#allocation2] sm:$0xff]
    %v72 = vld [vmem:[#allocation2 + $0x8] sm:$0xff]
    %v73 = vld [vmem:[#allocation2 + $0x10] sm:$0xff]
    %v74 = vld [vmem:[#allocation2 + $0x18] sm:$0xff]
    %v75 = vld [vmem:[#allocation2 + $0x20] sm:$0xff]
    %v76 = vld [vmem:[#allocation2 + $0x28] sm:$0xff]
    %v77 = vld [vmem:[#allocation2 + $0x30] sm:$0xff]
    %v78 = vld [vmem:[#allocation2 + $0x38] sm:$0xff]
    %v79 = vld [vmem:[#allocation2 + $0x40] sm:$0xff]
    %v80 = vld [vmem:[#allocation2 + $0x48] sm:$0xff]
    %v81 = vld [vmem:[#allocation2 + $0x50] sm:$0xff]
    %v82 = vld [vmem:[#allocation2 + $0x58] sm:$0xff]
    %v83 = vld [vmem:[#allocation2 + $0x60] sm:$0xff]
    %v84 = vld [vmem:[#allocation2 + $0x68] sm:$0xff]
    %v85 = vld [vmem:[#allocation2 + $0x70] sm:$0xff]
    %v86 = vld [vmem:[#allocation2 + $0x78] sm:$0xff]
    %v87 = vld [vmem:[#allocation2 + $0x80] sm:$0xff]
    %v88 = vld [vmem:[#allocation2 + $0x88] sm:$0xff]
    %v89 = vld [vmem:[#allocation2 + $0x90] sm:$0xff]
    %v90 = vld [vmem:[#allocation2 + $0x98] sm:$0xff]
    %v91 = vld [vmem:[#allocation2 + $0xa0] sm:$0xff]
    %v92 = vld [vmem:[#allocation2 + $0xa8] sm:$0xff]
    %v93 = vld [vmem:[#allocation2 + $0xb0] sm:$0xff]
    %v94 = vld [vmem:[#allocation2 + $0xb8] sm:$0xff]
    %v95 = vld [vmem:[#allocation2 + $0xc0] sm:$0xff]
    %v96 = vld [vmem:[#allocation2 + $0xc8] sm:$0xff]
    %v97 = vld [vmem:[#allocation2 + $0xd0] sm:$0xff]
    %v98 = vld [vmem:[#allocation2 + $0xd8] sm:$0xff]
    %v99 = vld [vmem:[#allocation2 + $0xe0] sm:$0xff]
    %v100 = vld [vmem:[#allocation2 + $0xe8] sm:$0xff]
    %v101 = vld [vmem:[#allocation2 + $0xf0] sm:$0xff]
    %v102 = vld [vmem:[#allocation2 + $0xf8] sm:$0xff]
    %v103 = vld [vmem:[#allocation2 + $0x100] sm:$0xff]
    %v104 = vld [vmem:[#allocation2 + $0x108] sm:$0xff]
    %v105 = vld [vmem:[#allocation2 + $0x110] sm:$0xff]
    %v106 = vld [vmem:[#allocation2 + $0x118] sm:$0xff]
    %v107 = vld [vmem:[#allocation2 + $0x120] sm:$0xff]
    %v108 = vld [vmem:[#allocation2 + $0x128] sm:$0xff]
    %v109 = vld [vmem:[#allocation2 + $0x130] sm:$0xff]
    %v110 = vld [vmem:[#allocation2 + $0x138] sm:$0xff]
    %v111 = vld [vmem:[#allocation2 + $0x140] sm:$0xff]
    %v112 = vld [vmem:[#allocation2 + $0x148] sm:$0xff]
    %v113 = vld [vmem:[#allocation2 + $0x150] sm:$0xff]
    %v114 = vld [vmem:[#allocation2 + $0x158] sm:$0xff]
    %v115 = vld [vmem:[#allocation2 + $0x160] sm:$0xff]
    %v116 = vld [vmem:[#allocation2 + $0x168] sm:$0xff]
    %v117 = vld [vmem:[#allocation2 + $0x170] sm:$0xff]
    %v118 = vld [vmem:[#allocation2 + $0x178] sm:$0xff]
    %v119 = vld [vmem:[#allocation2 + $0x180] sm:$0xff]
    %v120 = vld [vmem:[#allocation2 + $0x188] sm:$0xff]
    %v121 = vld [vmem:[#allocation2 + $0x190] sm:$0xff]
    %v122 = vld [vmem:[#allocation2 + $0x198] sm:$0xff]
    %v123 = vld [vmem:[#allocation2 + $0x1a0] sm:$0xff]
    %v124 = vld [vmem:[#allocation2 + $0x1a8] sm:$0xff]
    %v125 = vld [vmem:[#allocation2 + $0x1b0] sm:$0xff]
    %v126 = vld [vmem:[#allocation2 + $0x1b8] sm:$0xff]
    %v127 = vld [vmem:[#allocation2 + $0x1c0] sm:$0xff]
    %v128 = vld [vmem:[#allocation2 + $0x1c8] sm:$0xff]
    %v129 = vld [vmem:[#allocation2 + $0x1d0] sm:$0xff]
    %v130 = vld [vmem:[#allocation2 + $0x1d8] sm:$0xff]
    %v131 = vld [vmem:[#allocation2 + $0x1e0] sm:$0xff]
    %v132 = vld [vmem:[#allocation2 + $0x1e8] sm:$0xff]
    %v133 = vld [vmem:[#allocation2 + $0x1f0] sm:$0xff]
    %v134 = vld [vmem:[#allocation2 + $0x1f8] sm:$0xff]
    %v135 = vld [vmem:[#allocation2 + $0x200] sm:$0xff]
    %v136 = vld [vmem:[#allocation2 + $0x208] sm:$0xff]
    %v137 = vld [vmem:[#allocation2 + $0x210] sm:$0xff]
    %v138 = vld [vmem:[#allocation2 + $0x218] sm:$0xff]
    %v139 = vld [vmem:[#allocation2 + $0x220] sm:$0xff]
    %v140 = vld [vmem:[#allocation2 + $0x228] sm:$0xff]
    %v141 = vld [vmem:[#allocation2 + $0x230] sm:$0xff]
    %v142 = vld [vmem:[#allocation2 + $0x238] sm:$0xff]
    %v143 = vld [vmem:[#allocation2 + $0x240] sm:$0xff]
    %v144 = vld [vmem:[#allocation2 + $0x248] sm:$0xff]
    %v145 = vld [vmem:[#allocation2 + $0x250] sm:$0xff]
    %v146 = vld [vmem:[#allocation2 + $0x258] sm:$0xff]
    %v147 = vld [vmem:[#allocation2 + $0x260] sm:$0xff]
    %v148 = vld [vmem:[#allocation2 + $0x268] sm:$0xff]
    %v149 = vld [vmem:[#allocation2 + $0x270] sm:$0xff]
    %v150 = vld [vmem:[#allocation2 + $0x278] sm:$0xff]
    %v151 = vld [vmem:[#allocation2 + $0x280] sm:$0xff]
    %v152 = vld [vmem:[#allocation2 + $0x288] sm:$0xff]
    %v153 = vld [vmem:[#allocation2 + $0x290] sm:$0xff]
    %v154 = vld [vmem:[#allocation2 + $0x298] sm:$0xff]
    %v155 = vld [vmem:[#allocation2 + $0x2a0] sm:$0xff]
    %v156 = vld [vmem:[#allocation2 + $0x2a8] sm:$0xff]
    %v157 = vld [vmem:[#allocation2 + $0x2b0] sm:$0xff]
    %v158 = vld [vmem:[#allocation2 + $0x2b8] sm:$0xff]
    %v159 = vld [vmem:[#allocation2 + $0x2c0] sm:$0xff]
    %v160 = vld [vmem:[#allocation2 + $0x2c8] sm:$0xff]
    %v161 = vld [vmem:[#allocation2 + $0x2d0] sm:$0xff]
    %v162 = vld [vmem:[#allocation2 + $0x2d8] sm:$0xff]
    %v163 = vld [vmem:[#allocation2 + $0x2e0] sm:$0xff]
    %v164 = vld [vmem:[#allocation2 + $0x2e8] sm:$0xff]
    %v165 = vld [vmem:[#allocation2 + $0x2f0] sm:$0xff]
    %v166 = vld [vmem:[#allocation2 + $0x2f8] sm:$0xff]
    %v167 = vld [vmem:[%s2] ss:$8 sm:$0x3]
    %s168 = scalar_lea.vmem %s2, 1
    %v169 = vld [vmem:[%s168] ss:$8 sm:$0x3]
    %v170 = vld [vmem:[%s2] sm:$0x7c]
    %v171 = vld [vmem:[%s2 + $0x8] sm:$0x7c]
    %v173 = vperm.slane %v167, 0
    %v174 = vperm.slane %v167, 1
    %v273 = vunpack.c.l.b16 %v71
    %v274 = vunpack.c.h.b16 %v71
    %v275 = vunpack.c.l.b16 %v72
    %v276 = vunpack.c.h.b16 %v72
    %v277 = vunpack.c.l.b16 %v73
    %v278 = vunpack.c.h.b16 %v73
    %v279 = vunpack.c.l.b16 %v74
    %v280 = vunpack.c.h.b16 %v74
    %v281 = vunpack.c.l.b16 %v75
    %v282 = vunpack.c.h.b16 %v75
    %v283 = vunpack.c.l.b16 %v76
    %v284 = vunpack.c.h.b16 %v76
    %v285 = vunpack.c.l.b16 %v77
    %v286 = vunpack.c.h.b16 %v77
    %v287 = vunpack.c.l.b16 %v78
    %v288 = vunpack.c.h.b16 %v78
    %v289 = vunpack.c.l.b16 %v79
    %v290 = vunpack.c.h.b16 %v79
    %v291 = vunpack.c.l.b16 %v80
    %v292 = vunpack.c.h.b16 %v80
    %v293 = vunpack.c.l.b16 %v81
    %v294 = vunpack.c.h.b16 %v81
    %v295 = vunpack.c.l.b16 %v82
    %v296 = vunpack.c.h.b16 %v82
    %v297 = vunpack.c.l.b16 %v83
    %v298 = vunpack.c.h.b16 %v83
    %v299 = vunpack.c.l.b16 %v84
    %v300 = vunpack.c.h.b16 %v84
    %v301 = vunpack.c.l.b16 %v85
    %v302 = vunpack.c.h.b16 %v85
    %v303 = vunpack.c.l.b16 %v86
    %v304 = vunpack.c.h.b16 %v86
    %v305 = vunpack.c.l.b16 %v87
    %v306 = vunpack.c.h.b16 %v87
    %v307 = vunpack.c.l.b16 %v88
    %v308 = vunpack.c.h.b16 %v88
    %v309 = vunpack.c.l.b16 %v89
    %v310 = vunpack.c.h.b16 %v89
    %v311 = vunpack.c.l.b16 %v90
    %v312 = vunpack.c.h.b16 %v90
    %v313 = vunpack.c.l.b16 %v91
    %v314 = vunpack.c.h.b16 %v91
    %v315 = vunpack.c.l.b16 %v92
    %v316 = vunpack.c.h.b16 %v92
    %v317 = vunpack.c.l.b16 %v93
    %v318 = vunpack.c.h.b16 %v93
    %v319 = vunpack.c.l.b16 %v94
    %v320 = vunpack.c.h.b16 %v94
    %v321 = vunpack.c.l.b16 %v95
    %v322 = vunpack.c.h.b16 %v95
    %v323 = vunpack.c.l.b16 %v96
    %v324 = vunpack.c.h.b16 %v96
    %v325 = vunpack.c.l.b16 %v97
    %v326 = vunpack.c.h.b16 %v97
    %v327 = vunpack.c.l.b16 %v98
    %v328 = vunpack.c.h.b16 %v98
    %v329 = vunpack.c.l.b16 %v99
    %v330 = vunpack.c.h.b16 %v99
    %v331 = vunpack.c.l.b16 %v100
    %v332 = vunpack.c.h.b16 %v100
    %v333 = vunpack.c.l.b16 %v101
    %v334 = vunpack.c.h.b16 %v101
    %v335 = vunpack.c.l.b16 %v102
    %v336 = vunpack.c.h.b16 %v102
    %v337 = vunpack.c.l.b16 %v103
    %v338 = vunpack.c.h.b16 %v103
    %v339 = vunpack.c.l.b16 %v104
    %v340 = vunpack.c.h.b16 %v104
    %v341 = vunpack.c.l.b16 %v105
    %v342 = vunpack.c.h.b16 %v105
    %v343 = vunpack.c.l.b16 %v106
    %v344 = vunpack.c.h.b16 %v106
    %v345 = vunpack.c.l.b16 %v107
    %v346 = vunpack.c.h.b16 %v107
    %v347 = vunpack.c.l.b16 %v108
    %v348 = vunpack.c.h.b16 %v108
    %v349 = vunpack.c.l.b16 %v109
    %v350 = vunpack.c.h.b16 %v109
    %v351 = vunpack.c.l.b16 %v110
    %v352 = vunpack.c.h.b16 %v110
    %v353 = vunpack.c.l.b16 %v111
    %v354 = vunpack.c.h.b16 %v111
    %v355 = vunpack.c.l.b16 %v112
    %v356 = vunpack.c.h.b16 %v112
    %v357 = vunpack.c.l.b16 %v113
    %v358 = vunpack.c.h.b16 %v113
    %v359 = vunpack.c.l.b16 %v114
    %v360 = vunpack.c.h.b16 %v114
    %v361 = vunpack.c.l.b16 %v115
    %v362 = vunpack.c.h.b16 %v115
    %v363 = vunpack.c.l.b16 %v116
    %v364 = vunpack.c.h.b16 %v116
    %v365 = vunpack.c.l.b16 %v117
    %v366 = vunpack.c.h.b16 %v117
    %v367 = vunpack.c.l.b16 %v118
    %v368 = vunpack.c.h.b16 %v118
    %v369 = vunpack.c.l.b16 %v119
    %v370 = vunpack.c.h.b16 %v119
    %v371 = vunpack.c.l.b16 %v120
    %v372 = vunpack.c.h.b16 %v120
    %v373 = vunpack.c.l.b16 %v121
    %v374 = vunpack.c.h.b16 %v121
    %v375 = vunpack.c.l.b16 %v122
    %v376 = vunpack.c.h.b16 %v122
    %v377 = vunpack.c.l.b16 %v123
    %v378 = vunpack.c.h.b16 %v123
    %v379 = vunpack.c.l.b16 %v124
    %v380 = vunpack.c.h.b16 %v124
    %v381 = vunpack.c.l.b16 %v125
    %v382 = vunpack.c.h.b16 %v125
    %v383 = vunpack.c.l.b16 %v126
    %v384 = vunpack.c.h.b16 %v126
    %v385 = vunpack.c.l.b16 %v127
    %v386 = vunpack.c.h.b16 %v127
    %v387 = vunpack.c.l.b16 %v128
    %v388 = vunpack.c.h.b16 %v128
    %v389 = vunpack.c.l.b16 %v129
    %v390 = vunpack.c.h.b16 %v129
    %v391 = vunpack.c.l.b16 %v130
    %v392 = vunpack.c.h.b16 %v130
    %v393 = vunpack.c.l.b16 %v131
    %v394 = vunpack.c.h.b16 %v131
    %v395 = vunpack.c.l.b16 %v132
    %v396 = vunpack.c.h.b16 %v132
    %v397 = vunpack.c.l.b16 %v133
    %v398 = vunpack.c.h.b16 %v133
    %v399 = vunpack.c.l.b16 %v134
    %v400 = vunpack.c.h.b16 %v134
    %v401 = vunpack.c.l.b16 %v135
    %v402 = vunpack.c.h.b16 %v135
    %v403 = vunpack.c.l.b16 %v136
    %v404 = vunpack.c.h.b16 %v136
    %v405 = vunpack.c.l.b16 %v137
    %v406 = vunpack.c.h.b16 %v137
    %v407 = vunpack.c.l.b16 %v138
    %v408 = vunpack.c.h.b16 %v138
    %v409 = vunpack.c.l.b16 %v139
    %v410 = vunpack.c.h.b16 %v139
    %v411 = vunpack.c.l.b16 %v140
    %v412 = vunpack.c.h.b16 %v140
    %v413 = vunpack.c.l.b16 %v141
    %v414 = vunpack.c.h.b16 %v141
    %v415 = vunpack.c.l.b16 %v142
    %v416 = vunpack.c.h.b16 %v142
    %v417 = vunpack.c.l.b16 %v143
    %v418 = vunpack.c.h.b16 %v143
    %v419 = vunpack.c.l.b16 %v144
    %v420 = vunpack.c.h.b16 %v144
    %v421 = vunpack.c.l.b16 %v145
    %v422 = vunpack.c.h.b16 %v145
    %v423 = vunpack.c.l.b16 %v146
    %v424 = vunpack.c.h.b16 %v146
    %v425 = vunpack.c.l.b16 %v147
    %v426 = vunpack.c.h.b16 %v147
    %v427 = vunpack.c.l.b16 %v148
    %v428 = vunpack.c.h.b16 %v148
    %v429 = vunpack.c.l.b16 %v149
    %v430 = vunpack.c.h.b16 %v149
    %v431 = vunpack.c.l.b16 %v150
    %v432 = vunpack.c.h.b16 %v150
    %v433 = vunpack.c.l.b16 %v151
    %v434 = vunpack.c.h.b16 %v151
    %v435 = vunpack.c.l.b16 %v152
    %v436 = vunpack.c.h.b16 %v152
    %v437 = vunpack.c.l.b16 %v153
    %v438 = vunpack.c.h.b16 %v153
    %v439 = vunpack.c.l.b16 %v154
    %v440 = vunpack.c.h.b16 %v154
    %v441 = vunpack.c.l.b16 %v155
    %v442 = vunpack.c.h.b16 %v155
    %v443 = vunpack.c.l.b16 %v156
    %v444 = vunpack.c.h.b16 %v156
    %v445 = vunpack.c.l.b16 %v157
    %v446 = vunpack.c.h.b16 %v157
    %v447 = vunpack.c.l.b16 %v158
    %v448 = vunpack.c.h.b16 %v158
    %v449 = vunpack.c.l.b16 %v159
    %v450 = vunpack.c.h.b16 %v159
    %v451 = vunpack.c.l.b16 %v160
    %v452 = vunpack.c.h.b16 %v160
    %v453 = vunpack.c.l.b16 %v161
    %v454 = vunpack.c.h.b16 %v161
    %v455 = vunpack.c.l.b16 %v162
    %v456 = vunpack.c.h.b16 %v162
    %v457 = vunpack.c.l.b16 %v163
    %v458 = vunpack.c.h.b16 %v163
    %v459 = vunpack.c.l.b16 %v164
    %v460 = vunpack.c.h.b16 %v164
    %v461 = vunpack.c.l.b16 %v165
    %v462 = vunpack.c.h.b16 %v165
    %v463 = vunpack.c.l.b16 %v166
    %v464 = vunpack.c.h.b16 %v166
    %v465 = vpack.c.b16 %v275, %v273
    %v466 = vpack.c.b16 %v276, %v274
    %v467 = vpack.c.b16 %v279, %v277
    %v468 = vpack.c.b16 %v280, %v278
    %v469 = vpack.c.b16 %v283, %v281
    %v470 = vpack.c.b16 %v284, %v282
    %v471 = vpack.c.b16 %v287, %v285
    %v472 = vpack.c.b16 %v288, %v286
    %v473 = vpack.c.b16 %v291, %v289
    %v474 = vpack.c.b16 %v292, %v290
    %v475 = vpack.c.b16 %v295, %v293
    %v476 = vpack.c.b16 %v296, %v294
    %v477 = vpack.c.b16 %v299, %v297
    %v478 = vpack.c.b16 %v300, %v298
    %v479 = vpack.c.b16 %v303, %v301
    %v480 = vpack.c.b16 %v304, %v302
    %v481 = vpack.c.b16 %v307, %v305
    %v482 = vpack.c.b16 %v308, %v306
    %v483 = vpack.c.b16 %v311, %v309
    %v484 = vpack.c.b16 %v312, %v310
    %v485 = vpack.c.b16 %v315, %v313
    %v486 = vpack.c.b16 %v316, %v314
    %v487 = vpack.c.b16 %v319, %v317
    %v488 = vpack.c.b16 %v320, %v318
    %v489 = vpack.c.b16 %v323, %v321
    %v490 = vpack.c.b16 %v324, %v322
    %v491 = vpack.c.b16 %v327, %v325
    %v492 = vpack.c.b16 %v328, %v326
    %v493 = vpack.c.b16 %v331, %v329
    %v494 = vpack.c.b16 %v332, %v330
    %v495 = vpack.c.b16 %v335, %v333
    %v496 = vpack.c.b16 %v336, %v334
    %v497 = vpack.c.b16 %v339, %v337
    %v498 = vpack.c.b16 %v340, %v338
    %v499 = vpack.c.b16 %v343, %v341
    %v500 = vpack.c.b16 %v344, %v342
    %v501 = vpack.c.b16 %v347, %v345
    %v502 = vpack.c.b16 %v348, %v346
    %v503 = vpack.c.b16 %v351, %v349
    %v504 = vpack.c.b16 %v352, %v350
    %v505 = vpack.c.b16 %v355, %v353
    %v506 = vpack.c.b16 %v356, %v354
    %v507 = vpack.c.b16 %v359, %v357
    %v508 = vpack.c.b16 %v360, %v358
    %v509 = vpack.c.b16 %v363, %v361
    %v510 = vpack.c.b16 %v364, %v362
    %v511 = vpack.c.b16 %v367, %v365
    %v512 = vpack.c.b16 %v368, %v366
    %v513 = vpack.c.b16 %v371, %v369
    %v514 = vpack.c.b16 %v372, %v370
    %v515 = vpack.c.b16 %v375, %v373
    %v516 = vpack.c.b16 %v376, %v374
    %v517 = vpack.c.b16 %v379, %v377
    %v518 = vpack.c.b16 %v380, %v378
    %v519 = vpack.c.b16 %v383, %v381
    %v520 = vpack.c.b16 %v384, %v382
    %v521 = vpack.c.b16 %v387, %v385
    %v522 = vpack.c.b16 %v388, %v386
    %v523 = vpack.c.b16 %v391, %v389
    %v524 = vpack.c.b16 %v392, %v390
    %v525 = vpack.c.b16 %v395, %v393
    %v526 = vpack.c.b16 %v396, %v394
    %v527 = vpack.c.b16 %v399, %v397
    %v528 = vpack.c.b16 %v400, %v398
    %v529 = vpack.c.b16 %v403, %v401
    %v530 = vpack.c.b16 %v404, %v402
    %v531 = vpack.c.b16 %v407, %v405
    %v532 = vpack.c.b16 %v408, %v406
    %v533 = vpack.c.b16 %v411, %v409
    %v534 = vpack.c.b16 %v412, %v410
    %v535 = vpack.c.b16 %v415, %v413
    %v536 = vpack.c.b16 %v416, %v414
    %v537 = vpack.c.b16 %v419, %v417
    %v538 = vpack.c.b16 %v420, %v418
    %v539 = vpack.c.b16 %v423, %v421
    %v540 = vpack.c.b16 %v424, %v422
    %v541 = vpack.c.b16 %v427, %v425
    %v542 = vpack.c.b16 %v428, %v426
    %v543 = vpack.c.b16 %v431, %v429
    %v544 = vpack.c.b16 %v432, %v430
    %v545 = vpack.c.b16 %v435, %v433
    %v546 = vpack.c.b16 %v436, %v434
    %v547 = vpack.c.b16 %v439, %v437
    %v548 = vpack.c.b16 %v440, %v438
    %v549 = vpack.c.b16 %v443, %v441
    %v550 = vpack.c.b16 %v444, %v442
    %v551 = vpack.c.b16 %v447, %v445
    %v552 = vpack.c.b16 %v448, %v446
    %v553 = vpack.c.b16 %v451, %v449
    %v554 = vpack.c.b16 %v452, %v450
    %v555 = vpack.c.b16 %v455, %v453
    %v556 = vpack.c.b16 %v456, %v454
    %v557 = vpack.c.b16 %v459, %v457
    %v558 = vpack.c.b16 %v460, %v458
    %v559 = vpack.c.b16 %v463, %v461
    %v560 = vpack.c.b16 %v464, %v462
    %657 = vmatpush.bf16.msra.mxu0 %v479
    %658 = vmatpush.bf16.msra.mxu0 %v477
    %659 = vmatpush.bf16.msra.mxu0 %v475
    %660 = vmatpush.bf16.msra.mxu0 %v473
    %661 = vmatpush.bf16.msra.mxu0 %v471
    %662 = vmatpush.bf16.msra.mxu0 %v469
    %663 = vmatpush.bf16.msra.mxu0 %v467
    %664 = vmatpush.bf16.msra.mxu0 %v465
    %665 = vmatmul.bf16.gmra.mxu0 %v65
    %v666 = vpop.f32.mrf.mxu0
    %v667 = vadd.f32 %v173, %v666
    %v668 = vpop.f32.mrf.mxu0
    %669 = vdwg.mxu0
    %670 = vmatpush.bf16.msra.mxu0 %v495
    %671 = vmatpush.bf16.msra.mxu0 %v493
    %672 = vmatpush.bf16.msra.mxu0 %v491
    %673 = vmatpush.bf16.msra.mxu0 %v489
    %674 = vmatpush.bf16.msra.mxu0 %v487
    %675 = vmatpush.bf16.msra.mxu0 %v485
    %676 = vmatpush.bf16.msra.mxu0 %v483
    %677 = vmatpush.bf16.msra.mxu0 %v481
    %678 = vmatmul.bf16.gmra.mxu0 %v66
    %v679 = vpop.f32.mrf.mxu0
    %v680 = vadd.f32 %v667, %v679
    %v681 = vpop.f32.mrf.mxu0
    %682 = vdwg.mxu0
    %683 = vmatpush.bf16.msra.mxu0 %v511
    %684 = vmatpush.bf16.msra.mxu0 %v509
    %685 = vmatpush.bf16.msra.mxu0 %v507
    %686 = vmatpush.bf16.msra.mxu0 %v505
    %687 = vmatpush.bf16.msra.mxu0 %v503
    %688 = vmatpush.bf16.msra.mxu0 %v501
    %689 = vmatpush.bf16.msra.mxu0 %v499
    %690 = vmatpush.bf16.msra.mxu0 %v497
    %691 = vmatmul.bf16.gmra.mxu0 %v67
    %v692 = vpop.f32.mrf.mxu0
    %v693 = vadd.f32 %v680, %v692
    %v694 = vpop.f32.mrf.mxu0
    %695 = vdwg.mxu0
    %696 = vmatpush.bf16.msra.mxu0 %v527
    %697 = vmatpush.bf16.msra.mxu0 %v525
    %698 = vmatpush.bf16.msra.mxu0 %v523
    %699 = vmatpush.bf16.msra.mxu0 %v521
    %700 = vmatpush.bf16.msra.mxu0 %v519
    %701 = vmatpush.bf16.msra.mxu0 %v517
    %702 = vmatpush.bf16.msra.mxu0 %v515
    %703 = vmatpush.bf16.msra.mxu0 %v513
    %704 = vmatmul.bf16.gmra.mxu0 %v68
    %v705 = vpop.f32.mrf.mxu0
    %v706 = vadd.f32 %v693, %v705
    %v707 = vpop.f32.mrf.mxu0
    %708 = vdwg.mxu0
    %709 = vmatpush.bf16.msra.mxu0 %v543
    %710 = vmatpush.bf16.msra.mxu0 %v541
    %711 = vmatpush.bf16.msra.mxu0 %v539
    %712 = vmatpush.bf16.msra.mxu0 %v537
    %713 = vmatpush.bf16.msra.mxu0 %v535
    %714 = vmatpush.bf16.msra.mxu0 %v533
    %715 = vmatpush.bf16.msra.mxu0 %v531
    %716 = vmatpush.bf16.msra.mxu0 %v529
    %717 = vmatmul.bf16.gmra.mxu0 %v69
    %v718 = vpop.f32.mrf.mxu0
    %v719 = vadd.f32 %v706, %v718
    %v720 = vpop.f32.mrf.mxu0
    %721 = vdwg.mxu0
    %722 = vmatpush.bf16.msra.mxu0 %v559
    %723 = vmatpush.bf16.msra.mxu0 %v557
    %724 = vmatpush.bf16.msra.mxu0 %v555
    %725 = vmatpush.bf16.msra.mxu0 %v553
    %726 = vmatpush.bf16.msra.mxu0 %v551
    %727 = vmatpush.bf16.msra.mxu0 %v549
    %728 = vmatpush.bf16.msra.mxu0 %v547
    %729 = vmatpush.bf16.msra.mxu0 %v545
    %730 = vmatmul.bf16.gmra.mxu0 %v70
    %v731 = vpop.f32.mrf.mxu0
    %v732 = vadd.f32 %v719, %v731
    %v733 = vpop.f32.mrf.mxu0
    %734 = vdwg.mxu0
    %735 = vmatpush.bf16.msra.mxu0 %v480
    %736 = vmatpush.bf16.msra.mxu0 %v478
    %737 = vmatpush.bf16.msra.mxu0 %v476
    %738 = vmatpush.bf16.msra.mxu0 %v474
    %739 = vmatpush.bf16.msra.mxu0 %v472
    %740 = vmatpush.bf16.msra.mxu0 %v470
    %741 = vmatpush.bf16.msra.mxu0 %v468
    %742 = vmatpush.bf16.msra.mxu0 %v466
    %743 = vmatmul.bf16.gmra.mxu0 %v65
    %v744 = vpop.f32.mrf.mxu0
    %v745 = vadd.f32 %v174, %v744
    %v746 = vpop.f32.mrf.mxu0
    %747 = vdwg.mxu0
    %748 = vmatpush.bf16.msra.mxu0 %v496
    %749 = vmatpush.bf16.msra.mxu0 %v494
    %750 = vmatpush.bf16.msra.mxu0 %v492
    %751 = vmatpush.bf16.msra.mxu0 %v490
    %752 = vmatpush.bf16.msra.mxu0 %v488
    %753 = vmatpush.bf16.msra.mxu0 %v486
    %754 = vmatpush.bf16.msra.mxu0 %v484
    %755 = vmatpush.bf16.msra.mxu0 %v482
    %756 = vmatmul.bf16.gmra.mxu0 %v66
    %v757 = vpop.f32.mrf.mxu0
    %v758 = vadd.f32 %v745, %v757
    %v759 = vpop.f32.mrf.mxu0
    %760 = vdwg.mxu0
    %761 = vmatpush.bf16.msra.mxu0 %v512
    %762 = vmatpush.bf16.msra.mxu0 %v510
    %763 = vmatpush.bf16.msra.mxu0 %v508
    %764 = vmatpush.bf16.msra.mxu0 %v506
    %765 = vmatpush.bf16.msra.mxu0 %v504
    %766 = vmatpush.bf16.msra.mxu0 %v502
    %767 = vmatpush.bf16.msra.mxu0 %v500
    %768 = vmatpush.bf16.msra.mxu0 %v498
    %769 = vmatmul.bf16.gmra.mxu0 %v67
    %v770 = vpop.f32.mrf.mxu0
    %v771 = vadd.f32 %v758, %v770
    %v772 = vpop.f32.mrf.mxu0
    %773 = vdwg.mxu0
    %774 = vmatpush.bf16.msra.mxu0 %v528
    %775 = vmatpush.bf16.msra.mxu0 %v526
    %776 = vmatpush.bf16.msra.mxu0 %v524
    %777 = vmatpush.bf16.msra.mxu0 %v522
    %778 = vmatpush.bf16.msra.mxu0 %v520
    %779 = vmatpush.bf16.msra.mxu0 %v518
    %780 = vmatpush.bf16.msra.mxu0 %v516
    %781 = vmatpush.bf16.msra.mxu0 %v514
    %782 = vmatmul.bf16.gmra.mxu0 %v68
    %v783 = vpop.f32.mrf.mxu0
    %v784 = vadd.f32 %v771, %v783
    %v785 = vpop.f32.mrf.mxu0
    %786 = vdwg.mxu0
    %787 = vmatpush.bf16.msra.mxu0 %v544
    %788 = vmatpush.bf16.msra.mxu0 %v542
    %789 = vmatpush.bf16.msra.mxu0 %v540
    %790 = vmatpush.bf16.msra.mxu0 %v538
    %791 = vmatpush.bf16.msra.mxu0 %v536
    %792 = vmatpush.bf16.msra.mxu0 %v534
    %793 = vmatpush.bf16.msra.mxu0 %v532
    %794 = vmatpush.bf16.msra.mxu0 %v530
    %795 = vmatmul.bf16.gmra.mxu0 %v69
    %v796 = vpop.f32.mrf.mxu0
    %v797 = vadd.f32 %v784, %v796
    %v798 = vpop.f32.mrf.mxu0
    %799 = vdwg.mxu0
    %800 = vmatpush.bf16.msra.mxu0 %v560
    %801 = vmatpush.bf16.msra.mxu0 %v558
    %802 = vmatpush.bf16.msra.mxu0 %v556
    %803 = vmatpush.bf16.msra.mxu0 %v554
    %804 = vmatpush.bf16.msra.mxu0 %v552
    %805 = vmatpush.bf16.msra.mxu0 %v550
    %806 = vmatpush.bf16.msra.mxu0 %v548
    %807 = vmatpush.bf16.msra.mxu0 %v546
    %808 = vmatmul.bf16.gmra.mxu0 %v70
    %v809 = vpop.f32.mrf.mxu0
    %v810 = vadd.f32 %v797, %v809
    %v811 = vpop.f32.mrf.mxu0
    %812 = vdwg.mxu0
    %v815 = vrot.slane %v810, 4
    %vm816 = vcmask 1043456
    %v817 = vsel %vm816, %v732, %v815
    %v818 = vsel %vm816, %v815, %v732
    %v819 = vrot.slane %v818, 4
    %v824 = vrot.slane %v171, 4
    %v825 = vsel %vm816, %v170, %v824
    %v826 = vsel %vm816, %v824, %v170
    %v827 = vrot.slane %v826, 4
    %vm828 = vcmask 1040384
    %vm829 = vcmask 1044484
    %vm830 = vmor %vm828, %vm829
    %v831 = vrot.slane %v825, 7
    %v832 = vrot.slane %v831, 4
    %v833 = vrot.slane %v827, 7
    %v834 = vsel %vm830, %v832, %v833
    %v836 = vadd.f32 %v817, %v834
    %v837 = vadd.f32 %v819, %v834
    %838 = vst [vmem:[#allocation1] sm:$0xff] %v170
    %839 = vst [vmem:[#allocation1 + $0x9] sm:$0xff] %v171
    %s840 = scalar_lea.vmem [#allocation1], 2
    %v841 = vld [vmem:[%s840] ss:$9 sm:$0xff]
    %v843 = vadd.f32 %v169, %v841
    %v845 = vperm.slane %v843, 0
    %v846 = vperm.slane %v843, 1
    %851 = vst [vmem:[#allocation1] ss:$2 sm:$0xff] %v836
    %v852 = vld.sshfl [vmem:[#allocation1] sm:$0xff pattern:$0x75316420]
    %v853 = vld.sshfl [vmem:[#allocation1 + $0x8] sm:$0xff pattern:$0x75316420]
    %s854 = scalar_lea.vmem [#allocation1], 16
    %855 = vst [vmem:[%s854] ss:$2 sm:$0xff] %v837
    %v856 = vld.sshfl [vmem:[#allocation1 + $0x10] sm:$0xff pattern:$0x75316420]
    %v857 = vld.sshfl [vmem:[#allocation1 + $0x18] sm:$0xff pattern:$0x75316420]
    %v858 = vrot.slane %v852, 7
    %v859 = vrot.slane %v853, 7
    %v860 = vrot.slane %v856, 7
    %v861 = vrot.slane %v857, 7
    %v866 = vsel %vm828, %v845, %v858
    %v867 = vsel %vm828, %v846, %v859
    %v868 = vsel %vm828, %v845, %v860
    %v869 = vsel %vm828, %v846, %v861
    %vm870 = vcmask 1044480
    %v871 = vsel %vm870, %v866, 0.0
    %v872 = vsel %vm870, %v867, 0.0
    %v873 = vsel %vm870, %v868, 0.0
    %v874 = vsel %vm870, %v869, 0.0
    %875 = vst [vmem:[%s3] sm:$0xff] %v871
    %876 = vst [vmem:[%s3 + $0x8] sm:$0xff] %v872
    %877 = vst [vmem:[%s3 + $0x10] sm:$0xff] %v873
    %878 = vst [vmem:[%s3 + $0x18] sm:$0xff] %v874
    // Predicated region
    $region18: #{blip_base_forward.2} parent=1 // pred_check
      _
    $region19: #{blip_base_forward.2} parent=1 // pred_check_branch
      %880 = sbr.rel (0) target = $region21
    $region20: #{blip_base_forward.2} parent=1 // pred_region
      _
    $region21: #{blip_base_forward.2} parent=1 // pred_fallthru
      _
    // Predicated region
    $region22: #{blip_base_forward.2} parent=1 // pred_check
      _
    $region23: #{blip_base_forward.2} parent=1 // pred_check_branch
      %882 = sbr.rel (0) target = $region25
    $region24: #{blip_base_forward.2} parent=1 // pred_region
      _
    $region25: #{blip_base_forward.2} parent=1 // pred_fallthru
      _
    %883 = vsyncpa [#allocation3], 1

// kernel: blip_base_forward.3
$region0: #{blip_base_forward.3}
  #allocation0 [shape = 'u32[]', space=smem, size = 0x4, offset = 0x4, fixed_abs, tag = 'smem constant byte address 0x4 - core index']
  #allocation1 [shape = 'u32[72,128]{1,0:T(1,128)}', space=vmem, size = 0x9000, scoped, tag = 'internal scratch']
  %s0 = inlined_call_operand.vmem [shape: f32[2,8,256], index: 0, kind: input, shape index: {}]
  %s1 = inlined_call_operand.vmem [shape: f32[1,8], index: 1, kind: input, shape index: {}]
  %s2 = inlined_call_operand.vmem [shape: bf16[2,6,256,128], index: 2, kind: input, shape index: {}]
  %s3 = inlined_call_operand.vmem [shape: f32[2,6,128], index: 3, kind: input, shape index: {}]
  %s4 = inlined_call_operand.hbm [shape: bf16[2,2,128,256], index: 4, kind: input, shape index: {}]
  %s5 = inlined_call_operand.hbm [shape: bf16[2,256,1024], index: 5, kind: input, shape index: {}]
  %s6 = inlined_call_operand.hbm [shape: bf16[2,1024,256], index: 6, kind: input, shape index: {}]
  %s7 = inlined_call_operand.vmem [shape: f32[2,8,1024], index: 7, kind: input, shape index: {}]
  %s8 = inlined_call_operand.vmem [shape: f32[2,256], index: 8, kind: input, shape index: {}]
  %s9 = inlined_call_operand.vmem [shape: f32[2,8,256], index: 9, kind: output, shape index: {}]
  %s10 = sld [smem:[#allocation0]]
  $region89: #{blip_base_forward.3} parent=0
    _
  %s12 = ssub.s32 1, %s10
  %s13 = scalar_select 0, %s12, %s10
  $region1: #{blip_base_forward.3} parent=0
    #allocation2 [shape = 'u8[262144]{0}', space=vmem, size = 0x40000, scoped, tag = 'input window, operand 4']
    #allocation3 [shape = 's32[2]{0}', space=sflag, size = 0x8, scoped, tag = 'scoped memory for blip_base_forward.3']
    #allocation4 [shape = 'u8[1048576]{0}', space=vmem, size = 0x100000, scoped, tag = 'input window, operand 5']
    #allocation5 [shape = 's32[2]{0}', space=sflag, size = 0x8, scoped, tag = 'scoped memory for blip_base_forward.3']
    #allocation6 [shape = 'u8[1048576]{0}', space=vmem, size = 0x100000, scoped, tag = 'input window, operand 6']
    %14 = vsyncpa [#allocation3], 0
    %s15 = scalar_lea.sflag [#allocation3], 1
    %16 = vsyncpa %s15, 0
    %17 = vsyncpa [#allocation5], 0
    %s18 = scalar_lea.sflag [#allocation5], 1
    %19 = vsyncpa %s18, 0
    loop: start=0, step=1, limit=6
    $region2: #{blip_base_forward.3} parent=1 // loop_pre_header
      _
    $region3: #{blip_base_forward.3} parent=1 // loop_header
      %s21 = sphi 0, %s25
      %p22 = scmp.ge.s32.totalorder %s21, 6
      %s28 = sphi 0, %s40
      %s29 = sphi 0, %s36
      %s30 = sphi 0, %s28
      %s31 = sphi 0, %s29
      %s32 = sphi 0, %s30
      %s33 = sphi 0, %s31
      %s43 = sphi 0, %s45
      %s46 = sphi 0, %s43
      %s47 = sphi 0, %s46
      %s63 = sphi 0, %s47
      %s67 = sphi 0, %s67
      %s69 = sphi 0, %s67
      %s70 = sphi 0, %s69
      %s84 = sphi 0, %s70
      %s90 = sphi 0, %s92
      %s93 = sphi 0, %s90
      %s94 = sphi 0, %s93
      %s110 = sphi 0, %s94
      %s116 = sphi 0, %s118
      %s119 = sphi 0, %s116
      %s120 = sphi 0, %s119
      %s136 = sphi 0, %s120
      %s142 = sphi 0, %s144
      %s145 = sphi 0, %s142
      %s146 = sphi 0, %s145
      %s162 = sphi 0, %s146
      %s168 = sphi 0, %s170
      %s171 = sphi 0, %s168
      %s172 = sphi 0, %s171
      %s188 = sphi 0, %s172
      %s194 = sphi 0, %s196
      %s197 = sphi 0, %s194
      %s198 = sphi 0, %s197
      %s214 = sphi 0, %s198
      %s220 = sphi 0, %s222
      %s223 = sphi 0, %s220
      %s224 = sphi 0, %s223
      %s240 = sphi 0, %s224
      %s244 = sphi 0, %s244
      %s246 = sphi 0, %s244
      %s247 = sphi 0, %s246
      %s261 = sphi 0, %s247
      %s267 = sphi 0, %s269
      %s270 = sphi 0, %s267
      %s271 = sphi 0, %s270
      %s287 = sphi 0, %s271
    $region4: #{blip_base_forward.3} parent=1 // loop_header_branch
      %24 = sbr.rel (%p22) target = $region8
    $region5: #{blip_base_forward.3} parent=1 // loop_body
      %s26 = ssub.s32 %s21, 1
      %s27 = ssub.s32 %s21, 2
      %s34 = sadd.s32 1, %s29
      %p35 = scmp.ge.s32.totalorder %s34, 2
      %s36 = scalar_select %p35, 0, %s34
      %s37 = sadd.s32 1, %s28
      %s38 = scalar_select %p35, %s37, %s28
      %p39 = scmp.ge.s32.totalorder %s38, 2
      %s40 = scalar_select %p39, 0, %s38
      %s41 = ssub.s32 %s28, %s40
      %p42 = scmp.eq.s32.totalorder %s41, 0
      %s44 = sadd.s32 %s43, 1
      %s45 = scalar_select %p42, %s43, %s44
      %p48 = pneg %p42
      %p49 = scmp.eq.s32.totalorder %s21, 3
      %p50 = por %p48, %p49
      %p51 = scmp.ne.s32.totalorder %s43, %s46
      %p52 = scmp.eq.s32.totalorder %s21, 0
      %p53 = por %p51, %p52
      %p54 = scmp.ne.s32.totalorder %s43, %s46
      %p55 = scmp.eq.s32.totalorder %s26, 3
      %p56 = por %p54, %p55
      %p57 = scmp.ne.s32.totalorder %s46, %s47
      %p58 = scmp.eq.s32.totalorder %s26, 0
      %p59 = por %p57, %p58
      %p60 = scmp.ne.s32.totalorder %s46, %s47
      %p61 = scmp.eq.s32.totalorder %s27, 3
      %p62 = por %p60, %p61
      %p64 = scmp.ne.s32.totalorder %s47, %s63
      %p65 = scmp.eq.s32.totalorder %s27, 0
      %p66 = por %p64, %p65
      %s68 = sadd.s32 %s67, 1
      %p71 = scmp.eq.s32.totalorder %s21, 3
      %p72 = scmp.ne.s32.totalorder %s67, %s69
      %p73 = scmp.eq.s32.totalorder %s21, 0
      %p74 = por %p72, %p73
      %p75 = scmp.ne.s32.totalorder %s67, %s69
      %p76 = scmp.eq.s32.totalorder %s26, 3
      %p77 = por %p75, %p76
      %p78 = scmp.ne.s32.totalorder %s69, %s70
      %p79 = scmp.eq.s32.totalorder %s26, 0
      %p80 = por %p78, %p79
      %p81 = scmp.ne.s32.totalorder %s69, %s70
      %p82 = scmp.eq.s32.totalorder %s27, 3
      %p83 = por %p81, %p82
      %p85 = scmp.ne.s32.totalorder %s70, %s84
      %p86 = scmp.eq.s32.totalorder %s27, 0
      %p87 = por %p85, %p86
      %s88 = ssub.s32 %s29, %s36
      %p89 = scmp.eq.s32.totalorder %s88, 0
      %s91 = sadd.s32 %s90, 1
      %s92 = scalar_select %p89, %s90, %s91
      %p95 = pneg %p89
      %p96 = scmp.eq.s32.totalorder %s21, 3
      %p97 = por %p95, %p96
      %p98 = scmp.ne.s32.totalorder %s90, %s93
      %p99 = scmp.eq.s32.totalorder %s21, 0
      %p100 = por %p98, %p99
      %p101 = scmp.ne.s32.totalorder %s90, %s93
      %p102 = scmp.eq.s32.totalorder %s26, 3
      %p103 = por %p101, %p102
      %p104 = scmp.ne.s32.totalorder %s93, %s94
      %p105 = scmp.eq.s32.totalorder %s26, 0
      %p106 = por %p104, %p105
      %p107 = scmp.ne.s32.totalorder %s93, %s94
      %p108 = scmp.eq.s32.totalorder %s27, 3
      %p109 = por %p107, %p108
      %p111 = scmp.ne.s32.totalorder %s94, %s110
      %p112 = scmp.eq.s32.totalorder %s27, 0
      %p113 = por %p111, %p112
      %s114 = ssub.s32 %s29, %s36
      %p115 = scmp.eq.s32.totalorder %s114, 0
      %s117 = sadd.s32 %s116, 1
      %s118 = scalar_select %p115, %s116, %s117
      %p121 = pneg %p115
      %p122 = scmp.eq.s32.totalorder %s21, 3
      %p123 = por %p121, %p122
      %p124 = scmp.ne.s32.totalorder %s116, %s119
      %p125 = scmp.eq.s32.totalorder %s21, 0
      %p126 = por %p124, %p125
      %p127 = scmp.ne.s32.totalorder %s116, %s119
      %p128 = scmp.eq.s32.totalorder %s26, 3
      %p129 = por %p127, %p128
      %p130 = scmp.ne.s32.totalorder %s119, %s120
      %p131 = scmp.eq.s32.totalorder %s26, 0
      %p132 = por %p130, %p131
      %p133 = scmp.ne.s32.totalorder %s119, %s120
      %p134 = scmp.eq.s32.totalorder %s27, 3
      %p135 = por %p133, %p134
      %p137 = scmp.ne.s32.totalorder %s120, %s136
      %p138 = scmp.eq.s32.totalorder %s27, 0
      %p139 = por %p137, %p138
      %s140 = ssub.s32 %s29, %s36
      %p141 = scmp.eq.s32.totalorder %s140, 0
      %s143 = sadd.s32 %s142, 1
      %s144 = scalar_select %p141, %s142, %s143
      %p147 = pneg %p141
      %p148 = scmp.eq.s32.totalorder %s21, 3
      %p149 = por %p147, %p148
      %p150 = scmp.ne.s32.totalorder %s142, %s145
      %p151 = scmp.eq.s32.totalorder %s21, 0
      %p152 = por %p150, %p151
      %p153 = scmp.ne.s32.totalorder %s142, %s145
      %p154 = scmp.eq.s32.totalorder %s26, 3
      %p155 = por %p153, %p154
      %p156 = scmp.ne.s32.totalorder %s145, %s146
      %p157 = scmp.eq.s32.totalorder %s26, 0
      %p158 = por %p156, %p157
      %p159 = scmp.ne.s32.totalorder %s145, %s146
      %p160 = scmp.eq.s32.totalorder %s27, 3
      %p161 = por %p159, %p160
      %p163 = scmp.ne.s32.totalorder %s146, %s162
      %p164 = scmp.eq.s32.totalorder %s27, 0
      %p165 = por %p163, %p164
      %s166 = ssub.s32 %s29, %s36
      %p167 = scmp.eq.s32.totalorder %s166, 0
      %s169 = sadd.s32 %s168, 1
      %s170 = scalar_select %p167, %s168, %s169
      %p173 = pneg %p167
      %p174 = scmp.eq.s32.totalorder %s21, 3
      %p175 = por %p173, %p174
      %p176 = scmp.ne.s32.totalorder %s168, %s171
      %p177 = scmp.eq.s32.totalorder %s21, 0
      %p178 = por %p176, %p177
      %p179 = scmp.ne.s32.totalorder %s168, %s171
      %p180 = scmp.eq.s32.totalorder %s26, 3
      %p181 = por %p179, %p180
      %p182 = scmp.ne.s32.totalorder %s171, %s172
      %p183 = scmp.eq.s32.totalorder %s26, 0
      %p184 = por %p182, %p183
      %p185 = scmp.ne.s32.totalorder %s171, %s172
      %p186 = scmp.eq.s32.totalorder %s27, 3
      %p187 = por %p185, %p186
      %p189 = scmp.ne.s32.totalorder %s172, %s188
      %p190 = scmp.eq.s32.totalorder %s27, 0
      %p191 = por %p189, %p190
      %s192 = ssub.s32 %s29, %s36
      %p193 = scmp.eq.s32.totalorder %s192, 0
      %s195 = sadd.s32 %s194, 1
      %s196 = scalar_select %p193, %s194, %s195
      %p199 = pneg %p193
      %p200 = scmp.eq.s32.totalorder %s21, 3
      %p201 = por %p199, %p200
      %p202 = scmp.ne.s32.totalorder %s194, %s197
      %p203 = scmp.eq.s32.totalorder %s21, 0
      %p204 = por %p202, %p203
      %p205 = scmp.ne.s32.totalorder %s194, %s197
      %p206 = scmp.eq.s32.totalorder %s26, 3
      %p207 = por %p205, %p206
      %p208 = scmp.ne.s32.totalorder %s197, %s198
      %p209 = scmp.eq.s32.totalorder %s26, 0
      %p210 = por %p208, %p209
      %p211 = scmp.ne.s32.totalorder %s197, %s198
      %p212 = scmp.eq.s32.totalorder %s27, 3
      %p213 = por %p211, %p212
      %p215 = scmp.ne.s32.totalorder %s198, %s214
      %p216 = scmp.eq.s32.totalorder %s27, 0
      %p217 = por %p215, %p216
      %s218 = ssub.s32 %s29, %s36
      %p219 = scmp.eq.s32.totalorder %s218, 0
      %s221 = sadd.s32 %s220, 1
      %s222 = scalar_select %p219, %s220, %s221
      %p225 = pneg %p219
      %p226 = scmp.eq.s32.totalorder %s21, 3
      %p227 = por %p225, %p226
      %p228 = scmp.ne.s32.totalorder %s220, %s223
      %p229 = scmp.eq.s32.totalorder %s21, 0
      %p230 = por %p228, %p229
      %p231 = scmp.ne.s32.totalorder %s220, %s223
      %p232 = scmp.eq.s32.totalorder %s26, 3
      %p233 = por %p231, %p232
      %p234 = scmp.ne.s32.totalorder %s223, %s224
      %p235 = scmp.eq.s32.totalorder %s26, 0
      %p236 = por %p234, %p235
      %p237 = scmp.ne.s32.totalorder %s223, %s224
      %p238 = scmp.eq.s32.totalorder %s27, 3
      %p239 = por %p237, %p238
      %p241 = scmp.ne.s32.totalorder %s224, %s240
      %p242 = scmp.eq.s32.totalorder %s27, 0
      %p243 = por %p241, %p242
      %s245 = sadd.s32 %s244, 1
      %p248 = scmp.eq.s32.totalorder %s21, 3
      %p249 = scmp.ne.s32.totalorder %s244, %s246
      %p250 = scmp.eq.s32.totalorder %s21, 0
      %p251 = por %p249, %p250
      %p252 = scmp.ne.s32.totalorder %s244, %s246
      %p253 = scmp.eq.s32.totalorder %s26, 3
      %p254 = por %p252, %p253
      %p255 = scmp.ne.s32.totalorder %s246, %s247
      %p256 = scmp.eq.s32.totalorder %s26, 0
      %p257 = por %p255, %p256
      %p258 = scmp.ne.s32.totalorder %s246, %s247
      %p259 = scmp.eq.s32.totalorder %s27, 3
      %p260 = por %p258, %p259
      %p262 = scmp.ne.s32.totalorder %s247, %s261
      %p263 = scmp.eq.s32.totalorder %s27, 0
      %p264 = por %p262, %p263
      %s265 = ssub.s32 %s28, %s40
      %p266 = scmp.eq.s32.totalorder %s265, 0
      %s268 = sadd.s32 %s267, 1
      %s269 = scalar_select %p266, %s267, %s268
      %p272 = pneg %p266
      %p273 = scmp.eq.s32.totalorder %s21, 3
      %p274 = por %p272, %p273
      %p275 = scmp.ne.s32.totalorder %s267, %s270
      %p276 = scmp.eq.s32.totalorder %s21, 0
      %p277 = por %p275, %p276
      %p278 = scmp.ne.s32.totalorder %s267, %s270
      %p279 = scmp.eq.s32.totalorder %s26, 3
      %p280 = por %p278, %p279
      %p281 = scmp.ne.s32.totalorder %s270, %s271
      %p282 = scmp.eq.s32.totalorder %s26, 0
      %p283 = por %p281, %p282
      %p284 = scmp.ne.s32.totalorder %s270, %s271
      %p285 = scmp.eq.s32.totalorder %s27, 3
      %p286 = por %p284, %p285
      %p288 = scmp.ne.s32.totalorder %s271, %s287
      %p289 = scmp.eq.s32.totalorder %s27, 0
      %p290 = por %p288, %p289
      %p291 = scmp.le.s32.totalorder 1, %s21
      %p292 = scmp.lt.s32.totalorder %s21, 5
      %p293 = pnand %p291, %p292
      %p294 = pneg %p293
      // Predicated region
      $region9: #{blip_base_forward.3} parent=5 // pred_check
        _
      $region10: #{blip_base_forward.3} parent=5 // pred_check_branch
        %296 = sbr.rel (%p293) target = $region12
      $region11: #{blip_base_forward.3} parent=5 // pred_region
        %s297 = ssub.s32 %s21, 1
        // Predicated region
        $region13: #{blip_base_forward.3} parent=11 // pred_check
          %p298 = pneg %p80
        $region14: #{blip_base_forward.3} parent=11 // pred_check_branch
          %300 = sbr.rel (%p298) target = $region16
        $region15: #{blip_base_forward.3} parent=11 // pred_region
          _
        $region16: #{blip_base_forward.3} parent=11 // pred_fallthru
          _
        // Predicated region
        $region17: #{blip_base_forward.3} parent=11 // pred_check
          %p301 = pneg %p257
        $region18: #{blip_base_forward.3} parent=11 // pred_check_branch
          %303 = sbr.rel (%p301) target = $region20
        $region19: #{blip_base_forward.3} parent=11 // pred_region
          _
        $region20: #{blip_base_forward.3} parent=11 // pred_fallthru
          _
      $region12: #{blip_base_forward.3} parent=5 // pred_fallthru
        _
      %p304 = scmp.lt.s32.totalorder %s21, 4
      // Predicated region
      $region21: #{blip_base_forward.3} parent=5 // pred_check
        %p305 = pneg %p304
      $region22: #{blip_base_forward.3} parent=5 // pred_check_branch
        %307 = sbr.rel (%p305) target = $region24
      $region23: #{blip_base_forward.3} parent=5 // pred_region
        // Predicated region
        $region25: #{blip_base_forward.3} parent=23 // pred_check
          %p308 = pneg %p53
        $region26: #{blip_base_forward.3} parent=23 // pred_check_branch
          %310 = sbr.rel (%p308) target = $region28
        $region27: #{blip_base_forward.3} parent=23 // pred_region
          %p311 = scmp.lt.s32.totalorder %s28, 1
          %s312 = scalar_select %p311, %s28, 1
          %s313 = smul.addr %s312, 2
          %s314 = smul.addr %s313, 8
          %s315 = scalar_lea.vmem %s0, %s314
        $region28: #{blip_base_forward.3} parent=23 // pred_fallthru
          _
        // Predicated region
        $region29: #{blip_base_forward.3} parent=23 // pred_check
          %p316 = pneg %p100
        $region30: #{blip_base_forward.3} parent=23 // pred_check_branch
          %318 = sbr.rel (%p316) target = $region32
        $region31: #{blip_base_forward.3} parent=23 // pred_region
          %p319 = scmp.lt.s32.totalorder %s29, 1
          %s320 = scalar_select %p319, %s29, 1
          %s321 = smul.addr %s320, 192
          %s322 = smul.addr %s321, 4
          %s323 = scalar_lea.vmem %s2, %s322
        $region32: #{blip_base_forward.3} parent=23 // pred_fallthru
          _
        // Predicated region
        $region33: #{blip_base_forward.3} parent=23 // pred_check
          %p324 = pneg %p126
        $region34: #{blip_base_forward.3} parent=23 // pred_check_branch
          %326 = sbr.rel (%p324) target = $region36
        $region35: #{blip_base_forward.3} parent=23 // pred_region
          %p327 = scmp.lt.s32.totalorder %s29, 1
          %s328 = scalar_select %p327, %s29, 1
          %s329 = smul.addr %s328, 8
          %s330 = scalar_lea.vmem %s3, %s329
        $region36: #{blip_base_forward.3} parent=23 // pred_fallthru
          _
        // Predicated region
        $region37: #{blip_base_forward.3} parent=23 // pred_check
          %p331 = pneg %p152
        $region38: #{blip_base_forward.3} parent=23 // pred_check_branch
          %333 = sbr.rel (%p331) target = $region40
        $region39: #{blip_base_forward.3} parent=23 // pred_region
          %s334 = sand.u32 %s142, 1
          %s335 = scalar_lea.sflag [#allocation3], %s334
          %s336 = sand.u32 %s142, 1
          %s337 = smul.addr %s336, 256
          %s338 = scalar_lea.vmem [#allocation2], %s337
          %340 = vsyncadd %s335, 0
          %s341 = smul.addr %s29, 64
          %s342 = smul.addr %s341, 4
          %s343 = scalar_lea.hbm %s4, %s342
          %s344 = sshll.u32 %s343, 4
          %s345 = int_to_ptr.hbm [resolvable:$true] %s344
          %s346 = sshll.u32 %s338, 4
          %s347 = int_to_ptr.vmem [resolvable:$true] %s346
          %352 = dma.hbm_to_vmem [thread:$0]  %s345, 4096, %s347, %s335, 128, 128, 8
        $region40: #{blip_base_forward.3} parent=23 // pred_fallthru
          _
        // Predicated region
        $region41: #{blip_base_forward.3} parent=23 // pred_check
          %p353 = pneg %p178
        $region42: #{blip_base_forward.3} parent=23 // pred_check_branch
          %355 = sbr.rel (%p353) target = $region44
        $region43: #{blip_base_forward.3} parent=23 // pred_region
          %s356 = sand.u32 %s21, 1
          %s357 = scalar_lea.sflag [#allocation5], %s356
          %s358 = sand.u32 %s168, 1
          %s359 = smul.addr %s358, 1024
          %s360 = scalar_lea.vmem [#allocation4], %s359
          %362 = vsyncadd %s357, 0
          %s363 = smul.addr %s29, 256
          %s364 = smul.addr %s363, 4
          %s365 = scalar_lea.hbm %s5, %s364
          %s366 = sshll.u32 %s365, 4
          %s367 = int_to_ptr.hbm [resolvable:$true] %s366
          %s368 = sshll.u32 %s360, 4
          %s369 = int_to_ptr.vmem [resolvable:$true] %s368
          %374 = dma.hbm_to_vmem [thread:$0]  %s367, 16384, %s369, %s357, 512, 512, 32
        $region44: #{blip_base_forward.3} parent=23 // pred_fallthru
          _
        // Predicated region
        $region45: #{blip_base_forward.3} parent=23 // pred_check
          %p375 = pneg %p204
        $region46: #{blip_base_forward.3} parent=23 // pred_check_branch
          %377 = sbr.rel (%p375) target = $region48
        $region47: #{blip_base_forward.3} parent=23 // pred_region
          %s378 = sand.u32 %s21, 1
          %s379 = scalar_lea.sflag [#allocation5], %s378
          %s380 = sand.u32 %s194, 1
          %s381 = smul.addr %s380, 1024
          %s382 = scalar_lea.vmem [#allocation6], %s381
          %384 = vsyncadd %s379, 0
          %s385 = smul.addr %s29, 256
          %s386 = smul.addr %s385, 4
          %s387 = scalar_lea.hbm %s6, %s386
          %s388 = sshll.u32 %s387, 4
          %s389 = int_to_ptr.hbm [resolvable:$true] %s388
          %s390 = sshll.u32 %s382, 4
          %s391 = int_to_ptr.vmem [resolvable:$true] %s390
          %396 = dma.hbm_to_vmem [thread:$0]  %s389, 16384, %s391, %s379, 128, 128, 8
        $region48: #{blip_base_forward.3} parent=23 // pred_fallthru
          _
        // Predicated region
        $region49: #{blip_base_forward.3} parent=23 // pred_check
          %p397 = pneg %p230
        $region50: #{blip_base_forward.3} parent=23 // pred_check_branch
          %399 = sbr.rel (%p397) target = $region52
        $region51: #{blip_base_forward.3} parent=23 // pred_region
          %p400 = scmp.lt.s32.totalorder %s29, 1
          %s401 = scalar_select %p400, %s29, 1
          %s402 = smul.addr %s401, 8
          %s403 = smul.addr %s402, 8
          %s404 = scalar_lea.vmem %s7, %s403
        $region52: #{blip_base_forward.3} parent=23 // pred_fallthru
          _
      $region24: #{blip_base_forward.3} parent=5 // pred_fallthru
        _
      %p405 = scmp.le.s32.totalorder 1, %s21
      %p406 = scmp.lt.s32.totalorder %s21, 5
      %p407 = pnand %p405, %p406
      %p408 = pneg %p407
      // Predicated region
      $region53: #{blip_base_forward.3} parent=5 // pred_check
        _
      $region54: #{blip_base_forward.3} parent=5 // pred_check_branch
        %410 = sbr.rel (%p407) target = $region56
      $region55: #{blip_base_forward.3} parent=5 // pred_region
        %s411 = ssub.s32 %s21, 1
        %s412 = sand.u32 %s145, 1
        %s413 = scalar_lea.sflag [#allocation3], %s412
        %s414 = sand.u32 %s145, 1
        %s415 = smul.addr %s414, 256
        %s416 = scalar_lea.vmem [#allocation2], %s415
        // Predicated region
        $region57: #{blip_base_forward.3} parent=55 // pred_check
          %p417 = pneg %p158
        $region58: #{blip_base_forward.3} parent=55 // pred_check_branch
          %419 = sbr.rel (%p417) target = $region60
        $region59: #{blip_base_forward.3} parent=55 // pred_region
          %421 = dma.done %s413, 4096
        $region60: #{blip_base_forward.3} parent=55 // pred_fallthru
          _
        %s422 = sand.u32 %s26, 1
        %s423 = scalar_lea.sflag [#allocation5], %s422
        %s424 = sand.u32 %s171, 1
        %s425 = smul.addr %s424, 1024
        %s426 = scalar_lea.vmem [#allocation4], %s425
        // Predicated region
        $region61: #{blip_base_forward.3} parent=55 // pred_check
          %p427 = pneg %p184
        $region62: #{blip_base_forward.3} parent=55 // pred_check_branch
          %429 = sbr.rel (%p427) target = $region64
        $region63: #{blip_base_forward.3} parent=55 // pred_region
          %431 = dma.done %s423, 16384
        $region64: #{blip_base_forward.3} parent=55 // pred_fallthru
          _
        %s432 = sand.u32 %s26, 1
        %s433 = scalar_lea.sflag [#allocation5], %s432
        %s434 = sand.u32 %s197, 1
        %s435 = smul.addr %s434, 1024
        %s436 = scalar_lea.vmem [#allocation6], %s435
        // Predicated region
        $region65: #{blip_base_forward.3} parent=55 // pred_check
          %p437 = pneg %p210
        $region66: #{blip_base_forward.3} parent=55 // pred_check_branch
          %439 = sbr.rel (%p437) target = $region68
        $region67: #{blip_base_forward.3} parent=55 // pred_region
          %441 = dma.done %s433, 16384
        $region68: #{blip_base_forward.3} parent=55 // pred_fallthru
          _
        %p442 = scmp.lt.s32.totalorder %s30, 1
        %s443 = scalar_select %p442, %s30, 1
        %s444 = smul.addr %s443, 2
        %s445 = smul.addr %s444, 8
        %s446 = scalar_lea.vmem %s0, %s445
        %p447 = pneg %p59
        %p448 = pneg %p56
        %p449 = pneg %p80
        %p450 = pneg %p77
        %p451 = scmp.lt.s32.totalorder %s31, 1
        %s452 = scalar_select %p451, %s31, 1
        %s453 = smul.addr %s452, 192
        %s454 = smul.addr %s453, 4
        %s455 = scalar_lea.vmem %s2, %s454
        %p456 = pneg %p106
        %p457 = pneg %p103
        %p458 = scmp.lt.s32.totalorder %s31, 1
        %s459 = scalar_select %p458, %s31, 1
        %s460 = smul.addr %s459, 8
        %s461 = scalar_lea.vmem %s3, %s460
        %p462 = pneg %p132
        %p463 = pneg %p129
        %s464 = sand.u32 %s145, 1
        %s465 = scalar_lea.sflag [#allocation3], %s464
        %s466 = sand.u32 %s145, 1
        %s467 = smul.addr %s466, 256
        %s468 = scalar_lea.vmem [#allocation2], %s467
        %p469 = pneg %p158
        %p470 = pneg %p155
        %s471 = sand.u32 %s26, 1
        %s472 = scalar_lea.sflag [#allocation5], %s471
        %s473 = sand.u32 %s171, 1
        %s474 = smul.addr %s473, 1024
        %s475 = scalar_lea.vmem [#allocation4], %s474
        %p476 = pneg %p184
        %p477 = pneg %p181
        %s478 = sand.u32 %s26, 1
        %s479 = scalar_lea.sflag [#allocation5], %s478
        %s480 = sand.u32 %s197, 1
        %s481 = smul.addr %s480, 1024
        %s482 = scalar_lea.vmem [#allocation6], %s481
        %p483 = pneg %p210
        %p484 = pneg %p207
        %p485 = scmp.lt.s32.totalorder %s31, 1
        %s486 = scalar_select %p485, %s31, 1
        %s487 = smul.addr %s486, 8
        %s488 = smul.addr %s487, 8
        %s489 = scalar_lea.vmem %s7, %s488
        %p490 = pneg %p236
        %p491 = pneg %p233
        %p492 = pneg %p257
        %p493 = pneg %p254
        %p494 = pneg %p283
        %p495 = pneg %p280
        %p496 = scmp.lt.s32.totalorder %s30, 1
        %s497 = scalar_select %p496, %s30, 1
        %s498 = smul.addr %s497, 2
        %s499 = smul.addr %s498, 8
        %s500 = scalar_lea.vmem %s9, %s499
        %p501 = scmp.lt.s32.totalorder %s30, 1
        %s502 = scalar_select %p501, %s30, 1
        %s503 = smul.addr %s502, 2
        %s504 = smul.addr %s503, 8
        %s505 = scalar_lea.vmem %s0, %s504
        %p506 = scmp.lt.s32.totalorder %s31, 1
        %s507 = scalar_select %p506, %s31, 1
        %s508 = smul.addr %s507, 192
        %s509 = smul.addr %s508, 4
        %s510 = scalar_lea.vmem %s2, %s509
        %p511 = scmp.lt.s32.totalorder %s31, 1
        %s512 = scalar_select %p511, %s31, 1
        %s513 = smul.addr %s512, 8
        %s514 = scalar_lea.vmem %s3, %s513
        %p515 = scmp.lt.s32.totalorder %s31, 1
        %s516 = scalar_select %p515, %s31, 1
        %s517 = smul.addr %s516, 8
        %s518 = smul.addr %s517, 8
        %s519 = scalar_lea.vmem %s7, %s518
        %p520 = scmp.lt.s32.totalorder %s30, 1
        %s521 = scalar_select %p520, %s30, 1
        %s522 = smul.addr %s521, 2
        %s523 = smul.addr %s522, 8
        %s524 = scalar_lea.vmem %s9, %s523
        %p526 = scmp.eq.s32.totalorder %s31, 0
        // Predicated region
        $region69: #{blip_base_forward.3} parent=55 // pred_check
          %p527 = pneg %p526
        $region70: #{blip_base_forward.3} parent=55 // pred_check_branch
          %529 = sbr.rel (%p527) target = $region72
        $region71: #{blip_base_forward.3} parent=55 // pred_region
          %v530 = vld [vmem:[%s505] sm:$0xff]
          %v531 = vld [vmem:[%s505 + $0x8] sm:$0xff]
          %532 = vst [vmem:[%s524] sm:$0xff] %v530
          %533 = vst [vmem:[%s524 + $0x8] sm:$0xff] %v531
        $region72: #{blip_base_forward.3} parent=55 // pred_fallthru
          _
        %v534 = vld [vmem:[%s524] sm:$0xff]
        %v535 = vld [vmem:[%s524 + $0x8] sm:$0xff]
        %v536 = vld [vmem:[%s519] sm:$0xff]
        %v537 = vld [vmem:[%s519 + $0x8] sm:$0xff]
        %v538 = vld [vmem:[%s519 + $0x10] sm:$0xff]
        %v539 = vld [vmem:[%s519 + $0x18] sm:$0xff]
        %v540 = vld [vmem:[%s519 + $0x20] sm:$0xff]
        %v541 = vld [vmem:[%s519 + $0x28] sm:$0xff]
        %v542 = vld [vmem:[%s519 + $0x30] sm:$0xff]
        %v543 = vld [vmem:[%s519 + $0x38] sm:$0xff]
        %v544 = vld [vmem:[%s1] sm:$0x1]
        %v545 = vadd.f32 %v534, %v535
        %546 = vadd.xlane.f32.xlu0 %v545
        %v547 = vpop.xlane.xlu0 %546
        %v548 = vrcp.pop 256.0
        %v549 = vmul.f32 256.0, %v548
        %v550 = vsub.f32 1.0, %v549
        %v551 = vmul.f32 %v548, %v550
        %v552 = vadd.f32 %v548, %v551
        %vm553 = vweird.f32 %v548
        %v554 = vsel %vm553, %v548, %v552
        %v555 = vmul.f32 %v547, %v554
        %v556 = vsub.f32 %v534, %v555
        %v557 = vsub.f32 %v535, %v555
        %v558 = vmul.f32 %v556, %v556
        %v559 = vmul.f32 %v557, %v557
        %v560 = vadd.f32 %v558, %v559
        %561 = vadd.xlane.f32.xlu0 %v560
        %v562 = vpop.xlane.xlu0 %561
        %v563 = vmul.f32 %v562, %v554
        %v564 = vadd.f32 %v563, 1e-06
        %v565 = vrsqrt.pop %v564
        %v566 = vmul.f32 %v565, %v564
        %v567 = vmul.f32 %v566, %v565
        %v568 = vmul.f32 0.5, %v567
        %v569 = vsub.f32 1.5, %v568
        %v570 = vmul.f32 %v565, %v569
        %vm571 = vweird.f32 %v564
        %vm572 = vweird.f32 %v565
        %vm573 = vmor %vm571, %vm572
        %v574 = vsel %vm573, %v565, %v570
        %v575 = vmul.f32 %v556, %v574
        %v576 = vmul.f32 %v557, %v574
        %v577 = vperm.slane %v536, 0
        %v578 = vperm.slane %v537, 0
        %v579 = vmul.f32 %v575, %v577
        %v580 = vmul.f32 %v576, %v578
        %v581 = vperm.slane %v536, 1
        %v582 = vperm.slane %v537, 1
        %v583 = vadd.f32 %v579, %v581
        %v584 = vadd.f32 %v580, %v582
        %v585 = vpack.c.bf16 %v584, %v583
        %v586 = vld [vmem:[%s510] sm:$0xf]
        %v587 = vld [vmem:[%s510 + $0x4] sm:$0xf]
        %v588 = vld [vmem:[%s510 + $0x8] sm:$0xf]
        %v589 = vld [vmem:[%s510 + $0xc] sm:$0xf]
        %v590 = vld [vmem:[%s510 + $0x10] sm:$0xf]
        %v591 = vld [vmem:[%s510 + $0x14] sm:$0xf]
        %v592 = vld [vmem:[%s510 + $0x18] sm:$0xf]
        %v593 = vld [vmem:[%s510 + $0x1c] sm:$0xf]
        %v594 = vld [vmem:[%s510 + $0x20] sm:$0xf]
        %v595 = vld [vmem:[%s510 + $0x24] sm:$0xf]
        %v596 = vld [vmem:[%s510 + $0x28] sm:$0xf]
        %v597 = vld [vmem:[%s510 + $0x2c] sm:$0xf]
        %v598 = vld [vmem:[%s510 + $0x30] sm:$0xf]
        %v599 = vld [vmem:[%s510 + $0x34] sm:$0xf]
        %v600 = vld [vmem:[%s510 + $0x38] sm:$0xf]
        %v601 = vld [vmem:[%s510 + $0x3c] sm:$0xf]
        %v602 = vld [vmem:[%s510 + $0x40] sm:$0xf]
        %v603 = vld [vmem:[%s510 + $0x44] sm:$0xf]
        %v604 = vld [vmem:[%s510 + $0x48] sm:$0xf]
        %v605 = vld [vmem:[%s510 + $0x4c] sm:$0xf]
        %v606 = vld [vmem:[%s510 + $0x50] sm:$0xf]
        %v607 = vld [vmem:[%s510 + $0x54] sm:$0xf]
        %v608 = vld [vmem:[%s510 + $0x58] sm:$0xf]
        %v609 = vld [vmem:[%s510 + $0x5c] sm:$0xf]
        %v610 = vld [vmem:[%s510 + $0x60] sm:$0xf]
        %v611 = vld [vmem:[%s510 + $0x64] sm:$0xf]
        %v612 = vld [vmem:[%s510 + $0x68] sm:$0xf]
        %v613 = vld [vmem:[%s510 + $0x6c] sm:$0xf]
        %v614 = vld [vmem:[%s510 + $0x70] sm:$0xf]
        %v615 = vld [vmem:[%s510 + $0x74] sm:$0xf]
        %v616 = vld [vmem:[%s510 + $0x78] sm:$0xf]
        %v617 = vld [vmem:[%s510 + $0x7c] sm:$0xf]
        %v618 = vld [vmem:[%s510 + $0x80] sm:$0xf]
        %v619 = vld [vmem:[%s510 + $0x84] sm:$0xf]
        %v620 = vld [vmem:[%s510 + $0x88] sm:$0xf]
        %v621 = vld [vmem:[%s510 + $0x8c] sm:$0xf]
        %v622 = vld [vmem:[%s510 + $0x90] sm:$0xf]
        %v623 = vld [vmem:[%s510 + $0x94] sm:$0xf]
        %v624 = vld [vmem:[%s510 + $0x98] sm:$0xf]
        %v625 = vld [vmem:[%s510 + $0x9c] sm:$0xf]
        %v626 = vld [vmem:[%s510 + $0xa0] sm:$0xf]
        %v627 = vld [vmem:[%s510 + $0xa4] sm:$0xf]
        %v628 = vld [vmem:[%s510 + $0xa8] sm:$0xf]
        %v629 = vld [vmem:[%s510 + $0xac] sm:$0xf]
        %v630 = vld [vmem:[%s510 + $0xb0] sm:$0xf]
        %v631 = vld [vmem:[%s510 + $0xb4] sm:$0xf]
        %v632 = vld [vmem:[%s510 + $0xb8] sm:$0xf]
        %v633 = vld [vmem:[%s510 + $0xbc] sm:$0xf]
        %v634 = vld [vmem:[%s510 + $0xc0] sm:$0xf]
        %v635 = vld [vmem:[%s510 + $0xc4] sm:$0xf]
        %v636 = vld [vmem:[%s510 + $0xc8] sm:$0xf]
        %v637 = vld [vmem:[%s510 + $0xcc] sm:$0xf]
        %v638 = vld [vmem:[%s510 + $0xd0] sm:$0xf]
        %v639 = vld [vmem:[%s510 + $0xd4] sm:$0xf]
        %v640 = vld [vmem:[%s510 + $0xd8] sm:$0xf]
        %v641 = vld [vmem:[%s510 + $0xdc] sm:$0xf]
        %v642 = vld [vmem:[%s510 + $0xe0] sm:$0xf]
        %v643 = vld [vmem:[%s510 + $0xe4] sm:$0xf]
        %v644 = vld [vmem:[%s510 + $0xe8] sm:$0xf]
        %v645 = vld [vmem:[%s510 + $0xec] sm:$0xf]
        %v646 = vld [vmem:[%s510 + $0xf0] sm:$0xf]
        %v647 = vld [vmem:[%s510 + $0xf4] sm:$0xf]
        %v648 = vld [vmem:[%s510 + $0xf8] sm:$0xf]
        %v649 = vld [vmem:[%s510 + $0xfc] sm:$0xf]
        %v650 = vld [vmem:[%s510 + $0x100] sm:$0xf]
        %v651 = vld [vmem:[%s510 + $0x104] sm:$0xf]
        %v652 = vld [vmem:[%s510 + $0x108] sm:$0xf]
        %v653 = vld [vmem:[%s510 + $0x10c] sm:$0xf]
        %v654 = vld [vmem:[%s510 + $0x110] sm:$0xf]
        %v655 = vld [vmem:[%s510 + $0x114] sm:$0xf]
        %v656 = vld [vmem:[%s510 + $0x118] sm:$0xf]
        %v657 = vld [vmem:[%s510 + $0x11c] sm:$0xf]
        %v658 = vld [vmem:[%s510 + $0x120] sm:$0xf]
        %v659 = vld [vmem:[%s510 + $0x124] sm:$0xf]
        %v660 = vld [vmem:[%s510 + $0x128] sm:$0xf]
        %v661 = vld [vmem:[%s510 + $0x12c] sm:$0xf]
        %v662 = vld [vmem:[%s510 + $0x130] sm:$0xf]
        %v663 = vld [vmem:[%s510 + $0x134] sm:$0xf]
        %v664 = vld [vmem:[%s510 + $0x138] sm:$0xf]
        %v665 = vld [vmem:[%s510 + $0x13c] sm:$0xf]
        %v666 = vld [vmem:[%s510 + $0x140] sm:$0xf]
        %v667 = vld [vmem:[%s510 + $0x144] sm:$0xf]
        %v668 = vld [vmem:[%s510 + $0x148] sm:$0xf]
        %v669 = vld [vmem:[%s510 + $0x14c] sm:$0xf]
        %v670 = vld [vmem:[%s510 + $0x150] sm:$0xf]
        %v671 = vld [vmem:[%s510 + $0x154] sm:$0xf]
        %v672 = vld [vmem:[%s510 + $0x158] sm:$0xf]
        %v673 = vld [vmem:[%s510 + $0x15c] sm:$0xf]
        %v674 = vld [vmem:[%s510 + $0x160] sm:$0xf]
        %v675 = vld [vmem:[%s510 + $0x164] sm:$0xf]
        %v676 = vld [vmem:[%s510 + $0x168] sm:$0xf]
        %v677 = vld [vmem:[%s510 + $0x16c] sm:$0xf]
        %v678 = vld [vmem:[%s510 + $0x170] sm:$0xf]
        %v679 = vld [vmem:[%s510 + $0x174] sm:$0xf]
        %v680 = vld [vmem:[%s510 + $0x178] sm:$0xf]
        %v681 = vld [vmem:[%s510 + $0x17c] sm:$0xf]
        %v682 = vld [vmem:[%s510 + $0x180] sm:$0xf]
        %v683 = vld [vmem:[%s510 + $0x184] sm:$0xf]
        %v684 = vld [vmem:[%s510 + $0x188] sm:$0xf]
        %v685 = vld [vmem:[%s510 + $0x18c] sm:$0xf]
        %v686 = vld [vmem:[%s510 + $0x190] sm:$0xf]
        %v687 = vld [vmem:[%s510 + $0x194] sm:$0xf]
        %v688 = vld [vmem:[%s510 + $0x198] sm:$0xf]
        %v689 = vld [vmem:[%s510 + $0x19c] sm:$0xf]
        %v690 = vld [vmem:[%s510 + $0x1a0] sm:$0xf]
        %v691 = vld [vmem:[%s510 + $0x1a4] sm:$0xf]
        %v692 = vld [vmem:[%s510 + $0x1a8] sm:$0xf]
        %v693 = vld [vmem:[%s510 + $0x1ac] sm:$0xf]
        %v694 = vld [vmem:[%s510 + $0x1b0] sm:$0xf]
        %v695 = vld [vmem:[%s510 + $0x1b4] sm:$0xf]
        %v696 = vld [vmem:[%s510 + $0x1b8] sm:$0xf]
        %v697 = vld [vmem:[%s510 + $0x1bc] sm:$0xf]
        %v698 = vld [vmem:[%s510 + $0x1c0] sm:$0xf]
        %v699 = vld [vmem:[%s510 + $0x1c4] sm:$0xf]
        %v700 = vld [vmem:[%s510 + $0x1c8] sm:$0xf]
        %v701 = vld [vmem:[%s510 + $0x1cc] sm:$0xf]
        %v702 = vld [vmem:[%s510 + $0x1d0] sm:$0xf]
        %v703 = vld [vmem:[%s510 + $0x1d4] sm:$0xf]
        %v704 = vld [vmem:[%s510 + $0x1d8] sm:$0xf]
        %v705 = vld [vmem:[%s510 + $0x1dc] sm:$0xf]
        %v706 = vld [vmem:[%s510 + $0x1e0] sm:$0xf]
        %v707 = vld [vmem:[%s510 + $0x1e4] sm:$0xf]
        %v708 = vld [vmem:[%s510 + $0x1e8] sm:$0xf]
        %v709 = vld [vmem:[%s510 + $0x1ec] sm:$0xf]
        %v710 = vld [vmem:[%s510 + $0x1f0] sm:$0xf]
        %v711 = vld [vmem:[%s510 + $0x1f4] sm:$0xf]
        %v712 = vld [vmem:[%s510 + $0x1f8] sm:$0xf]
        %v713 = vld [vmem:[%s510 + $0x1fc] sm:$0xf]
        %v714 = vld [vmem:[%s510 + $0x200] sm:$0xf]
        %v715 = vld [vmem:[%s510 + $0x204] sm:$0xf]
        %v716 = vld [vmem:[%s510 + $0x208] sm:$0xf]
        %v717 = vld [vmem:[%s510 + $0x20c] sm:$0xf]
        %v718 = vld [vmem:[%s510 + $0x210] sm:$0xf]
        %v719 = vld [vmem:[%s510 + $0x214] sm:$0xf]
        %v720 = vld [vmem:[%s510 + $0x218] sm:$0xf]
        %v721 = vld [vmem:[%s510 + $0x21c] sm:$0xf]
        %v722 = vld [vmem:[%s510 + $0x220] sm:$0xf]
        %v723 = vld [vmem:[%s510 + $0x224] sm:$0xf]
        %v724 = vld [vmem:[%s510 + $0x228] sm:$0xf]
        %v725 = vld [vmem:[%s510 + $0x22c] sm:$0xf]
        %v726 = vld [vmem:[%s510 + $0x230] sm:$0xf]
        %v727 = vld [vmem:[%s510 + $0x234] sm:$0xf]
        %v728 = vld [vmem:[%s510 + $0x238] sm:$0xf]
        %v729 = vld [vmem:[%s510 + $0x23c] sm:$0xf]
        %v730 = vld [vmem:[%s510 + $0x240] sm:$0xf]
        %v731 = vld [vmem:[%s510 + $0x244] sm:$0xf]
        %v732 = vld [vmem:[%s510 + $0x248] sm:$0xf]
        %v733 = vld [vmem:[%s510 + $0x24c] sm:$0xf]
        %v734 = vld [vmem:[%s510 + $0x250] sm:$0xf]
        %v735 = vld [vmem:[%s510 + $0x254] sm:$0xf]
        %v736 = vld [vmem:[%s510 + $0x258] sm:$0xf]
        %v737 = vld [vmem:[%s510 + $0x25c] sm:$0xf]
        %v738 = vld [vmem:[%s510 + $0x260] sm:$0xf]
        %v739 = vld [vmem:[%s510 + $0x264] sm:$0xf]
        %v740 = vld [vmem:[%s510 + $0x268] sm:$0xf]
        %v741 = vld [vmem:[%s510 + $0x26c] sm:$0xf]
        %v742 = vld [vmem:[%s510 + $0x270] sm:$0xf]
        %v743 = vld [vmem:[%s510 + $0x274] sm:$0xf]
        %v744 = vld [vmem:[%s510 + $0x278] sm:$0xf]
        %v745 = vld [vmem:[%s510 + $0x27c] sm:$0xf]
        %v746 = vld [vmem:[%s510 + $0x280] sm:$0xf]
        %v747 = vld [vmem:[%s510 + $0x284] sm:$0xf]
        %v748 = vld [vmem:[%s510 + $0x288] sm:$0xf]
        %v749 = vld [vmem:[%s510 + $0x28c] sm:$0xf]
        %v750 = vld [vmem:[%s510 + $0x290] sm:$0xf]
        %v751 = vld [vmem:[%s510 + $0x294] sm:$0xf]
        %v752 = vld [vmem:[%s510 + $0x298] sm:$0xf]
        %v753 = vld [vmem:[%s510 + $0x29c] sm:$0xf]
        %v754 = vld [vmem:[%s510 + $0x2a0] sm:$0xf]
        %v755 = vld [vmem:[%s510 + $0x2a4] sm:$0xf]
        %v756 = vld [vmem:[%s510 + $0x2a8] sm:$0xf]
        %v757 = vld [vmem:[%s510 + $0x2ac] sm:$0xf]
        %v758 = vld [vmem:[%s510 + $0x2b0] sm:$0xf]
        %v759 = vld [vmem:[%s510 + $0x2b4] sm:$0xf]
        %v760 = vld [vmem:[%s510 + $0x2b8] sm:$0xf]
        %v761 = vld [vmem:[%s510 + $0x2bc] sm:$0xf]
        %v762 = vld [vmem:[%s510 + $0x2c0] sm:$0xf]
        %v763 = vld [vmem:[%s510 + $0x2c4] sm:$0xf]
        %v764 = vld [vmem:[%s510 + $0x2c8] sm:$0xf]
        %v765 = vld [vmem:[%s510 + $0x2cc] sm:$0xf]
        %v766 = vld [vmem:[%s510 + $0x2d0] sm:$0xf]
        %v767 = vld [vmem:[%s510 + $0x2d4] sm:$0xf]
        %v768 = vld [vmem:[%s510 + $0x2d8] sm:$0xf]
        %v769 = vld [vmem:[%s510 + $0x2dc] sm:$0xf]
        %v770 = vld [vmem:[%s510 + $0x2e0] sm:$0xf]
        %v771 = vld [vmem:[%s510 + $0x2e4] sm:$0xf]
        %v772 = vld [vmem:[%s510 + $0x2e8] sm:$0xf]
        %v773 = vld [vmem:[%s510 + $0x2ec] sm:$0xf]
        %v774 = vld [vmem:[%s510 + $0x2f0] sm:$0xf]
        %v775 = vld [vmem:[%s510 + $0x2f4] sm:$0xf]
        %v776 = vld [vmem:[%s510 + $0x2f8] sm:$0xf]
        %v777 = vld [vmem:[%s510 + $0x2fc] sm:$0xf]
        %v778 = vld [vmem:[%s514] sm:$0x3f]
        %v780 = vrot.slane %v778, 1
        %v781 = vrot.slane %v778, 2
        %v782 = vrot.slane %v778, 3
        %v783 = vrot.slane %v778, 4
        %v784 = vrot.slane %v778, 5
        %v785 = vperm.slane %v778, 0
        %v786 = vperm.slane %v780, 0
        %v787 = vperm.slane %v781, 0
        %v788 = vperm.slane %v782, 0
        %v789 = vperm.slane %v783, 0
        %v790 = vperm.slane %v784, 0
        %v798 = vunpack.c.l.b16 %v585
        %v799 = vunpack.c.h.b16 %v585
        %v800 = vpack.c.b16 %v798, %v798
        %v801 = vpack.c.b16 %v799, %v799
        %v836 = vunpack.c.l.b16 %v586
        %v837 = vunpack.c.l.b16 %v587
        %v838 = vunpack.c.l.b16 %v588
        %v839 = vunpack.c.l.b16 %v589
        %v840 = vunpack.c.l.b16 %v590
        %v841 = vunpack.c.l.b16 %v591
        %v842 = vunpack.c.l.b16 %v592
        %v843 = vunpack.c.l.b16 %v593
        %v844 = vunpack.c.l.b16 %v594
        %v845 = vunpack.c.l.b16 %v595
        %v846 = vunpack.c.l.b16 %v596
        %v847 = vunpack.c.l.b16 %v597
        %v848 = vunpack.c.l.b16 %v598
        %v849 = vunpack.c.l.b16 %v599
        %v850 = vunpack.c.l.b16 %v600
        %v851 = vunpack.c.l.b16 %v601
        %v852 = vunpack.c.l.b16 %v602
        %v853 = vunpack.c.l.b16 %v603
        %v854 = vunpack.c.l.b16 %v604
        %v855 = vunpack.c.l.b16 %v605
        %v856 = vunpack.c.l.b16 %v606
        %v857 = vunpack.c.l.b16 %v607
        %v858 = vunpack.c.l.b16 %v608
        %v859 = vunpack.c.l.b16 %v609
        %v860 = vunpack.c.l.b16 %v610
        %v861 = vunpack.c.l.b16 %v611
        %v862 = vunpack.c.l.b16 %v612
        %v863 = vunpack.c.l.b16 %v613
        %v864 = vunpack.c.l.b16 %v614
        %v865 = vunpack.c.l.b16 %v615
        %v866 = vunpack.c.l.b16 %v616
        %v867 = vunpack.c.l.b16 %v617
        %v868 = vpack.c.b16 %v837, %v836
        %v869 = vpack.c.b16 %v839, %v838
        %v870 = vpack.c.b16 %v841, %v840
        %v871 = vpack.c.b16 %v843, %v842
        %v872 = vpack.c.b16 %v845, %v844
        %v873 = vpack.c.b16 %v847, %v846
        %v874 = vpack.c.b16 %v849, %v848
        %v875 = vpack.c.b16 %v851, %v850
        %v876 = vpack.c.b16 %v853, %v852
        %v877 = vpack.c.b16 %v855, %v854
        %v878 = vpack.c.b16 %v857, %v856
        %v879 = vpack.c.b16 %v859, %v858
        %v880 = vpack.c.b16 %v861, %v860
        %v881 = vpack.c.b16 %v863, %v862
        %v882 = vpack.c.b16 %v865, %v864
        %v883 = vpack.c.b16 %v867, %v866
        %900 = vmatpush.bf16.msra.mxu0 %v875
        %901 = vmatpush.bf16.msra.mxu0 %v874
        %902 = vmatpush.bf16.msra.mxu0 %v873
        %903 = vmatpush.bf16.msra.mxu0 %v872
        %904 = vmatpush.bf16.msra.mxu0 %v871
        %905 = vmatpush.bf16.msra.mxu0 %v870
        %906 = vmatpush.bf16.msra.mxu0 %v869
        %907 = vmatpush.bf16.msra.mxu0 %v868
        %908 = vmatmul.bf16.gmra.mxu0 %v800
        %v909 = vpop.f32.mrf.mxu0
        %v910 = vadd.f32 %v785, %v909
        %v911 = vpop.f32.mrf.mxu0
        %912 = vdwg.mxu0
        %913 = vmatpush.bf16.msra.mxu0 %v883
        %914 = vmatpush.bf16.msra.mxu0 %v882
        %915 = vmatpush.bf16.msra.mxu0 %v881
        %916 = vmatpush.bf16.msra.mxu0 %v880
        %917 = vmatpush.bf16.msra.mxu0 %v879
        %918 = vmatpush.bf16.msra.mxu0 %v878
        %919 = vmatpush.bf16.msra.mxu0 %v877
        %920 = vmatpush.bf16.msra.mxu0 %v876
        %921 = vmatmul.bf16.gmra.mxu0 %v801
        %v922 = vpop.f32.mrf.mxu0
        %v923 = vadd.f32 %v910, %v922
        %v924 = vpop.f32.mrf.mxu0
        %925 = vdwg.mxu0
        %v958 = vunpack.c.l.b16 %v618
        %v959 = vunpack.c.l.b16 %v619
        %v960 = vunpack.c.l.b16 %v620
        %v961 = vunpack.c.l.b16 %v621
        %v962 = vunpack.c.l.b16 %v622
        %v963 = vunpack.c.l.b16 %v623
        %v964 = vunpack.c.l.b16 %v624
        %v965 = vunpack.c.l.b16 %v625
        %v966 = vunpack.c.l.b16 %v626
        %v967 = vunpack.c.l.b16 %v627
        %v968 = vunpack.c.l.b16 %v628
        %v969 = vunpack.c.l.b16 %v629
        %v970 = vunpack.c.l.b16 %v630
        %v971 = vunpack.c.l.b16 %v631
        %v972 = vunpack.c.l.b16 %v632
        %v973 = vunpack.c.l.b16 %v633
        %v974 = vunpack.c.l.b16 %v634
        %v975 = vunpack.c.l.b16 %v635
        %v976 = vunpack.c.l.b16 %v636
        %v977 = vunpack.c.l.b16 %v637
        %v978 = vunpack.c.l.b16 %v638
        %v979 = vunpack.c.l.b16 %v639
        %v980 = vunpack.c.l.b16 %v640
        %v981 = vunpack.c.l.b16 %v641
        %v982 = vunpack.c.l.b16 %v642
        %v983 = vunpack.c.l.b16 %v643
        %v984 = vunpack.c.l.b16 %v644
        %v985 = vunpack.c.l.b16 %v645
        %v986 = vunpack.c.l.b16 %v646
        %v987 = vunpack.c.l.b16 %v647
        %v988 = vunpack.c.l.b16 %v648
        %v989 = vunpack.c.l.b16 %v649
        %v990 = vpack.c.b16 %v959, %v958
        %v991 = vpack.c.b16 %v961, %v960
        %v992 = vpack.c.b16 %v963, %v962
        %v993 = vpack.c.b16 %v965, %v964
        %v994 = vpack.c.b16 %v967, %v966
        %v995 = vpack.c.b16 %v969, %v968
        %v996 = vpack.c.b16 %v971, %v970
        %v997 = vpack.c.b16 %v973, %v972
        %v998 = vpack.c.b16 %v975, %v974
        %v999 = vpack.c.b16 %v977, %v976
        %v1000 = vpack.c.b16 %v979, %v978
        %v1001 = vpack.c.b16 %v981, %v980
        %v1002 = vpack.c.b16 %v983, %v982
        %v1003 = vpack.c.b16 %v985, %v984
        %v1004 = vpack.c.b16 %v987, %v986
        %v1005 = vpack.c.b16 %v989, %v988
        %1022 = vmatpush.bf16.msra.mxu0 %v997
        %1023 = vmatpush.bf16.msra.mxu0 %v996
        %1024 = vmatpush.bf16.msra.mxu0 %v995
        %1025 = vmatpush.bf16.msra.mxu0 %v994
        %1026 = vmatpush.bf16.msra.mxu0 %v993
        %1027 = vmatpush.bf16.msra.mxu0 %v992
        %1028 = vmatpush.bf16.msra.mxu0 %v991
        %1029 = vmatpush.bf16.msra.mxu0 %v990
        %1030 = vmatmul.bf16.gmra.mxu0 %v800
        %v1031 = vpop.f32.mrf.mxu0
        %v1032 = vadd.f32 %v786, %v1031
        %v1033 = vpop.f32.mrf.mxu0
        %1034 = vdwg.mxu0
        %1035 = vmatpush.bf16.msra.mxu0 %v1005
        %1036 = vmatpush.bf16.msra.mxu0 %v1004
        %1037 = vmatpush.bf16.msra.mxu0 %v1003
        %1038 = vmatpush.bf16.msra.mxu0 %v1002
        %1039 = vmatpush.bf16.msra.mxu0 %v1001
        %1040 = vmatpush.bf16.msra.mxu0 %v1000
        %1041 = vmatpush.bf16.msra.mxu0 %v999
        %1042 = vmatpush.bf16.msra.mxu0 %v998
        %1043 = vmatmul.bf16.gmra.mxu0 %v801
        %v1044 = vpop.f32.mrf.mxu0
        %v1045 = vadd.f32 %v1032, %v1044
        %v1046 = vpop.f32.mrf.mxu0
        %1047 = vdwg.mxu0
        %v1080 = vunpack.c.l.b16 %v650
        %v1081 = vunpack.c.l.b16 %v651
        %v1082 = vunpack.c.l.b16 %v652
        %v1083 = vunpack.c.l.b16 %v653
        %v1084 = vunpack.c.l.b16 %v654
        %v1085 = vunpack.c.l.b16 %v655
        %v1086 = vunpack.c.l.b16 %v656
        %v1087 = vunpack.c.l.b16 %v657
        %v1088 = vunpack.c.l.b16 %v658
        %v1089 = vunpack.c.l.b16 %v659
        %v1090 = vunpack.c.l.b16 %v660
        %v1091 = vunpack.c.l.b16 %v661
        %v1092 = vunpack.c.l.b16 %v662
        %v1093 = vunpack.c.l.b16 %v663
        %v1094 = vunpack.c.l.b16 %v664
        %v1095 = vunpack.c.l.b16 %v665
        %v1096 = vunpack.c.l.b16 %v666
        %v1097 = vunpack.c.l.b16 %v667
        %v1098 = vunpack.c.l.b16 %v668
        %v1099 = vunpack.c.l.b16 %v669
        %v1100 = vunpack.c.l.b16 %v670
        %v1101 = vunpack.c.l.b16 %v671
        %v1102 = vunpack.c.l.b16 %v672
        %v1103 = vunpack.c.l.b16 %v673
        %v1104 = vunpack.c.l.b16 %v674
        %v1105 = vunpack.c.l.b16 %v675
        %v1106 = vunpack.c.l.b16 %v676
        %v1107 = vunpack.c.l.b16 %v677
        %v1108 = vunpack.c.l.b16 %v678
        %v1109 = vunpack.c.l.b16 %v679
        %v1110 = vunpack.c.l.b16 %v680
        %v1111 = vunpack.c.l.b16 %v681
        %v1112 = vpack.c.b16 %v1081, %v1080
        %v1113 = vpack.c.b16 %v1083, %v1082
        %v1114 = vpack.c.b16 %v1085, %v1084
        %v1115 = vpack.c.b16 %v1087, %v1086
        %v1116 = vpack.c.b16 %v1089, %v1088
        %v1117 = vpack.c.b16 %v1091, %v1090
        %v1118 = vpack.c.b16 %v1093, %v1092
        %v1119 = vpack.c.b16 %v1095, %v1094
        %v1120 = vpack.c.b16 %v1097, %v1096
        %v1121 = vpack.c.b16 %v1099, %v1098
        %v1122 = vpack.c.b16 %v1101, %v1100
        %v1123 = vpack.c.b16 %v1103, %v1102
        %v1124 = vpack.c.b16 %v1105, %v1104
        %v1125 = vpack.c.b16 %v1107, %v1106
        %v1126 = vpack.c.b16 %v1109, %v1108
        %v1127 = vpack.c.b16 %v1111, %v1110
        %1144 = vmatpush.bf16.msra.mxu0 %v1119
        %1145 = vmatpush.bf16.msra.mxu0 %v1118
        %1146 = vmatpush.bf16.msra.mxu0 %v1117
        %1147 = vmatpush.bf16.msra.mxu0 %v1116
        %1148 = vmatpush.bf16.msra.mxu0 %v1115
        %1149 = vmatpush.bf16.msra.mxu0 %v1114
        %1150 = vmatpush.bf16.msra.mxu0 %v1113
        %1151 = vmatpush.bf16.msra.mxu0 %v1112
        %1152 = vmatmul.bf16.gmra.mxu0 %v800
        %v1153 = vpop.f32.mrf.mxu0
        %v1154 = vadd.f32 %v787, %v1153
        %v1155 = vpop.f32.mrf.mxu0
        %1156 = vdwg.mxu0
        %1157 = vmatpush.bf16.msra.mxu0 %v1127
        %1158 = vmatpush.bf16.msra.mxu0 %v1126
        %1159 = vmatpush.bf16.msra.mxu0 %v1125
        %1160 = vmatpush.bf16.msra.mxu0 %v1124
        %1161 = vmatpush.bf16.msra.mxu0 %v1123
        %1162 = vmatpush.bf16.msra.mxu0 %v1122
        %1163 = vmatpush.bf16.msra.mxu0 %v1121
        %1164 = vmatpush.bf16.msra.mxu0 %v1120
        %1165 = vmatmul.bf16.gmra.mxu0 %v801
        %v1166 = vpop.f32.mrf.mxu0
        %v1167 = vadd.f32 %v1154, %v1166
        %v1168 = vpop.f32.mrf.mxu0
        %1169 = vdwg.mxu0
        %v1202 = vunpack.c.l.b16 %v682
        %v1203 = vunpack.c.l.b16 %v683
        %v1204 = vunpack.c.l.b16 %v684
        %v1205 = vunpack.c.l.b16 %v685
        %v1206 = vunpack.c.l.b16 %v686
        %v1207 = vunpack.c.l.b16 %v687
        %v1208 = vunpack.c.l.b16 %v688
        %v1209 = vunpack.c.l.b16 %v689
        %v1210 = vunpack.c.l.b16 %v690
        %v1211 = vunpack.c.l.b16 %v691
        %v1212 = vunpack.c.l.b16 %v692
        %v1213 = vunpack.c.l.b16 %v693
        %v1214 = vunpack.c.l.b16 %v694
        %v1215 = vunpack.c.l.b16 %v695
        %v1216 = vunpack.c.l.b16 %v696
        %v1217 = vunpack.c.l.b16 %v697
        %v1218 = vunpack.c.l.b16 %v698
        %v1219 = vunpack.c.l.b16 %v699
        %v1220 = vunpack.c.l.b16 %v700
        %v1221 = vunpack.c.l.b16 %v701
        %v1222 = vunpack.c.l.b16 %v702
        %v1223 = vunpack.c.l.b16 %v703
        %v1224 = vunpack.c.l.b16 %v704
        %v1225 = vunpack.c.l.b16 %v705
        %v1226 = vunpack.c.l.b16 %v706
        %v1227 = vunpack.c.l.b16 %v707
        %v1228 = vunpack.c.l.b16 %v708
        %v1229 = vunpack.c.l.b16 %v709
        %v1230 = vunpack.c.l.b16 %v710
        %v1231 = vunpack.c.l.b16 %v711
        %v1232 = vunpack.c.l.b16 %v712
        %v1233 = vunpack.c.l.b16 %v713
        %v1234 = vpack.c.b16 %v1203, %v1202
        %v1235 = vpack.c.b16 %v1205, %v1204
        %v1236 = vpack.c.b16 %v1207, %v1206
        %v1237 = vpack.c.b16 %v1209, %v1208
        %v1238 = vpack.c.b16 %v1211, %v1210
        %v1239 = vpack.c.b16 %v1213, %v1212
        %v1240 = vpack.c.b16 %v1215, %v1214
        %v1241 = vpack.c.b16 %v1217, %v1216
        %v1242 = vpack.c.b16 %v1219, %v1218
        %v1243 = vpack.c.b16 %v1221, %v1220
        %v1244 = vpack.c.b16 %v1223, %v1222
        %v1245 = vpack.c.b16 %v1225, %v1224
        %v1246 = vpack.c.b16 %v1227, %v1226
        %v1247 = vpack.c.b16 %v1229, %v1228
        %v1248 = vpack.c.b16 %v1231, %v1230
        %v1249 = vpack.c.b16 %v1233, %v1232
        %1266 = vmatpush.bf16.msra.mxu0 %v1241
        %1267 = vmatpush.bf16.msra.mxu0 %v1240
        %1268 = vmatpush.bf16.msra.mxu0 %v1239
        %1269 = vmatpush.bf16.msra.mxu0 %v1238
        %1270 = vmatpush.bf16.msra.mxu0 %v1237
        %1271 = vmatpush.bf16.msra.mxu0 %v1236
        %1272 = vmatpush.bf16.msra.mxu0 %v1235
        %1273 = vmatpush.bf16.msra.mxu0 %v1234
        %1274 = vmatmul.bf16.gmra.mxu0 %v800
        %v1275 = vpop.f32.mrf.mxu0
        %v1276 = vadd.f32 %v788, %v1275
        %v1277 = vpop.f32.mrf.mxu0
        %1278 = vdwg.mxu0
        %1279 = vmatpush.bf16.msra.mxu0 %v1249
        %1280 = vmatpush.bf16.msra.mxu0 %v1248
        %1281 = vmatpush.bf16.msra.mxu0 %v1247
        %1282 = vmatpush.bf16.msra.mxu0 %v1246
        %1283 = vmatpush.bf16.msra.mxu0 %v1245
        %1284 = vmatpush.bf16.msra.mxu0 %v1244
        %1285 = vmatpush.bf16.msra.mxu0 %v1243
        %1286 = vmatpush.bf16.msra.mxu0 %v1242
        %1287 = vmatmul.bf16.gmra.mxu0 %v801
        %v1288 = vpop.f32.mrf.mxu0
        %v1289 = vadd.f32 %v1276, %v1288
        %v1290 = vpop.f32.mrf.mxu0
        %1291 = vdwg.mxu0
        %v1324 = vunpack.c.l.b16 %v714
        %v1325 = vunpack.c.l.b16 %v715
        %v1326 = vunpack.c.l.b16 %v716
        %v1327 = vunpack.c.l.b16 %v717
        %v1328 = vunpack.c.l.b16 %v718
        %v1329 = vunpack.c.l.b16 %v719
        %v1330 = vunpack.c.l.b16 %v720
        %v1331 = vunpack.c.l.b16 %v721
        %v1332 = vunpack.c.l.b16 %v722
        %v1333 = vunpack.c.l.b16 %v723
        %v1334 = vunpack.c.l.b16 %v724
        %v1335 = vunpack.c.l.b16 %v725
        %v1336 = vunpack.c.l.b16 %v726
        %v1337 = vunpack.c.l.b16 %v727
        %v1338 = vunpack.c.l.b16 %v728
        %v1339 = vunpack.c.l.b16 %v729
        %v1340 = vunpack.c.l.b16 %v730
        %v1341 = vunpack.c.l.b16 %v731
        %v1342 = vunpack.c.l.b16 %v732
        %v1343 = vunpack.c.l.b16 %v733
        %v1344 = vunpack.c.l.b16 %v734
        %v1345 = vunpack.c.l.b16 %v735
        %v1346 = vunpack.c.l.b16 %v736
        %v1347 = vunpack.c.l.b16 %v737
        %v1348 = vunpack.c.l.b16 %v738
        %v1349 = vunpack.c.l.b16 %v739
        %v1350 = vunpack.c.l.b16 %v740
        %v1351 = vunpack.c.l.b16 %v741
        %v1352 = vunpack.c.l.b16 %v742
        %v1353 = vunpack.c.l.b16 %v743
        %v1354 = vunpack.c.l.b16 %v744
        %v1355 = vunpack.c.l.b16 %v745
        %v1356 = vpack.c.b16 %v1325, %v1324
        %v1357 = vpack.c.b16 %v1327, %v1326
        %v1358 = vpack.c.b16 %v1329, %v1328
        %v1359 = vpack.c.b16 %v1331, %v1330
        %v1360 = vpack.c.b16 %v1333, %v1332
        %v1361 = vpack.c.b16 %v1335, %v1334
        %v1362 = vpack.c.b16 %v1337, %v1336
        %v1363 = vpack.c.b16 %v1339, %v1338
        %v1364 = vpack.c.b16 %v1341, %v1340
        %v1365 = vpack.c.b16 %v1343, %v1342
        %v1366 = vpack.c.b16 %v1345, %v1344
        %v1367 = vpack.c.b16 %v1347, %v1346
        %v1368 = vpack.c.b16 %v1349, %v1348
        %v1369 = vpack.c.b16 %v1351, %v1350
        %v1370 = vpack.c.b16 %v1353, %v1352
        %v1371 = vpack.c.b16 %v1355, %v1354
        %1388 = vmatpush.bf16.msra.mxu0 %v1363
        %1389 = vmatpush.bf16.msra.mxu0 %v1362
        %1390 = vmatpush.bf16.msra.mxu0 %v1361
        %1391 = vmatpush.bf16.msra.mxu0 %v1360
        %1392 = vmatpush.bf16.msra.mxu0 %v1359
        %1393 = vmatpush.bf16.msra.mxu0 %v1358
        %1394 = vmatpush.bf16.msra.mxu0 %v1357
        %1395 = vmatpush.bf16.msra.mxu0 %v1356
        %1396 = vmatmul.bf16.gmra.mxu0 %v800
        %v1397 = vpop.f32.mrf.mxu0
        %v1398 = vadd.f32 %v789, %v1397
        %v1399 = vpop.f32.mrf.mxu0
        %1400 = vdwg.mxu0
        %1401 = vmatpush.bf16.msra.mxu0 %v1371
        %1402 = vmatpush.bf16.msra.mxu0 %v1370
        %1403 = vmatpush.bf16.msra.mxu0 %v1369
        %1404 = vmatpush.bf16.msra.mxu0 %v1368
        %1405 = vmatpush.bf16.msra.mxu0 %v1367
        %1406 = vmatpush.bf16.msra.mxu0 %v1366
        %1407 = vmatpush.bf16.msra.mxu0 %v1365
        %1408 = vmatpush.bf16.msra.mxu0 %v1364
        %1409 = vmatmul.bf16.gmra.mxu0 %v801
        %v1410 = vpop.f32.mrf.mxu0
        %v1411 = vadd.f32 %v1398, %v1410
        %v1412 = vpop.f32.mrf.mxu0
        %1413 = vdwg.mxu0
        %v1446 = vunpack.c.l.b16 %v746
        %v1447 = vunpack.c.l.b16 %v747
        %v1448 = vunpack.c.l.b16 %v748
        %v1449 = vunpack.c.l.b16 %v749
        %v1450 = vunpack.c.l.b16 %v750
        %v1451 = vunpack.c.l.b16 %v751
        %v1452 = vunpack.c.l.b16 %v752
        %v1453 = vunpack.c.l.b16 %v753
        %v1454 = vunpack.c.l.b16 %v754
        %v1455 = vunpack.c.l.b16 %v755
        %v1456 = vunpack.c.l.b16 %v756
        %v1457 = vunpack.c.l.b16 %v757
        %v1458 = vunpack.c.l.b16 %v758
        %v1459 = vunpack.c.l.b16 %v759
        %v1460 = vunpack.c.l.b16 %v760
        %v1461 = vunpack.c.l.b16 %v761
        %v1462 = vunpack.c.l.b16 %v762
        %v1463 = vunpack.c.l.b16 %v763
        %v1464 = vunpack.c.l.b16 %v764
        %v1465 = vunpack.c.l.b16 %v765
        %v1466 = vunpack.c.l.b16 %v766
        %v1467 = vunpack.c.l.b16 %v767
        %v1468 = vunpack.c.l.b16 %v768
        %v1469 = vunpack.c.l.b16 %v769
        %v1470 = vunpack.c.l.b16 %v770
        %v1471 = vunpack.c.l.b16 %v771
        %v1472 = vunpack.c.l.b16 %v772
        %v1473 = vunpack.c.l.b16 %v773
        %v1474 = vunpack.c.l.b16 %v774
        %v1475 = vunpack.c.l.b16 %v775
        %v1476 = vunpack.c.l.b16 %v776
        %v1477 = vunpack.c.l.b16 %v777
        %v1478 = vpack.c.b16 %v1447, %v1446
        %v1479 = vpack.c.b16 %v1449, %v1448
        %v1480 = vpack.c.b16 %v1451, %v1450
        %v1481 = vpack.c.b16 %v1453, %v1452
        %v1482 = vpack.c.b16 %v1455, %v1454
        %v1483 = vpack.c.b16 %v1457, %v1456
        %v1484 = vpack.c.b16 %v1459, %v1458
        %v1485 = vpack.c.b16 %v1461, %v1460
        %v1486 = vpack.c.b16 %v1463, %v1462
        %v1487 = vpack.c.b16 %v1465, %v1464
        %v1488 = vpack.c.b16 %v1467, %v1466
        %v1489 = vpack.c.b16 %v1469, %v1468
        %v1490 = vpack.c.b16 %v1471, %v1470
        %v1491 = vpack.c.b16 %v1473, %v1472
        %v1492 = vpack.c.b16 %v1475, %v1474
        %v1493 = vpack.c.b16 %v1477, %v1476
        %1510 = vmatpush.bf16.msra.mxu0 %v1485
        %1511 = vmatpush.bf16.msra.mxu0 %v1484
        %1512 = vmatpush.bf16.msra.mxu0 %v1483
        %1513 = vmatpush.bf16.msra.mxu0 %v1482
        %1514 = vmatpush.bf16.msra.mxu0 %v1481
        %1515 = vmatpush.bf16.msra.mxu0 %v1480
        %1516 = vmatpush.bf16.msra.mxu0 %v1479
        %1517 = vmatpush.bf16.msra.mxu0 %v1478
        %1518 = vmatmul.bf16.gmra.mxu0 %v800
        %v1519 = vpop.f32.mrf.mxu0
        %v1520 = vadd.f32 %v790, %v1519
        %v1521 = vpop.f32.mrf.mxu0
        %1522 = vdwg.mxu0
        %1523 = vmatpush.bf16.msra.mxu0 %v1493
        %1524 = vmatpush.bf16.msra.mxu0 %v1492
        %1525 = vmatpush.bf16.msra.mxu0 %v1491
        %1526 = vmatpush.bf16.msra.mxu0 %v1490
        %1527 = vmatpush.bf16.msra.mxu0 %v1489
        %1528 = vmatpush.bf16.msra.mxu0 %v1488
        %1529 = vmatpush.bf16.msra.mxu0 %v1487
        %1530 = vmatpush.bf16.msra.mxu0 %v1486
        %1531 = vmatmul.bf16.gmra.mxu0 %v801
        %v1532 = vpop.f32.mrf.mxu0
        %v1533 = vadd.f32 %v1520, %v1532
        %v1534 = vpop.f32.mrf.mxu0
        %1535 = vdwg.mxu0
        %v1536 = vld [vmem:[%s416] sm:$0xff]
        %v1537 = vld [vmem:[%s416 + $0x8] sm:$0xff]
        %v1538 = vld [vmem:[%s416 + $0x10] sm:$0xff]
        %v1539 = vld [vmem:[%s416 + $0x18] sm:$0xff]
        %v1540 = vld [vmem:[%s416 + $0x20] sm:$0xff]
        %v1541 = vld [vmem:[%s416 + $0x28] sm:$0xff]
        %v1542 = vld [vmem:[%s416 + $0x30] sm:$0xff]
        %v1543 = vld [vmem:[%s416 + $0x38] sm:$0xff]
        %v1544 = vld [vmem:[%s416 + $0x40] sm:$0xff]
        %v1545 = vld [vmem:[%s416 + $0x48] sm:$0xff]
        %v1546 = vld [vmem:[%s416 + $0x50] sm:$0xff]
        %v1547 = vld [vmem:[%s416 + $0x58] sm:$0xff]
        %v1548 = vld [vmem:[%s416 + $0x60] sm:$0xff]
        %v1549 = vld [vmem:[%s416 + $0x68] sm:$0xff]
        %v1550 = vld [vmem:[%s416 + $0x70] sm:$0xff]
        %v1551 = vld [vmem:[%s416 + $0x78] sm:$0xff]
        %v1552 = vld [vmem:[%s416 + $0x80] sm:$0xff]
        %v1553 = vld [vmem:[%s416 + $0x88] sm:$0xff]
        %v1554 = vld [vmem:[%s416 + $0x90] sm:$0xff]
        %v1555 = vld [vmem:[%s416 + $0x98] sm:$0xff]
        %v1556 = vld [vmem:[%s416 + $0xa0] sm:$0xff]
        %v1557 = vld [vmem:[%s416 + $0xa8] sm:$0xff]
        %v1558 = vld [vmem:[%s416 + $0xb0] sm:$0xff]
        %v1559 = vld [vmem:[%s416 + $0xb8] sm:$0xff]
        %v1560 = vld [vmem:[%s416 + $0xc0] sm:$0xff]
        %v1561 = vld [vmem:[%s416 + $0xc8] sm:$0xff]
        %v1562 = vld [vmem:[%s416 + $0xd0] sm:$0xff]
        %v1563 = vld [vmem:[%s416 + $0xd8] sm:$0xff]
        %v1564 = vld [vmem:[%s416 + $0xe0] sm:$0xff]
        %v1565 = vld [vmem:[%s416 + $0xe8] sm:$0xff]
        %v1566 = vld [vmem:[%s416 + $0xf0] sm:$0xff]
        %v1567 = vld [vmem:[%s416 + $0xf8] sm:$0xff]
        %v1568 = vpack.c.bf16 %v923, %v923
        %v1569 = vpack.c.bf16 %v1045, %v1045
        %v1570 = vpack.c.bf16 %v1167, %v1167
        %v1571 = vpack.c.bf16 %v1289, %v1289
        %1572 = vmatpush.bf16.xpose.msra.mxu0 0
        %1573 = vmatpush.bf16.xpose.msra.mxu0 0
        %1574 = vmatpush.bf16.xpose.msra.mxu0 0
        %1575 = vmatpush.bf16.xpose.msra.mxu0 0
        %1576 = vmatpush.bf16.xpose.msra.mxu0 0
        %1577 = vmatpush.bf16.xpose.msra.mxu0 0
        %1578 = vmatpush.bf16.xpose.msra.mxu0 0
        %1579 = vmatpush.bf16.xpose.msra.mxu0 %v1570
        %1580 = vmatmul.bf16.gmra.mxu0 %v1568
        %v1581 = vpop.f32.mrf.mxu0
        %v1582 = vadd.f32 0.0, %v1581
        %v1583 = vpop.f32.mrf.mxu0
        %1584 = vdwg.mxu0
        %1585 = vmatpush.bf16.xpose.msra.mxu0 0
        %1586 = vmatpush.bf16.xpose.msra.mxu0 0
        %1587 = vmatpush.bf16.xpose.msra.mxu0 0
        %1588 = vmatpush.bf16.xpose.msra.mxu0 0
        %1589 = vmatpush.bf16.xpose.msra.mxu0 0
        %1590 = vmatpush.bf16.xpose.msra.mxu0 0
        %1591 = vmatpush.bf16.xpose.msra.mxu0 0
        %1592 = vmatpush.bf16.xpose.msra.mxu0 %v1571
        %1593 = vmatmul.bf16.gmra.mxu0 %v1569
        %v1594 = vpop.f32.mrf.mxu0
        %v1595 = vadd.f32 0.0, %v1594
        %v1596 = vpop.f32.mrf.mxu0
        %1597 = vdwg.mxu0
        %v1598 = vmul.f32 %v1582, 0.088388346
        %v1599 = vmul.f32 %v1595, 0.088388346
        %v1601 = vperm.slane %v544, 0
        %v1603 = vadd.f32 %v1598, %v1601
        %v1604 = vadd.f32 %v1599, %v1601
        %vm1605 = vcmask 64512
        %v1606 = vsel %vm1605, %v1603, -inf
        %1607 = vmax.xlane.f32.xlu0 %v1606
        %v1608 = vpop.xlane.xlu0 %1607
        %v1609 = vsel %vm1605, %v1604, -inf
        %1610 = vmax.xlane.f32.xlu0 %v1609
        %v1611 = vpop.xlane.xlu0 %1610
        %v1612 = vsub.f32 %v1603, %v1608
        %v1613 = vsub.f32 %v1604, %v1611
        %v1614 = vmul.f32 %v1612, 1.442695
        %v1615 = vpow.pop %v1614
        %v1616 = vmul.f32 %v1613, 1.442695
        %v1617 = vpow.pop %v1616
        %v1618 = vsel %vm1605, %v1615, 0.0
        %1619 = vadd.xlane.f32.xlu0 %v1618
        %v1620 = vpop.xlane.xlu0 %1619
        %v1621 = vsel %vm1605, %v1617, 0.0
        %1622 = vadd.xlane.f32.xlu0 %v1621
        %v1623 = vpop.xlane.xlu0 %1622
        %v1624 = vrcp.pop %v1620
        %v1625 = vrcp.pop %v1623
        %v1626 = vmul.f32 %v1615, %v1624
        %v1627 = vmul.f32 %v1617, %v1625
        %v1628 = vpack.c.bf16 %v1626, %v1626
        %v1629 = vpack.c.bf16 %v1627, %v1627
        %v1630 = vpack.c.bf16 %v1411, %v1411
        %v1631 = vpack.c.bf16 %v1533, %v1533
        %v1633 = vsel %vm1605, %v1628, 0
        %vm1635 = vcmask 1043456
        %v1637 = vsel %vm1635, %v1630, 0
        %1639 = vmatpush.bf16.msra.mxu0 0
        %1640 = vmatpush.bf16.msra.mxu0 0
        %1641 = vmatpush.bf16.msra.mxu0 0
        %1642 = vmatpush.bf16.msra.mxu0 0
        %1643 = vmatpush.bf16.msra.mxu0 0
        %1644 = vmatpush.bf16.msra.mxu0 0
        %1645 = vmatpush.bf16.msra.mxu0 0
        %1646 = vmatpush.bf16.msra.mxu0 %v1637
        %1647 = vmatmul.bf16.gmra.mxu0 %v1633
        %v1648 = vpop.f32.mrf.mxu0
        %v1649 = vadd.f32 0.0, %v1648
        %v1650 = vpop.f32.mrf.mxu0
        %1651 = vdwg.mxu0
        %v1653 = vsel %vm1605, %v1629, 0
        %v1656 = vsel %vm1635, %v1631, 0
        %1658 = vmatpush.bf16.msra.mxu0 0
        %1659 = vmatpush.bf16.msra.mxu0 0
        %1660 = vmatpush.bf16.msra.mxu0 0
        %1661 = vmatpush.bf16.msra.mxu0 0
        %1662 = vmatpush.bf16.msra.mxu0 0
        %1663 = vmatpush.bf16.msra.mxu0 0
        %1664 = vmatpush.bf16.msra.mxu0 0
        %1665 = vmatpush.bf16.msra.mxu0 %v1656
        %1666 = vmatmul.bf16.gmra.mxu0 %v1653
        %v1667 = vpop.f32.mrf.mxu0
        %v1668 = vadd.f32 0.0, %v1667
        %v1669 = vpop.f32.mrf.mxu0
        %1670 = vdwg.mxu0
        %v1671 = vpack.c.bf16 %v1649, %v1649
        %v1672 = vpack.c.bf16 %v1668, %v1668
        %v1689 = vunpack.c.l.b16 %v1536
        %v1690 = vunpack.c.h.b16 %v1536
        %v1691 = vunpack.c.l.b16 %v1537
        %v1692 = vunpack.c.h.b16 %v1537
        %v1693 = vunpack.c.l.b16 %v1538
        %v1694 = vunpack.c.h.b16 %v1538
        %v1695 = vunpack.c.l.b16 %v1539
        %v1696 = vunpack.c.h.b16 %v1539
        %v1697 = vunpack.c.l.b16 %v1540
        %v1698 = vunpack.c.h.b16 %v1540
        %v1699 = vunpack.c.l.b16 %v1541
        %v1700 = vunpack.c.h.b16 %v1541
        %v1701 = vunpack.c.l.b16 %v1542
        %v1702 = vunpack.c.h.b16 %v1542
        %v1703 = vunpack.c.l.b16 %v1543
        %v1704 = vunpack.c.h.b16 %v1543
        %v1705 = vunpack.c.l.b16 %v1544
        %v1706 = vunpack.c.h.b16 %v1544
        %v1707 = vunpack.c.l.b16 %v1545
        %v1708 = vunpack.c.h.b16 %v1545
        %v1709 = vunpack.c.l.b16 %v1546
        %v1710 = vunpack.c.h.b16 %v1546
        %v1711 = vunpack.c.l.b16 %v1547
        %v1712 = vunpack.c.h.b16 %v1547
        %v1713 = vunpack.c.l.b16 %v1548
        %v1714 = vunpack.c.h.b16 %v1548
        %v1715 = vunpack.c.l.b16 %v1549
        %v1716 = vunpack.c.h.b16 %v1549
        %v1717 = vunpack.c.l.b16 %v1550
        %v1718 = vunpack.c.h.b16 %v1550
        %v1719 = vunpack.c.l.b16 %v1551
        %v1720 = vunpack.c.h.b16 %v1551
        %v1721 = vpack.c.b16 %v1691, %v1689
        %v1722 = vpack.c.b16 %v1692, %v1690
        %v1723 = vpack.c.b16 %v1695, %v1693
        %v1724 = vpack.c.b16 %v1696, %v1694
        %v1725 = vpack.c.b16 %v1699, %v1697
        %v1726 = vpack.c.b16 %v1700, %v1698
        %v1727 = vpack.c.b16 %v1703, %v1701
        %v1728 = vpack.c.b16 %v1704, %v1702
        %v1729 = vpack.c.b16 %v1707, %v1705
        %v1730 = vpack.c.b16 %v1708, %v1706
        %v1731 = vpack.c.b16 %v1711, %v1709
        %v1732 = vpack.c.b16 %v1712, %v1710
        %v1733 = vpack.c.b16 %v1715, %v1713
        %v1734 = vpack.c.b16 %v1716, %v1714
        %v1735 = vpack.c.b16 %v1719, %v1717
        %v1736 = vpack.c.b16 %v1720, %v1718
        %1753 = vmatpush.bf16.msra.mxu0 %v1735
        %1754 = vmatpush.bf16.msra.mxu0 %v1733
        %1755 = vmatpush.bf16.msra.mxu0 %v1731
        %1756 = vmatpush.bf16.msra.mxu0 %v1729
        %1757 = vmatpush.bf16.msra.mxu0 %v1727
        %1758 = vmatpush.bf16.msra.mxu0 %v1725
        %1759 = vmatpush.bf16.msra.mxu0 %v1723
        %1760 = vmatpush.bf16.msra.mxu0 %v1721
        %1761 = vmatmul.bf16.gmra.mxu0 %v1671
        %v1762 = vpop.f32.mrf.mxu0
        %v1763 = vadd.f32 0.0, %v1762
        %v1764 = vpop.f32.mrf.mxu0
        %1765 = vdwg.mxu0
        %1766 = vmatpush.bf16.msra.mxu0 %v1736
        %1767 = vmatpush.bf16.msra.mxu0 %v1734
        %1768 = vmatpush.bf16.msra.mxu0 %v1732
        %1769 = vmatpush.bf16.msra.mxu0 %v1730
        %1770 = vmatpush.bf16.msra.mxu0 %v1728
        %1771 = vmatpush.bf16.msra.mxu0 %v1726
        %1772 = vmatpush.bf16.msra.mxu0 %v1724
        %1773 = vmatpush.bf16.msra.mxu0 %v1722
        %1774 = vmatmul.bf16.gmra.mxu0 %v1671
        %v1775 = vpop.f32.mrf.mxu0
        %v1776 = vadd.f32 0.0, %v1775
        %v1777 = vpop.f32.mrf.mxu0
        %1778 = vdwg.mxu0
        %v1795 = vunpack.c.l.b16 %v1552
        %v1796 = vunpack.c.h.b16 %v1552
        %v1797 = vunpack.c.l.b16 %v1553
        %v1798 = vunpack.c.h.b16 %v1553
        %v1799 = vunpack.c.l.b16 %v1554
        %v1800 = vunpack.c.h.b16 %v1554
        %v1801 = vunpack.c.l.b16 %v1555
        %v1802 = vunpack.c.h.b16 %v1555
        %v1803 = vunpack.c.l.b16 %v1556
        %v1804 = vunpack.c.h.b16 %v1556
        %v1805 = vunpack.c.l.b16 %v1557
        %v1806 = vunpack.c.h.b16 %v1557
        %v1807 = vunpack.c.l.b16 %v1558
        %v1808 = vunpack.c.h.b16 %v1558
        %v1809 = vunpack.c.l.b16 %v1559
        %v1810 = vunpack.c.h.b16 %v1559
        %v1811 = vunpack.c.l.b16 %v1560
        %v1812 = vunpack.c.h.b16 %v1560
        %v1813 = vunpack.c.l.b16 %v1561
        %v1814 = vunpack.c.h.b16 %v1561
        %v1815 = vunpack.c.l.b16 %v1562
        %v1816 = vunpack.c.h.b16 %v1562
        %v1817 = vunpack.c.l.b16 %v1563
        %v1818 = vunpack.c.h.b16 %v1563
        %v1819 = vunpack.c.l.b16 %v1564
        %v1820 = vunpack.c.h.b16 %v1564
        %v1821 = vunpack.c.l.b16 %v1565
        %v1822 = vunpack.c.h.b16 %v1565
        %v1823 = vunpack.c.l.b16 %v1566
        %v1824 = vunpack.c.h.b16 %v1566
        %v1825 = vunpack.c.l.b16 %v1567
        %v1826 = vunpack.c.h.b16 %v1567
        %v1827 = vpack.c.b16 %v1797, %v1795
        %v1828 = vpack.c.b16 %v1798, %v1796
        %v1829 = vpack.c.b16 %v1801, %v1799
        %v1830 = vpack.c.b16 %v1802, %v1800
        %v1831 = vpack.c.b16 %v1805, %v1803
        %v1832 = vpack.c.b16 %v1806, %v1804
        %v1833 = vpack.c.b16 %v1809, %v1807
        %v1834 = vpack.c.b16 %v1810, %v1808
        %v1835 = vpack.c.b16 %v1813, %v1811
        %v1836 = vpack.c.b16 %v1814, %v1812
        %v1837 = vpack.c.b16 %v1817, %v1815
        %v1838 = vpack.c.b16 %v1818, %v1816
        %v1839 = vpack.c.b16 %v1821, %v1819
        %v1840 = vpack.c.b16 %v1822, %v1820
        %v1841 = vpack.c.b16 %v1825, %v1823
        %v1842 = vpack.c.b16 %v1826, %v1824
        %1859 = vmatpush.bf16.msra.mxu0 %v1841
        %1860 = vmatpush.bf16.msra.mxu0 %v1839
        %1861 = vmatpush.bf16.msra.mxu0 %v1837
        %1862 = vmatpush.bf16.msra.mxu0 %v1835
        %1863 = vmatpush.bf16.msra.mxu0 %v1833
        %1864 = vmatpush.bf16.msra.mxu0 %v1831
        %1865 = vmatpush.bf16.msra.mxu0 %v1829
        %1866 = vmatpush.bf16.msra.mxu0 %v1827
        %1867 = vmatmul.bf16.gmra.mxu0 %v1672
        %v1868 = vpop.f32.mrf.mxu0
        %v1869 = vadd.f32 0.0, %v1868
        %v1870 = vpop.f32.mrf.mxu0
        %1871 = vdwg.mxu0
        %1872 = vmatpush.bf16.msra.mxu0 %v1842
        %1873 = vmatpush.bf16.msra.mxu0 %v1840
        %1874 = vmatpush.bf16.msra.mxu0 %v1838
        %1875 = vmatpush.bf16.msra.mxu0 %v1836
        %1876 = vmatpush.bf16.msra.mxu0 %v1834
        %1877 = vmatpush.bf16.msra.mxu0 %v1832
        %1878 = vmatpush.bf16.msra.mxu0 %v1830
        %1879 = vmatpush.bf16.msra.mxu0 %v1828
        %1880 = vmatmul.bf16.gmra.mxu0 %v1672
        %v1881 = vpop.f32.mrf.mxu0
        %v1882 = vadd.f32 0.0, %v1881
        %v1883 = vpop.f32.mrf.mxu0
        %1884 = vdwg.mxu0
        %v1885 = vadd.f32 %v1763, %v1869
        %v1886 = vadd.f32 %v1776, %v1882
        %v1887 = vadd.f32 %v534, %v1885
        %v1888 = vadd.f32 %v535, %v1886
        %v1889 = vperm.slane %v536, 2
        %v1890 = vperm.slane %v537, 2
        %v1891 = vadd.f32 %v1887, %v1889
        %v1892 = vadd.f32 %v1888, %v1890
        %v1893 = vadd.f32 %v1891, %v1892
        %1894 = vadd.xlane.f32.xlu0 %v1893
        %v1895 = vpop.xlane.xlu0 %1894
        %v1896 = vmul.f32 %v1895, %v554
        %v1897 = vsub.f32 %v1891, %v1896
        %v1898 = vsub.f32 %v1892, %v1896
        %v1899 = vmul.f32 %v1897, %v1897
        %v1900 = vmul.f32 %v1898, %v1898
        %v1901 = vadd.f32 %v1899, %v1900
        %1902 = vadd.xlane.f32.xlu0 %v1901
        %v1903 = vpop.xlane.xlu0 %1902
        %v1904 = vmul.f32 %v1903, %v554
        %v1905 = vadd.f32 %v1904, 1e-06
        %v1906 = vrsqrt.pop %v1905
        %v1907 = vmul.f32 %v1906, %v1905
        %v1908 = vmul.f32 %v1907, %v1906
        %v1909 = vmul.f32 0.5, %v1908
        %v1910 = vsub.f32 1.5, %v1909
        %v1911 = vmul.f32 %v1906, %v1910
        %vm1912 = vweird.f32 %v1905
        %vm1913 = vweird.f32 %v1906
        %vm1914 = vmor %vm1912, %vm1913
        %v1915 = vsel %vm1914, %v1906, %v1911
        %v1916 = vmul.f32 %v1897, %v1915
        %v1917 = vmul.f32 %v1898, %v1915
        %v1918 = vperm.slane %v536, 3
        %v1919 = vperm.slane %v537, 3
        %v1920 = vmul.f32 %v1916, %v1918
        %v1921 = vmul.f32 %v1917, %v1919
        %v1922 = vperm.slane %v536, 4
        %v1923 = vperm.slane %v537, 4
        %v1924 = vadd.f32 %v1920, %v1922
        %v1925 = vadd.f32 %v1921, %v1923
        %v1926 = vpack.c.bf16 %v1924, %v1924
        %v1927 = vpack.c.bf16 %v1925, %v1925
        %v1928 = vld [vmem:[%s426] sm:$0xff]
        %v1929 = vld [vmem:[%s426 + $0x8] sm:$0xff]
        %v1930 = vld [vmem:[%s426 + $0x10] sm:$0xff]
        %v1931 = vld [vmem:[%s426 + $0x18] sm:$0xff]
        %v1932 = vld [vmem:[%s426 + $0x20] sm:$0xff]
        %v1933 = vld [vmem:[%s426 + $0x28] sm:$0xff]
        %v1934 = vld [vmem:[%s426 + $0x30] sm:$0xff]
        %v1935 = vld [vmem:[%s426 + $0x38] sm:$0xff]
        %v1936 = vld [vmem:[%s426 + $0x40] sm:$0xff]
        %v1937 = vld [vmem:[%s426 + $0x48] sm:$0xff]
        %v1938 = vld [vmem:[%s426 + $0x50] sm:$0xff]
        %v1939 = vld [vmem:[%s426 + $0x58] sm:$0xff]
        %v1940 = vld [vmem:[%s426 + $0x60] sm:$0xff]
        %v1941 = vld [vmem:[%s426 + $0x68] sm:$0xff]
        %v1942 = vld [vmem:[%s426 + $0x70] sm:$0xff]
        %v1943 = vld [vmem:[%s426 + $0x78] sm:$0xff]
        %v1944 = vld [vmem:[%s426 + $0x80] sm:$0xff]
        %v1945 = vld [vmem:[%s426 + $0x88] sm:$0xff]
        %v1946 = vld [vmem:[%s426 + $0x90] sm:$0xff]
        %v1947 = vld [vmem:[%s426 + $0x98] sm:$0xff]
        %v1948 = vld [vmem:[%s426 + $0xa0] sm:$0xff]
        %v1949 = vld [vmem:[%s426 + $0xa8] sm:$0xff]
        %v1950 = vld [vmem:[%s426 + $0xb0] sm:$0xff]
        %v1951 = vld [vmem:[%s426 + $0xb8] sm:$0xff]
        %v1952 = vld [vmem:[%s426 + $0xc0] sm:$0xff]
        %v1953 = vld [vmem:[%s426 + $0xc8] sm:$0xff]
        %v1954 = vld [vmem:[%s426 + $0xd0] sm:$0xff]
        %v1955 = vld [vmem:[%s426 + $0xd8] sm:$0xff]
        %v1956 = vld [vmem:[%s426 + $0xe0] sm:$0xff]
        %v1957 = vld [vmem:[%s426 + $0xe8] sm:$0xff]
        %v1958 = vld [vmem:[%s426 + $0xf0] sm:$0xff]
        %v1959 = vld [vmem:[%s426 + $0xf8] sm:$0xff]
        %v1960 = vld [vmem:[%s426 + $0x100] sm:$0xff]
        %v1961 = vld [vmem:[%s426 + $0x108] sm:$0xff]
        %v1962 = vld [vmem:[%s426 + $0x110] sm:$0xff]
        %v1963 = vld [vmem:[%s426 + $0x118] sm:$0xff]
        %v1964 = vld [vmem:[%s426 + $0x120] sm:$0xff]
        %v1965 = vld [vmem:[%s426 + $0x128] sm:$0xff]
        %v1966 = vld [vmem:[%s426 + $0x130] sm:$0xff]
        %v1967 = vld [vmem:[%s426 + $0x138] sm:$0xff]
        %v1968 = vld [vmem:[%s426 + $0x140] sm:$0xff]
        %v1969 = vld [vmem:[%s426 + $0x148] sm:$0xff]
        %v1970 = vld [vmem:[%s426 + $0x150] sm:$0xff]
        %v1971 = vld [vmem:[%s426 + $0x158] sm:$0xff]
        %v1972 = vld [vmem:[%s426 + $0x160] sm:$0xff]
        %v1973 = vld [vmem:[%s426 + $0x168] sm:$0xff]
        %v1974 = vld [vmem:[%s426 + $0x170] sm:$0xff]
        %v1975 = vld [vmem:[%s426 + $0x178] sm:$0xff]
        %v1976 = vld [vmem:[%s426 + $0x180] sm:$0xff]
        %v1977 = vld [vmem:[%s426 + $0x188] sm:$0xff]
        %v1978 = vld [vmem:[%s426 + $0x190] sm:$0xff]
        %v1979 = vld [vmem:[%s426 + $0x198] sm:$0xff]
        %v1980 = vld [vmem:[%s426 + $0x1a0] sm:$0xff]
        %v1981 = vld [vmem:[%s426 + $0x1a8] sm:$0xff]
        %v1982 = vld [vmem:[%s426 + $0x1b0] sm:$0xff]
        %v1983 = vld [vmem:[%s426 + $0x1b8] sm:$0xff]
        %v1984 = vld [vmem:[%s426 + $0x1c0] sm:$0xff]
        %v1985 = vld [vmem:[%s426 + $0x1c8] sm:$0xff]
        %v1986 = vld [vmem:[%s426 + $0x1d0] sm:$0xff]
        %v1987 = vld [vmem:[%s426 + $0x1d8] sm:$0xff]
        %v1988 = vld [vmem:[%s426 + $0x1e0] sm:$0xff]
        %v1989 = vld [vmem:[%s426 + $0x1e8] sm:$0xff]
        %v1990 = vld [vmem:[%s426 + $0x1f0] sm:$0xff]
        %v1991 = vld [vmem:[%s426 + $0x1f8] sm:$0xff]
        %v1992 = vld [vmem:[%s426 + $0x200] sm:$0xff]
        %v1993 = vld [vmem:[%s426 + $0x208] sm:$0xff]
        %v1994 = vld [vmem:[%s426 + $0x210] sm:$0xff]
        %v1995 = vld [vmem:[%s426 + $0x218] sm:$0xff]
        %v1996 = vld [vmem:[%s426 + $0x220] sm:$0xff]
        %v1997 = vld [vmem:[%s426 + $0x228] sm:$0xff]
        %v1998 = vld [vmem:[%s426 + $0x230] sm:$0xff]
        %v1999 = vld [vmem:[%s426 + $0x238] sm:$0xff]
        %v2000 = vld [vmem:[%s426 + $0x240] sm:$0xff]
        %v2001 = vld [vmem:[%s426 + $0x248] sm:$0xff]
        %v2002 = vld [vmem:[%s426 + $0x250] sm:$0xff]
        %v2003 = vld [vmem:[%s426 + $0x258] sm:$0xff]
        %v2004 = vld [vmem:[%s426 + $0x260] sm:$0xff]
        %v2005 = vld [vmem:[%s426 + $0x268] sm:$0xff]
        %v2006 = vld [vmem:[%s426 + $0x270] sm:$0xff]
        %v2007 = vld [vmem:[%s426 + $0x278] sm:$0xff]
        %v2008 = vld [vmem:[%s426 + $0x280] sm:$0xff]
        %v2009 = vld [vmem:[%s426 + $0x288] sm:$0xff]
        %v2010 = vld [vmem:[%s426 + $0x290] sm:$0xff]
        %v2011 = vld [vmem:[%s426 + $0x298] sm:$0xff]
        %v2012 = vld [vmem:[%s426 + $0x2a0] sm:$0xff]
        %v2013 = vld [vmem:[%s426 + $0x2a8] sm:$0xff]
        %v2014 = vld [vmem:[%s426 + $0x2b0] sm:$0xff]
        %v2015 = vld [vmem:[%s426 + $0x2b8] sm:$0xff]
        %v2016 = vld [vmem:[%s426 + $0x2c0] sm:$0xff]
        %v2017 = vld [vmem:[%s426 + $0x2c8] sm:$0xff]
        %v2018 = vld [vmem:[%s426 + $0x2d0] sm:$0xff]
        %v2019 = vld [vmem:[%s426 + $0x2d8] sm:$0xff]
        %v2020 = vld [vmem:[%s426 + $0x2e0] sm:$0xff]
        %v2021 = vld [vmem:[%s426 + $0x2e8] sm:$0xff]
        %v2022 = vld [vmem:[%s426 + $0x2f0] sm:$0xff]
        %v2023 = vld [vmem:[%s426 + $0x2f8] sm:$0xff]
        %v2024 = vld [vmem:[%s426 + $0x300] sm:$0xff]
        %v2025 = vld [vmem:[%s426 + $0x308] sm:$0xff]
        %v2026 = vld [vmem:[%s426 + $0x310] sm:$0xff]
        %v2027 = vld [vmem:[%s426 + $0x318] sm:$0xff]
        %v2028 = vld [vmem:[%s426 + $0x320] sm:$0xff]
        %v2029 = vld [vmem:[%s426 + $0x328] sm:$0xff]
        %v2030 = vld [vmem:[%s426 + $0x330] sm:$0xff]
        %v2031 = vld [vmem:[%s426 + $0x338] sm:$0xff]
        %v2032 = vld [vmem:[%s426 + $0x340] sm:$0xff]
        %v2033 = vld [vmem:[%s426 + $0x348] sm:$0xff]
        %v2034 = vld [vmem:[%s426 + $0x350] sm:$0xff]
        %v2035 = vld [vmem:[%s426 + $0x358] sm:$0xff]
        %v2036 = vld [vmem:[%s426 + $0x360] sm:$0xff]
        %v2037 = vld [vmem:[%s426 + $0x368] sm:$0xff]
        %v2038 = vld [vmem:[%s426 + $0x370] sm:$0xff]
        %v2039 = vld [vmem:[%s426 + $0x378] sm:$0xff]
        %v2040 = vld [vmem:[%s426 + $0x380] sm:$0xff]
        %v2041 = vld [vmem:[%s426 + $0x388] sm:$0xff]
        %v2042 = vld [vmem:[%s426 + $0x390] sm:$0xff]
        %v2043 = vld [vmem:[%s426 + $0x398] sm:$0xff]
        %v2044 = vld [vmem:[%s426 + $0x3a0] sm:$0xff]
        %v2045 = vld [vmem:[%s426 + $0x3a8] sm:$0xff]
        %v2046 = vld [vmem:[%s426 + $0x3b0] sm:$0xff]
        %v2047 = vld [vmem:[%s426 + $0x3b8] sm:$0xff]
        %v2048 = vld [vmem:[%s426 + $0x3c0] sm:$0xff]
        %v2049 = vld [vmem:[%s426 + $0x3c8] sm:$0xff]
        %v2050 = vld [vmem:[%s426 + $0x3d0] sm:$0xff]
        %v2051 = vld [vmem:[%s426 + $0x3d8] sm:$0xff]
        %v2052 = vld [vmem:[%s426 + $0x3e0] sm:$0xff]
        %v2053 = vld [vmem:[%s426 + $0x3e8] sm:$0xff]
        %v2054 = vld [vmem:[%s426 + $0x3f0] sm:$0xff]
        %v2055 = vld [vmem:[%s426 + $0x3f8] sm:$0xff]
        %v2056 = vperm.slane %v536, 5
        %v2057 = vperm.slane %v537, 5
        %v2058 = vperm.slane %v538, 5
        %v2059 = vperm.slane %v539, 5
        %v2060 = vperm.slane %v540, 5
        %v2061 = vperm.slane %v541, 5
        %v2062 = vperm.slane %v542, 5
        %v2063 = vperm.slane %v543, 5
        %v2192 = vunpack.c.l.b16 %v1928
        %v2193 = vunpack.c.h.b16 %v1928
        %v2194 = vunpack.c.l.b16 %v1929
        %v2195 = vunpack.c.h.b16 %v1929
        %v2196 = vunpack.c.l.b16 %v1930
        %v2197 = vunpack.c.h.b16 %v1930
        %v2198 = vunpack.c.l.b16 %v1931
        %v2199 = vunpack.c.h.b16 %v1931
        %v2200 = vunpack.c.l.b16 %v1932
        %v2201 = vunpack.c.h.b16 %v1932
        %v2202 = vunpack.c.l.b16 %v1933
        %v2203 = vunpack.c.h.b16 %v1933
        %v2204 = vunpack.c.l.b16 %v1934
        %v2205 = vunpack.c.h.b16 %v1934
        %v2206 = vunpack.c.l.b16 %v1935
        %v2207 = vunpack.c.h.b16 %v1935
        %v2208 = vunpack.c.l.b16 %v1936
        %v2209 = vunpack.c.h.b16 %v1936
        %v2210 = vunpack.c.l.b16 %v1937
        %v2211 = vunpack.c.h.b16 %v1937
        %v2212 = vunpack.c.l.b16 %v1938
        %v2213 = vunpack.c.h.b16 %v1938
        %v2214 = vunpack.c.l.b16 %v1939
        %v2215 = vunpack.c.h.b16 %v1939
        %v2216 = vunpack.c.l.b16 %v1940
        %v2217 = vunpack.c.h.b16 %v1940
        %v2218 = vunpack.c.l.b16 %v1941
        %v2219 = vunpack.c.h.b16 %v1941
        %v2220 = vunpack.c.l.b16 %v1942
        %v2221 = vunpack.c.h.b16 %v1942
        %v2222 = vunpack.c.l.b16 %v1943
        %v2223 = vunpack.c.h.b16 %v1943
        %v2224 = vunpack.c.l.b16 %v1944
        %v2225 = vunpack.c.h.b16 %v1944
        %v2226 = vunpack.c.l.b16 %v1945
        %v2227 = vunpack.c.h.b16 %v1945
        %v2228 = vunpack.c.l.b16 %v1946
        %v2229 = vunpack.c.h.b16 %v1946
        %v2230 = vunpack.c.l.b16 %v1947
        %v2231 = vunpack.c.h.b16 %v1947
        %v2232 = vunpack.c.l.b16 %v1948
        %v2233 = vunpack.c.h.b16 %v1948
        %v2234 = vunpack.c.l.b16 %v1949
        %v2235 = vunpack.c.h.b16 %v1949
        %v2236 = vunpack.c.l.b16 %v1950
        %v2237 = vunpack.c.h.b16 %v1950
        %v2238 = vunpack.c.l.b16 %v1951
        %v2239 = vunpack.c.h.b16 %v1951
        %v2240 = vunpack.c.l.b16 %v1952
        %v2241 = vunpack.c.h.b16 %v1952
        %v2242 = vunpack.c.l.b16 %v1953
        %v2243 = vunpack.c.h.b16 %v1953
        %v2244 = vunpack.c.l.b16 %v1954
        %v2245 = vunpack.c.h.b16 %v1954
        %v2246 = vunpack.c.l.b16 %v1955
        %v2247 = vunpack.c.h.b16 %v1955
        %v2248 = vunpack.c.l.b16 %v1956
        %v2249 = vunpack.c.h.b16 %v1956
        %v2250 = vunpack.c.l.b16 %v1957
        %v2251 = vunpack.c.h.b16 %v1957
        %v2252 = vunpack.c.l.b16 %v1958
        %v2253 = vunpack.c.h.b16 %v1958
        %v2254 = vunpack.c.l.b16 %v1959
        %v2255 = vunpack.c.h.b16 %v1959
        %v2256 = vunpack.c.l.b16 %v1960
        %v2257 = vunpack.c.h.b16 %v1960
        %v2258 = vunpack.c.l.b16 %v1961
        %v2259 = vunpack.c.h.b16 %v1961
        %v2260 = vunpack.c.l.b16 %v1962
        %v2261 = vunpack.c.h.b16 %v1962
        %v2262 = vunpack.c.l.b16 %v1963
        %v2263 = vunpack.c.h.b16 %v1963
        %v2264 = vunpack.c.l.b16 %v1964
        %v2265 = vunpack.c.h.b16 %v1964
        %v2266 = vunpack.c.l.b16 %v1965
        %v2267 = vunpack.c.h.b16 %v1965
        %v2268 = vunpack.c.l.b16 %v1966
        %v2269 = vunpack.c.h.b16 %v1966
        %v2270 = vunpack.c.l.b16 %v1967
        %v2271 = vunpack.c.h.b16 %v1967
        %v2272 = vunpack.c.l.b16 %v1968
        %v2273 = vunpack.c.h.b16 %v1968
        %v2274 = vunpack.c.l.b16 %v1969
        %v2275 = vunpack.c.h.b16 %v1969
        %v2276 = vunpack.c.l.b16 %v1970
        %v2277 = vunpack.c.h.b16 %v1970
        %v2278 = vunpack.c.l.b16 %v1971
        %v2279 = vunpack.c.h.b16 %v1971
        %v2280 = vunpack.c.l.b16 %v1972
        %v2281 = vunpack.c.h.b16 %v1972
        %v2282 = vunpack.c.l.b16 %v1973
        %v2283 = vunpack.c.h.b16 %v1973
        %v2284 = vunpack.c.l.b16 %v1974
        %v2285 = vunpack.c.h.b16 %v1974
        %v2286 = vunpack.c.l.b16 %v1975
        %v2287 = vunpack.c.h.b16 %v1975
        %v2288 = vunpack.c.l.b16 %v1976
        %v2289 = vunpack.c.h.b16 %v1976
        %v2290 = vunpack.c.l.b16 %v1977
        %v2291 = vunpack.c.h.b16 %v1977
        %v2292 = vunpack.c.l.b16 %v1978
        %v2293 = vunpack.c.h.b16 %v1978
        %v2294 = vunpack.c.l.b16 %v1979
        %v2295 = vunpack.c.h.b16 %v1979
        %v2296 = vunpack.c.l.b16 %v1980
        %v2297 = vunpack.c.h.b16 %v1980
        %v2298 = vunpack.c.l.b16 %v1981
        %v2299 = vunpack.c.h.b16 %v1981
        %v2300 = vunpack.c.l.b16 %v1982
        %v2301 = vunpack.c.h.b16 %v1982
        %v2302 = vunpack.c.l.b16 %v1983
        %v2303 = vunpack.c.h.b16 %v1983
        %v2304 = vunpack.c.l.b16 %v1984
        %v2305 = vunpack.c.h.b16 %v1984
        %v2306 = vunpack.c.l.b16 %v1985
        %v2307 = vunpack.c.h.b16 %v1985
        %v2308 = vunpack.c.l.b16 %v1986
        %v2309 = vunpack.c.h.b16 %v1986
        %v2310 = vunpack.c.l.b16 %v1987
        %v2311 = vunpack.c.h.b16 %v1987
        %v2312 = vunpack.c.l.b16 %v1988
        %v2313 = vunpack.c.h.b16 %v1988
        %v2314 = vunpack.c.l.b16 %v1989
        %v2315 = vunpack.c.h.b16 %v1989
        %v2316 = vunpack.c.l.b16 %v1990
        %v2317 = vunpack.c.h.b16 %v1990
        %v2318 = vunpack.c.l.b16 %v1991
        %v2319 = vunpack.c.h.b16 %v1991
        %v2320 = vunpack.c.l.b16 %v1992
        %v2321 = vunpack.c.h.b16 %v1992
        %v2322 = vunpack.c.l.b16 %v1993
        %v2323 = vunpack.c.h.b16 %v1993
        %v2324 = vunpack.c.l.b16 %v1994
        %v2325 = vunpack.c.h.b16 %v1994
        %v2326 = vunpack.c.l.b16 %v1995
        %v2327 = vunpack.c.h.b16 %v1995
        %v2328 = vunpack.c.l.b16 %v1996
        %v2329 = vunpack.c.h.b16 %v1996
        %v2330 = vunpack.c.l.b16 %v1997
        %v2331 = vunpack.c.h.b16 %v1997
        %v2332 = vunpack.c.l.b16 %v1998
        %v2333 = vunpack.c.h.b16 %v1998
        %v2334 = vunpack.c.l.b16 %v1999
        %v2335 = vunpack.c.h.b16 %v1999
        %v2336 = vunpack.c.l.b16 %v2000
        %v2337 = vunpack.c.h.b16 %v2000
        %v2338 = vunpack.c.l.b16 %v2001
        %v2339 = vunpack.c.h.b16 %v2001
        %v2340 = vunpack.c.l.b16 %v2002
        %v2341 = vunpack.c.h.b16 %v2002
        %v2342 = vunpack.c.l.b16 %v2003
        %v2343 = vunpack.c.h.b16 %v2003
        %v2344 = vunpack.c.l.b16 %v2004
        %v2345 = vunpack.c.h.b16 %v2004
        %v2346 = vunpack.c.l.b16 %v2005
        %v2347 = vunpack.c.h.b16 %v2005
        %v2348 = vunpack.c.l.b16 %v2006
        %v2349 = vunpack.c.h.b16 %v2006
        %v2350 = vunpack.c.l.b16 %v2007
        %v2351 = vunpack.c.h.b16 %v2007
        %v2352 = vunpack.c.l.b16 %v2008
        %v2353 = vunpack.c.h.b16 %v2008
        %v2354 = vunpack.c.l.b16 %v2009
        %v2355 = vunpack.c.h.b16 %v2009
        %v2356 = vunpack.c.l.b16 %v2010
        %v2357 = vunpack.c.h.b16 %v2010
        %v2358 = vunpack.c.l.b16 %v2011
        %v2359 = vunpack.c.h.b16 %v2011
        %v2360 = vunpack.c.l.b16 %v2012
        %v2361 = vunpack.c.h.b16 %v2012
        %v2362 = vunpack.c.l.b16 %v2013
        %v2363 = vunpack.c.h.b16 %v2013
        %v2364 = vunpack.c.l.b16 %v2014
        %v2365 = vunpack.c.h.b16 %v2014
        %v2366 = vunpack.c.l.b16 %v2015
        %v2367 = vunpack.c.h.b16 %v2015
        %v2368 = vunpack.c.l.b16 %v2016
        %v2369 = vunpack.c.h.b16 %v2016
        %v2370 = vunpack.c.l.b16 %v2017
        %v2371 = vunpack.c.h.b16 %v2017
        %v2372 = vunpack.c.l.b16 %v2018
        %v2373 = vunpack.c.h.b16 %v2018
        %v2374 = vunpack.c.l.b16 %v2019
        %v2375 = vunpack.c.h.b16 %v2019
        %v2376 = vunpack.c.l.b16 %v2020
        %v2377 = vunpack.c.h.b16 %v2020
        %v2378 = vunpack.c.l.b16 %v2021
        %v2379 = vunpack.c.h.b16 %v2021
        %v2380 = vunpack.c.l.b16 %v2022
        %v2381 = vunpack.c.h.b16 %v2022
        %v2382 = vunpack.c.l.b16 %v2023
        %v2383 = vunpack.c.h.b16 %v2023
        %v2384 = vunpack.c.l.b16 %v2024
        %v2385 = vunpack.c.h.b16 %v2024
        %v2386 = vunpack.c.l.b16 %v2025
        %v2387 = vunpack.c.h.b16 %v2025
        %v2388 = vunpack.c.l.b16 %v2026
        %v2389 = vunpack.c.h.b16 %v2026
        %v2390 = vunpack.c.l.b16 %v2027
        %v2391 = vunpack.c.h.b16 %v2027
        %v2392 = vunpack.c.l.b16 %v2028
        %v2393 = vunpack.c.h.b16 %v2028
        %v2394 = vunpack.c.l.b16 %v2029
        %v2395 = vunpack.c.h.b16 %v2029
        %v2396 = vunpack.c.l.b16 %v2030
        %v2397 = vunpack.c.h.b16 %v2030
        %v2398 = vunpack.c.l.b16 %v2031
        %v2399 = vunpack.c.h.b16 %v2031
        %v2400 = vunpack.c.l.b16 %v2032
        %v2401 = vunpack.c.h.b16 %v2032
        %v2402 = vunpack.c.l.b16 %v2033
        %v2403 = vunpack.c.h.b16 %v2033
        %v2404 = vunpack.c.l.b16 %v2034
        %v2405 = vunpack.c.h.b16 %v2034
        %v2406 = vunpack.c.l.b16 %v2035
        %v2407 = vunpack.c.h.b16 %v2035
        %v2408 = vunpack.c.l.b16 %v2036
        %v2409 = vunpack.c.h.b16 %v2036
        %v2410 = vunpack.c.l.b16 %v2037
        %v2411 = vunpack.c.h.b16 %v2037
        %v2412 = vunpack.c.l.b16 %v2038
        %v2413 = vunpack.c.h.b16 %v2038
        %v2414 = vunpack.c.l.b16 %v2039
        %v2415 = vunpack.c.h.b16 %v2039
        %v2416 = vunpack.c.l.b16 %v2040
        %v2417 = vunpack.c.h.b16 %v2040
        %v2418 = vunpack.c.l.b16 %v2041
        %v2419 = vunpack.c.h.b16 %v2041
        %v2420 = vunpack.c.l.b16 %v2042
        %v2421 = vunpack.c.h.b16 %v2042
        %v2422 = vunpack.c.l.b16 %v2043
        %v2423 = vunpack.c.h.b16 %v2043
        %v2424 = vunpack.c.l.b16 %v2044
        %v2425 = vunpack.c.h.b16 %v2044
        %v2426 = vunpack.c.l.b16 %v2045
        %v2427 = vunpack.c.h.b16 %v2045
        %v2428 = vunpack.c.l.b16 %v2046
        %v2429 = vunpack.c.h.b16 %v2046
        %v2430 = vunpack.c.l.b16 %v2047
        %v2431 = vunpack.c.h.b16 %v2047
        %v2432 = vunpack.c.l.b16 %v2048
        %v2433 = vunpack.c.h.b16 %v2048
        %v2434 = vunpack.c.l.b16 %v2049
        %v2435 = vunpack.c.h.b16 %v2049
        %v2436 = vunpack.c.l.b16 %v2050
        %v2437 = vunpack.c.h.b16 %v2050
        %v2438 = vunpack.c.l.b16 %v2051
        %v2439 = vunpack.c.h.b16 %v2051
        %v2440 = vunpack.c.l.b16 %v2052
        %v2441 = vunpack.c.h.b16 %v2052
        %v2442 = vunpack.c.l.b16 %v2053
        %v2443 = vunpack.c.h.b16 %v2053
        %v2444 = vunpack.c.l.b16 %v2054
        %v2445 = vunpack.c.h.b16 %v2054
        %v2446 = vunpack.c.l.b16 %v2055
        %v2447 = vunpack.c.h.b16 %v2055
        %v2448 = vpack.c.b16 %v2200, %v2192
        %v2449 = vpack.c.b16 %v2201, %v2193
        %v2450 = vpack.c.b16 %v2202, %v2194
        %v2451 = vpack.c.b16 %v2203, %v2195
        %v2452 = vpack.c.b16 %v2204, %v2196
        %v2453 = vpack.c.b16 %v2205, %v2197
        %v2454 = vpack.c.b16 %v2206, %v2198
        %v2455 = vpack.c.b16 %v2207, %v2199
        %v2456 = vpack.c.b16 %v2216, %v2208
        %v2457 = vpack.c.b16 %v2217, %v2209
        %v2458 = vpack.c.b16 %v2218, %v2210
        %v2459 = vpack.c.b16 %v2219, %v2211
        %v2460 = vpack.c.b16 %v2220, %v2212
        %v2461 = vpack.c.b16 %v2221, %v2213
        %v2462 = vpack.c.b16 %v2222, %v2214
        %v2463 = vpack.c.b16 %v2223, %v2215
        %v2464 = vpack.c.b16 %v2232, %v2224
        %v2465 = vpack.c.b16 %v2233, %v2225
        %v2466 = vpack.c.b16 %v2234, %v2226
        %v2467 = vpack.c.b16 %v2235, %v2227
        %v2468 = vpack.c.b16 %v2236, %v2228
        %v2469 = vpack.c.b16 %v2237, %v2229
        %v2470 = vpack.c.b16 %v2238, %v2230
        %v2471 = vpack.c.b16 %v2239, %v2231
        %v2472 = vpack.c.b16 %v2248, %v2240
        %v2473 = vpack.c.b16 %v2249, %v2241
        %v2474 = vpack.c.b16 %v2250, %v2242
        %v2475 = vpack.c.b16 %v2251, %v2243
        %v2476 = vpack.c.b16 %v2252, %v2244
        %v2477 = vpack.c.b16 %v2253, %v2245
        %v2478 = vpack.c.b16 %v2254, %v2246
        %v2479 = vpack.c.b16 %v2255, %v2247
        %v2480 = vpack.c.b16 %v2264, %v2256
        %v2481 = vpack.c.b16 %v2265, %v2257
        %v2482 = vpack.c.b16 %v2266, %v2258
        %v2483 = vpack.c.b16 %v2267, %v2259
        %v2484 = vpack.c.b16 %v2268, %v2260
        %v2485 = vpack.c.b16 %v2269, %v2261
        %v2486 = vpack.c.b16 %v2270, %v2262
        %v2487 = vpack.c.b16 %v2271, %v2263
        %v2488 = vpack.c.b16 %v2280, %v2272
        %v2489 = vpack.c.b16 %v2281, %v2273
        %v2490 = vpack.c.b16 %v2282, %v2274
        %v2491 = vpack.c.b16 %v2283, %v2275
        %v2492 = vpack.c.b16 %v2284, %v2276
        %v2493 = vpack.c.b16 %v2285, %v2277
        %v2494 = vpack.c.b16 %v2286, %v2278
        %v2495 = vpack.c.b16 %v2287, %v2279
        %v2496 = vpack.c.b16 %v2296, %v2288
        %v2497 = vpack.c.b16 %v2297, %v2289
        %v2498 = vpack.c.b16 %v2298, %v2290
        %v2499 = vpack.c.b16 %v2299, %v2291
        %v2500 = vpack.c.b16 %v2300, %v2292
        %v2501 = vpack.c.b16 %v2301, %v2293
        %v2502 = vpack.c.b16 %v2302, %v2294
        %v2503 = vpack.c.b16 %v2303, %v2295
        %v2504 = vpack.c.b16 %v2312, %v2304
        %v2505 = vpack.c.b16 %v2313, %v2305
        %v2506 = vpack.c.b16 %v2314, %v2306
        %v2507 = vpack.c.b16 %v2315, %v2307
        %v2508 = vpack.c.b16 %v2316, %v2308
        %v2509 = vpack.c.b16 %v2317, %v2309
        %v2510 = vpack.c.b16 %v2318, %v2310
        %v2511 = vpack.c.b16 %v2319, %v2311
        %v2512 = vpack.c.b16 %v2328, %v2320
        %v2513 = vpack.c.b16 %v2329, %v2321
        %v2514 = vpack.c.b16 %v2330, %v2322
        %v2515 = vpack.c.b16 %v2331, %v2323
        %v2516 = vpack.c.b16 %v2332, %v2324
        %v2517 = vpack.c.b16 %v2333, %v2325
        %v2518 = vpack.c.b16 %v2334, %v2326
        %v2519 = vpack.c.b16 %v2335, %v2327
        %v2520 = vpack.c.b16 %v2344, %v2336
        %v2521 = vpack.c.b16 %v2345, %v2337
        %v2522 = vpack.c.b16 %v2346, %v2338
        %v2523 = vpack.c.b16 %v2347, %v2339
        %v2524 = vpack.c.b16 %v2348, %v2340
        %v2525 = vpack.c.b16 %v2349, %v2341
        %v2526 = vpack.c.b16 %v2350, %v2342
        %v2527 = vpack.c.b16 %v2351, %v2343
        %v2528 = vpack.c.b16 %v2360, %v2352
        %v2529 = vpack.c.b16 %v2361, %v2353
        %v2530 = vpack.c.b16 %v2362, %v2354
        %v2531 = vpack.c.b16 %v2363, %v2355
        %v2532 = vpack.c.b16 %v2364, %v2356
        %v2533 = vpack.c.b16 %v2365, %v2357
        %v2534 = vpack.c.b16 %v2366, %v2358
        %v2535 = vpack.c.b16 %v2367, %v2359
        %v2536 = vpack.c.b16 %v2376, %v2368
        %v2537 = vpack.c.b16 %v2377, %v2369
        %v2538 = vpack.c.b16 %v2378, %v2370
        %v2539 = vpack.c.b16 %v2379, %v2371
        %v2540 = vpack.c.b16 %v2380, %v2372
        %v2541 = vpack.c.b16 %v2381, %v2373
        %v2542 = vpack.c.b16 %v2382, %v2374
        %v2543 = vpack.c.b16 %v2383, %v2375
        %v2544 = vpack.c.b16 %v2392, %v2384
        %v2545 = vpack.c.b16 %v2393, %v2385
        %v2546 = vpack.c.b16 %v2394, %v2386
        %v2547 = vpack.c.b16 %v2395, %v2387
        %v2548 = vpack.c.b16 %v2396, %v2388
        %v2549 = vpack.c.b16 %v2397, %v2389
        %v2550 = vpack.c.b16 %v2398, %v2390
        %v2551 = vpack.c.b16 %v2399, %v2391
        %v2552 = vpack.c.b16 %v2408, %v2400
        %v2553 = vpack.c.b16 %v2409, %v2401
        %v2554 = vpack.c.b16 %v2410, %v2402
        %v2555 = vpack.c.b16 %v2411, %v2403
        %v2556 = vpack.c.b16 %v2412, %v2404
        %v2557 = vpack.c.b16 %v2413, %v2405
        %v2558 = vpack.c.b16 %v2414, %v2406
        %v2559 = vpack.c.b16 %v2415, %v2407
        %v2560 = vpack.c.b16 %v2424, %v2416
        %v2561 = vpack.c.b16 %v2425, %v2417
        %v2562 = vpack.c.b16 %v2426, %v2418
        %v2563 = vpack.c.b16 %v2427, %v2419
        %v2564 = vpack.c.b16 %v2428, %v2420
        %v2565 = vpack.c.b16 %v2429, %v2421
        %v2566 = vpack.c.b16 %v2430, %v2422
        %v2567 = vpack.c.b16 %v2431, %v2423
        %v2568 = vpack.c.b16 %v2440, %v2432
        %v2569 = vpack.c.b16 %v2441, %v2433
        %v2570 = vpack.c.b16 %v2442, %v2434
        %v2571 = vpack.c.b16 %v2443, %v2435
        %v2572 = vpack.c.b16 %v2444, %v2436
        %v2573 = vpack.c.b16 %v2445, %v2437
        %v2574 = vpack.c.b16 %v2446, %v2438
        %v2575 = vpack.c.b16 %v2447, %v2439
        %2704 = vmatpush.bf16.msra.mxu0 %v2504
        %2705 = vmatpush.bf16.msra.mxu0 %v2496
        %2706 = vmatpush.bf16.msra.mxu0 %v2488
        %2707 = vmatpush.bf16.msra.mxu0 %v2480
        %2708 = vmatpush.bf16.msra.mxu0 %v2472
        %2709 = vmatpush.bf16.msra.mxu0 %v2464
        %2710 = vmatpush.bf16.msra.mxu0 %v2456
        %2711 = vmatpush.bf16.msra.mxu0 %v2448
        %2712 = vmatmul.bf16.gmra.mxu0 %v1926
        %v2713 = vpop.f32.mrf.mxu0
        %v2714 = vadd.f32 %v2056, %v2713
        %v2715 = vpop.f32.mrf.mxu0
        %2716 = vdwg.mxu0
        %2717 = vmatpush.bf16.msra.mxu0 %v2568
        %2718 = vmatpush.bf16.msra.mxu0 %v2560
        %2719 = vmatpush.bf16.msra.mxu0 %v2552
        %2720 = vmatpush.bf16.msra.mxu0 %v2544
        %2721 = vmatpush.bf16.msra.mxu0 %v2536
        %2722 = vmatpush.bf16.msra.mxu0 %v2528
        %2723 = vmatpush.bf16.msra.mxu0 %v2520
        %2724 = vmatpush.bf16.msra.mxu0 %v2512
        %2725 = vmatmul.bf16.gmra.mxu0 %v1927
        %v2726 = vpop.f32.mrf.mxu0
        %v2727 = vadd.f32 %v2714, %v2726
        %v2728 = vpop.f32.mrf.mxu0
        %2729 = vdwg.mxu0
        %2730 = vmatpush.bf16.msra.mxu0 %v2505
        %2731 = vmatpush.bf16.msra.mxu0 %v2497
        %2732 = vmatpush.bf16.msra.mxu0 %v2489
        %2733 = vmatpush.bf16.msra.mxu0 %v2481
        %2734 = vmatpush.bf16.msra.mxu0 %v2473
        %2735 = vmatpush.bf16.msra.mxu0 %v2465
        %2736 = vmatpush.bf16.msra.mxu0 %v2457
        %2737 = vmatpush.bf16.msra.mxu0 %v2449
        %2738 = vmatmul.bf16.gmra.mxu0 %v1926
        %v2739 = vpop.f32.mrf.mxu0
        %v2740 = vadd.f32 %v2057, %v2739
        %v2741 = vpop.f32.mrf.mxu0
        %2742 = vdwg.mxu0
        %2743 = vmatpush.bf16.msra.mxu0 %v2569
        %2744 = vmatpush.bf16.msra.mxu0 %v2561
        %2745 = vmatpush.bf16.msra.mxu0 %v2553
        %2746 = vmatpush.bf16.msra.mxu0 %v2545
        %2747 = vmatpush.bf16.msra.mxu0 %v2537
        %2748 = vmatpush.bf16.msra.mxu0 %v2529
        %2749 = vmatpush.bf16.msra.mxu0 %v2521
        %2750 = vmatpush.bf16.msra.mxu0 %v2513
        %2751 = vmatmul.bf16.gmra.mxu0 %v1927
        %v2752 = vpop.f32.mrf.mxu0
        %v2753 = vadd.f32 %v2740, %v2752
        %v2754 = vpop.f32.mrf.mxu0
        %2755 = vdwg.mxu0
        %2756 = vmatpush.bf16.msra.mxu0 %v2506
        %2757 = vmatpush.bf16.msra.mxu0 %v2498
        %2758 = vmatpush.bf16.msra.mxu0 %v2490
        %2759 = vmatpush.bf16.msra.mxu0 %v2482
        %2760 = vmatpush.bf16.msra.mxu0 %v2474
        %2761 = vmatpush.bf16.msra.mxu0 %v2466
        %2762 = vmatpush.bf16.msra.mxu0 %v2458
        %2763 = vmatpush.bf16.msra.mxu0 %v2450
        %2764 = vmatmul.bf16.gmra.mxu0 %v1926
        %v2765 = vpop.f32.mrf.mxu0
        %v2766 = vadd.f32 %v2058, %v2765
        %v2767 = vpop.f32.mrf.mxu0
        %2768 = vdwg.mxu0
        %2769 = vmatpush.bf16.msra.mxu0 %v2570
        %2770 = vmatpush.bf16.msra.mxu0 %v2562
        %2771 = vmatpush.bf16.msra.mxu0 %v2554
        %2772 = vmatpush.bf16.msra.mxu0 %v2546
        %2773 = vmatpush.bf16.msra.mxu0 %v2538
        %2774 = vmatpush.bf16.msra.mxu0 %v2530
        %2775 = vmatpush.bf16.msra.mxu0 %v2522
        %2776 = vmatpush.bf16.msra.mxu0 %v2514
        %2777 = vmatmul.bf16.gmra.mxu0 %v1927
        %v2778 = vpop.f32.mrf.mxu0
        %v2779 = vadd.f32 %v2766, %v2778
        %v2780 = vpop.f32.mrf.mxu0
        %2781 = vdwg.mxu0
        %2782 = vmatpush.bf16.msra.mxu0 %v2507
        %2783 = vmatpush.bf16.msra.mxu0 %v2499
        %2784 = vmatpush.bf16.msra.mxu0 %v2491
        %2785 = vmatpush.bf16.msra.mxu0 %v2483
        %2786 = vmatpush.bf16.msra.mxu0 %v2475
        %2787 = vmatpush.bf16.msra.mxu0 %v2467
        %2788 = vmatpush.bf16.msra.mxu0 %v2459
        %2789 = vmatpush.bf16.msra.mxu0 %v2451
        %2790 = vmatmul.bf16.gmra.mxu0 %v1926
        %v2791 = vpop.f32.mrf.mxu0
        %v2792 = vadd.f32 %v2059, %v2791
        %v2793 = vpop.f32.mrf.mxu0
        %2794 = vdwg.mxu0
        %2795 = vmatpush.bf16.msra.mxu0 %v2571
        %2796 = vmatpush.bf16.msra.mxu0 %v2563
        %2797 = vmatpush.bf16.msra.mxu0 %v2555
        %2798 = vmatpush.bf16.msra.mxu0 %v2547
        %2799 = vmatpush.bf16.msra.mxu0 %v2539
        %2800 = vmatpush.bf16.msra.mxu0 %v2531
        %2801 = vmatpush.bf16.msra.mxu0 %v2523
        %2802 = vmatpush.bf16.msra.mxu0 %v2515
        %2803 = vmatmul.bf16.gmra.mxu0 %v1927
        %v2804 = vpop.f32.mrf.mxu0
        %v2805 = vadd.f32 %v2792, %v2804
        %v2806 = vpop.f32.mrf.mxu0
        %2807 = vdwg.mxu0
        %2808 = vmatpush.bf16.msra.mxu0 %v2508
        %2809 = vmatpush.bf16.msra.mxu0 %v2500
        %2810 = vmatpush.bf16.msra.mxu0 %v2492
        %2811 = vmatpush.bf16.msra.mxu0 %v2484
        %2812 = vmatpush.bf16.msra.mxu0 %v2476
        %2813 = vmatpush.bf16.msra.mxu0 %v2468
        %2814 = vmatpush.bf16.msra.mxu0 %v2460
        %2815 = vmatpush.bf16.msra.mxu0 %v2452
        %2816 = vmatmul.bf16.gmra.mxu0 %v1926
        %v2817 = vpop.f32.mrf.mxu0
        %v2818 = vadd.f32 %v2060, %v2817
        %v2819 = vpop.f32.mrf.mxu0
        %2820 = vdwg.mxu0
        %2821 = vmatpush.bf16.msra.mxu0 %v2572
        %2822 = vmatpush.bf16.msra.mxu0 %v2564
        %2823 = vmatpush.bf16.msra.mxu0 %v2556
        %2824 = vmatpush.bf16.msra.mxu0 %v2548
        %2825 = vmatpush.bf16.msra.mxu0 %v2540
        %2826 = vmatpush.bf16.msra.mxu0 %v2532
        %2827 = vmatpush.bf16.msra.mxu0 %v2524
        %2828 = vmatpush.bf16.msra.mxu0 %v2516
        %2829 = vmatmul.bf16.gmra.mxu0 %v1927
        %v2830 = vpop.f32.mrf.mxu0
        %v2831 = vadd.f32 %v2818, %v2830
        %v2832 = vpop.f32.mrf.mxu0
        %2833 = vdwg.mxu0
        %2834 = vmatpush.bf16.msra.mxu0 %v2509
        %2835 = vmatpush.bf16.msra.mxu0 %v2501
        %2836 = vmatpush.bf16.msra.mxu0 %v2493
        %2837 = vmatpush.bf16.msra.mxu0 %v2485
        %2838 = vmatpush.bf16.msra.mxu0 %v2477
        %2839 = vmatpush.bf16.msra.mxu0 %v2469
        %2840 = vmatpush.bf16.msra.mxu0 %v2461
        %2841 = vmatpush.bf16.msra.mxu0 %v2453
        %2842 = vmatmul.bf16.gmra.mxu0 %v1926
        %v2843 = vpop.f32.mrf.mxu0
        %v2844 = vadd.f32 %v2061, %v2843
        %v2845 = vpop.f32.mrf.mxu0
        %2846 = vdwg.mxu0
        %2847 = vmatpush.bf16.msra.mxu0 %v2573
        %2848 = vmatpush.bf16.msra.mxu0 %v2565
        %2849 = vmatpush.bf16.msra.mxu0 %v2557
        %2850 = vmatpush.bf16.msra.mxu0 %v2549
        %2851 = vmatpush.bf16.msra.mxu0 %v2541
        %2852 = vmatpush.bf16.msra.mxu0 %v2533
        %2853 = vmatpush.bf16.msra.mxu0 %v2525
        %2854 = vmatpush.bf16.msra.mxu0 %v2517
        %2855 = vmatmul.bf16.gmra.mxu0 %v1927
        %v2856 = vpop.f32.mrf.mxu0
        %v2857 = vadd.f32 %v2844, %v2856
        %v2858 = vpop.f32.mrf.mxu0
        %2859 = vdwg.mxu0
        %2860 = vmatpush.bf16.msra.mxu0 %v2510
        %2861 = vmatpush.bf16.msra.mxu0 %v2502
        %2862 = vmatpush.bf16.msra.mxu0 %v2494
        %2863 = vmatpush.bf16.msra.mxu0 %v2486
        %2864 = vmatpush.bf16.msra.mxu0 %v2478
        %2865 = vmatpush.bf16.msra.mxu0 %v2470
        %2866 = vmatpush.bf16.msra.mxu0 %v2462
        %2867 = vmatpush.bf16.msra.mxu0 %v2454
        %2868 = vmatmul.bf16.gmra.mxu0 %v1926
        %v2869 = vpop.f32.mrf.mxu0
        %v2870 = vadd.f32 %v2062, %v2869
        %v2871 = vpop.f32.mrf.mxu0
        %2872 = vdwg.mxu0
        %2873 = vmatpush.bf16.msra.mxu0 %v2574
        %2874 = vmatpush.bf16.msra.mxu0 %v2566
        %2875 = vmatpush.bf16.msra.mxu0 %v2558
        %2876 = vmatpush.bf16.msra.mxu0 %v2550
        %2877 = vmatpush.bf16.msra.mxu0 %v2542
        %2878 = vmatpush.bf16.msra.mxu0 %v2534
        %2879 = vmatpush.bf16.msra.mxu0 %v2526
        %2880 = vmatpush.bf16.msra.mxu0 %v2518
        %2881 = vmatmul.bf16.gmra.mxu0 %v1927
        %v2882 = vpop.f32.mrf.mxu0
        %v2883 = vadd.f32 %v2870, %v2882
        %v2884 = vpop.f32.mrf.mxu0
        %2885 = vdwg.mxu0
        %2886 = vmatpush.bf16.msra.mxu0 %v2511
        %2887 = vmatpush.bf16.msra.mxu0 %v2503
        %2888 = vmatpush.bf16.msra.mxu0 %v2495
        %2889 = vmatpush.bf16.msra.mxu0 %v2487
        %2890 = vmatpush.bf16.msra.mxu0 %v2479
        %2891 = vmatpush.bf16.msra.mxu0 %v2471
        %2892 = vmatpush.bf16.msra.mxu0 %v2463
        %2893 = vmatpush.bf16.msra.mxu0 %v2455
        %2894 = vmatmul.bf16.gmra.mxu0 %v1926
        %v2895 = vpop.f32.mrf.mxu0
        %v2896 = vadd.f32 %v2063, %v2895
        %v2897 = vpop.f32.mrf.mxu0
        %2898 = vdwg.mxu0
        %2899 = vmatpush.bf16.msra.mxu0 %v2575
        %2900 = vmatpush.bf16.msra.mxu0 %v2567
        %2901 = vmatpush.bf16.msra.mxu0 %v2559
        %2902 = vmatpush.bf16.msra.mxu0 %v2551
        %2903 = vmatpush.bf16.msra.mxu0 %v2543
        %2904 = vmatpush.bf16.msra.mxu0 %v2535
        %2905 = vmatpush.bf16.msra.mxu0 %v2527
        %2906 = vmatpush.bf16.msra.mxu0 %v2519
        %2907 = vmatmul.bf16.gmra.mxu0 %v1927
        %v2908 = vpop.f32.mrf.mxu0
        %v2909 = vadd.f32 %v2896, %v2908
        %v2910 = vpop.f32.mrf.mxu0
        %2911 = vdwg.mxu0
        %v2912 = vmul.f32 %v2727, 0.5
        %v2913 = vmul.f32 %v2753, 0.5
        %v2914 = vmul.f32 %v2779, 0.5
        %v2915 = vmul.f32 %v2805, 0.5
        %v2916 = vmul.f32 %v2831, 0.5
        %v2917 = vmul.f32 %v2857, 0.5
        %v2918 = vmul.f32 %v2883, 0.5
        %v2919 = vmul.f32 %v2909, 0.5
        %v2920 = vmul.f32 %v2727, 0.70710677
        %v2921 = vmul.f32 %v2753, 0.70710677
        %v2922 = vmul.f32 %v2779, 0.70710677
        %v2923 = vmul.f32 %v2805, 0.70710677
        %v2924 = vmul.f32 %v2831, 0.70710677
        %v2925 = vmul.f32 %v2857, 0.70710677
        %v2926 = vmul.f32 %v2883, 0.70710677
        %v2927 = vmul.f32 %v2909, 0.70710677
        %v2928 = vmul.f32 %v2920, %v2920
        %v2929 = vmin.f32 16.0, %v2928
        %v2930 = vmul.f32 %v2929, 2.1237322e-06
        %v2931 = vadd.f32 %v2930, 0.00028619796
        %v2932 = vmul.f32 %v2929, %v2931
        %v2933 = vadd.f32 %v2932, 0.0036580483
        %v2934 = vmul.f32 %v2929, %v2933
        %v2935 = vadd.f32 %v2934, 0.05243302
        %v2936 = vmul.f32 %v2929, %v2935
        %v2937 = vadd.f32 %v2936, 0.18741608
        %v2938 = vmul.f32 %v2929, %v2937
        %v2939 = vadd.f32 %v2938, 1.1283791
        %v2940 = vmul.f32 %v2920, %v2939
        %v2941 = vmul.f32 %v2929, 3.8918573e-05
        %v2942 = vadd.f32 %v2941, 0.001143296
        %v2943 = vmul.f32 %v2929, %v2942
        %v2944 = vadd.f32 %v2943, 0.014752088
        %v2945 = vmul.f32 %v2929, %v2944
        %v2946 = vadd.f32 %v2945, 0.112945676
        %v2947 = vmul.f32 %v2929, %v2946
        %v2948 = vadd.f32 %v2947, 0.4994258
        %v2949 = vmul.f32 %v2929, %v2948
        %v2950 = vadd.f32 %v2949, 1.0
        %v2951 = vrcp.pop %v2950
        %v2952 = vmul.f32 %v2950, %v2951
        %v2953 = vsub.f32 1.0, %v2952
        %v2954 = vmul.f32 %v2951, %v2953
        %v2955 = vadd.f32 %v2951, %v2954
        %vm2956 = vweird.f32 %v2950
        %vm2957 = vweird.f32 %v2951
        %vm2958 = vmor %vm2956, %vm2957
        %v2959 = vsel %vm2958, %v2951, %v2955
        %v2960 = vand.u32 2147483647, %v2950
        %vm2961 = vcmp.eq.f32.partialorder %v2960, 8.507059e+37
        %v2962 = vand.u32 %v2950, 2147483648
        %v2963 = vor.u32 1.1754944e-38, %v2962
        %v2964 = vsel %vm2961, %v2963, %v2959
        %v2965 = vmul.f32 %v2940, %v2964
        %v2966 = vmin.f32 %v2965, 1.0
        %v2967 = vmax.f32 %v2966, -1.0
        %v2968 = vmul.f32 %v2921, %v2921
        %v2969 = vmin.f32 16.0, %v2968
        %v2970 = vmul.f32 %v2969, 2.1237322e-06
        %v2971 = vadd.f32 %v2970, 0.00028619796
        %v2972 = vmul.f32 %v2969, %v2971
        %v2973 = vadd.f32 %v2972, 0.0036580483
        %v2974 = vmul.f32 %v2969, %v2973
        %v2975 = vadd.f32 %v2974, 0.05243302
        %v2976 = vmul.f32 %v2969, %v2975
        %v2977 = vadd.f32 %v2976, 0.18741608
        %v2978 = vmul.f32 %v2969, %v2977
        %v2979 = vadd.f32 %v2978, 1.1283791
        %v2980 = vmul.f32 %v2921, %v2979
        %v2981 = vmul.f32 %v2969, 3.8918573e-05
        %v2982 = vadd.f32 %v2981, 0.001143296
        %v2983 = vmul.f32 %v2969, %v2982
        %v2984 = vadd.f32 %v2983, 0.014752088
        %v2985 = vmul.f32 %v2969, %v2984
        %v2986 = vadd.f32 %v2985, 0.112945676
        %v2987 = vmul.f32 %v2969, %v2986
        %v2988 = vadd.f32 %v2987, 0.4994258
        %v2989 = vmul.f32 %v2969, %v2988
        %v2990 = vadd.f32 %v2989, 1.0
        %v2991 = vrcp.pop %v2990
        %v2992 = vmul.f32 %v2990, %v2991
        %v2993 = vsub.f32 1.0, %v2992
        %v2994 = vmul.f32 %v2991, %v2993
        %v2995 = vadd.f32 %v2991, %v2994
        %vm2996 = vweird.f32 %v2990
        %vm2997 = vweird.f32 %v2991
        %vm2998 = vmor %vm2996, %vm2997
        %v2999 = vsel %vm2998, %v2991, %v2995
        %v3000 = vand.u32 2147483647, %v2990
        %vm3001 = vcmp.eq.f32.partialorder %v3000, 8.507059e+37
        %v3002 = vand.u32 %v2990, 2147483648
        %v3003 = vor.u32 1.1754944e-38, %v3002
        %v3004 = vsel %vm3001, %v3003, %v2999
        %v3005 = vmul.f32 %v2980, %v3004
        %v3006 = vmin.f32 %v3005, 1.0
        %v3007 = vmax.f32 %v3006, -1.0
        %v3008 = vmul.f32 %v2922, %v2922
        %v3009 = vmin.f32 16.0, %v3008
        %v3010 = vmul.f32 %v3009, 2.1237322e-06
        %v3011 = vadd.f32 %v3010, 0.00028619796
        %v3012 = vmul.f32 %v3009, %v3011
        %v3013 = vadd.f32 %v3012, 0.0036580483
        %v3014 = vmul.f32 %v3009, %v3013
        %v3015 = vadd.f32 %v3014, 0.05243302
        %v3016 = vmul.f32 %v3009, %v3015
        %v3017 = vadd.f32 %v3016, 0.18741608
        %v3018 = vmul.f32 %v3009, %v3017
        %v3019 = vadd.f32 %v3018, 1.1283791
        %v3020 = vmul.f32 %v2922, %v3019
        %v3021 = vmul.f32 %v3009, 3.8918573e-05
        %v3022 = vadd.f32 %v3021, 0.001143296
        %v3023 = vmul.f32 %v3009, %v3022
        %v3024 = vadd.f32 %v3023, 0.014752088
        %v3025 = vmul.f32 %v3009, %v3024
        %v3026 = vadd.f32 %v3025, 0.112945676
        %v3027 = vmul.f32 %v3009, %v3026
        %v3028 = vadd.f32 %v3027, 0.4994258
        %v3029 = vmul.f32 %v3009, %v3028
        %v3030 = vadd.f32 %v3029, 1.0
        %v3031 = vrcp.pop %v3030
        %v3032 = vmul.f32 %v3030, %v3031
        %v3033 = vsub.f32 1.0, %v3032
        %v3034 = vmul.f32 %v3031, %v3033
        %v3035 = vadd.f32 %v3031, %v3034
        %vm3036 = vweird.f32 %v3030
        %vm3037 = vweird.f32 %v3031
        %vm3038 = vmor %vm3036, %vm3037
        %v3039 = vsel %vm3038, %v3031, %v3035
        %v3040 = vand.u32 2147483647, %v3030
        %vm3041 = vcmp.eq.f32.partialorder %v3040, 8.507059e+37
        %v3042 = vand.u32 %v3030, 2147483648
        %v3043 = vor.u32 1.1754944e-38, %v3042
        %v3044 = vsel %vm3041, %v3043, %v3039
        %v3045 = vmul.f32 %v3020, %v3044
        %v3046 = vmin.f32 %v3045, 1.0
        %v3047 = vmax.f32 %v3046, -1.0
        %v3048 = vmul.f32 %v2923, %v2923
        %v3049 = vmin.f32 16.0, %v3048
        %v3050 = vmul.f32 %v3049, 2.1237322e-06
        %v3051 = vadd.f32 %v3050, 0.00028619796
        %v3052 = vmul.f32 %v3049, %v3051
        %v3053 = vadd.f32 %v3052, 0.0036580483
        %v3054 = vmul.f32 %v3049, %v3053
        %v3055 = vadd.f32 %v3054, 0.05243302
        %v3056 = vmul.f32 %v3049, %v3055
        %v3057 = vadd.f32 %v3056, 0.18741608
        %v3058 = vmul.f32 %v3049, %v3057
        %v3059 = vadd.f32 %v3058, 1.1283791
        %v3060 = vmul.f32 %v2923, %v3059
        %v3061 = vmul.f32 %v3049, 3.8918573e-05
        %v3062 = vadd.f32 %v3061, 0.001143296
        %v3063 = vmul.f32 %v3049, %v3062
        %v3064 = vadd.f32 %v3063, 0.014752088
        %v3065 = vmul.f32 %v3049, %v3064
        %v3066 = vadd.f32 %v3065, 0.112945676
        %v3067 = vmul.f32 %v3049, %v3066
        %v3068 = vadd.f32 %v3067, 0.4994258
        %v3069 = vmul.f32 %v3049, %v3068
        %v3070 = vadd.f32 %v3069, 1.0
        %v3071 = vrcp.pop %v3070
        %v3072 = vmul.f32 %v3070, %v3071
        %v3073 = vsub.f32 1.0, %v3072
        %v3074 = vmul.f32 %v3071, %v3073
        %v3075 = vadd.f32 %v3071, %v3074
        %vm3076 = vweird.f32 %v3070
        %vm3077 = vweird.f32 %v3071
        %vm3078 = vmor %vm3076, %vm3077
        %v3079 = vsel %vm3078, %v3071, %v3075
        %v3080 = vand.u32 2147483647, %v3070
        %vm3081 = vcmp.eq.f32.partialorder %v3080, 8.507059e+37
        %v3082 = vand.u32 %v3070, 2147483648
        %v3083 = vor.u32 1.1754944e-38, %v3082
        %v3084 = vsel %vm3081, %v3083, %v3079
        %v3085 = vmul.f32 %v3060, %v3084
        %v3086 = vmin.f32 %v3085, 1.0
        %v3087 = vmax.f32 %v3086, -1.0
        %v3088 = vmul.f32 %v2924, %v2924
        %v3089 = vmin.f32 16.0, %v3088
        %v3090 = vmul.f32 %v3089, 2.1237322e-06
        %v3091 = vadd.f32 %v3090, 0.00028619796
        %v3092 = vmul.f32 %v3089, %v3091
        %v3093 = vadd.f32 %v3092, 0.0036580483
        %v3094 = vmul.f32 %v3089, %v3093
        %v3095 = vadd.f32 %v3094, 0.05243302
        %v3096 = vmul.f32 %v3089, %v3095
        %v3097 = vadd.f32 %v3096, 0.18741608
        %v3098 = vmul.f32 %v3089, %v3097
        %v3099 = vadd.f32 %v3098, 1.1283791
        %v3100 = vmul.f32 %v2924, %v3099
        %v3101 = vmul.f32 %v3089, 3.8918573e-05
        %v3102 = vadd.f32 %v3101, 0.001143296
        %v3103 = vmul.f32 %v3089, %v3102
        %v3104 = vadd.f32 %v3103, 0.014752088
        %v3105 = vmul.f32 %v3089, %v3104
        %v3106 = vadd.f32 %v3105, 0.112945676
        %v3107 = vmul.f32 %v3089, %v3106
        %v3108 = vadd.f32 %v3107, 0.4994258
        %v3109 = vmul.f32 %v3089, %v3108
        %v3110 = vadd.f32 %v3109, 1.0
        %v3111 = vrcp.pop %v3110
        %v3112 = vmul.f32 %v3110, %v3111
        %v3113 = vsub.f32 1.0, %v3112
        %v3114 = vmul.f32 %v3111, %v3113
        %v3115 = vadd.f32 %v3111, %v3114
        %vm3116 = vweird.f32 %v3110
        %vm3117 = vweird.f32 %v3111
        %vm3118 = vmor %vm3116, %vm3117
        %v3119 = vsel %vm3118, %v3111, %v3115
        %v3120 = vand.u32 2147483647, %v3110
        %vm3121 = vcmp.eq.f32.partialorder %v3120, 8.507059e+37
        %v3122 = vand.u32 %v3110, 2147483648
        %v3123 = vor.u32 1.1754944e-38, %v3122
        %v3124 = vsel %vm3121, %v3123, %v3119
        %v3125 = vmul.f32 %v3100, %v3124
        %v3126 = vmin.f32 %v3125, 1.0
        %v3127 = vmax.f32 %v3126, -1.0
        %v3128 = vmul.f32 %v2925, %v2925
        %v3129 = vmin.f32 16.0, %v3128
        %v3130 = vmul.f32 %v3129, 2.1237322e-06
        %v3131 = vadd.f32 %v3130, 0.00028619796
        %v3132 = vmul.f32 %v3129, %v3131
        %v3133 = vadd.f32 %v3132, 0.0036580483
        %v3134 = vmul.f32 %v3129, %v3133
        %v3135 = vadd.f32 %v3134, 0.05243302
        %v3136 = vmul.f32 %v3129, %v3135
        %v3137 = vadd.f32 %v3136, 0.18741608
        %v3138 = vmul.f32 %v3129, %v3137
        %v3139 = vadd.f32 %v3138, 1.1283791
        %v3140 = vmul.f32 %v2925, %v3139
        %v3141 = vmul.f32 %v3129, 3.8918573e-05
        %v3142 = vadd.f32 %v3141, 0.001143296
        %v3143 = vmul.f32 %v3129, %v3142
        %v3144 = vadd.f32 %v3143, 0.014752088
        %v3145 = vmul.f32 %v3129, %v3144
        %v3146 = vadd.f32 %v3145, 0.112945676
        %v3147 = vmul.f32 %v3129, %v3146
        %v3148 = vadd.f32 %v3147, 0.4994258
        %v3149 = vmul.f32 %v3129, %v3148
        %v3150 = vadd.f32 %v3149, 1.0
        %v3151 = vrcp.pop %v3150
        %v3152 = vmul.f32 %v3150, %v3151
        %v3153 = vsub.f32 1.0, %v3152
        %v3154 = vmul.f32 %v3151, %v3153
        %v3155 = vadd.f32 %v3151, %v3154
        %vm3156 = vweird.f32 %v3150
        %vm3157 = vweird.f32 %v3151
        %vm3158 = vmor %vm3156, %vm3157
        %v3159 = vsel %vm3158, %v3151, %v3155
        %v3160 = vand.u32 2147483647, %v3150
        %vm3161 = vcmp.eq.f32.partialorder %v3160, 8.507059e+37
        %v3162 = vand.u32 %v3150, 2147483648
        %v3163 = vor.u32 1.1754944e-38, %v3162
        %v3164 = vsel %vm3161, %v3163, %v3159
        %v3165 = vmul.f32 %v3140, %v3164
        %v3166 = vmin.f32 %v3165, 1.0
        %v3167 = vmax.f32 %v3166, -1.0
        %v3168 = vmul.f32 %v2926, %v2926
        %v3169 = vmin.f32 16.0, %v3168
        %v3170 = vmul.f32 %v3169, 2.1237322e-06
        %v3171 = vadd.f32 %v3170, 0.00028619796
        %v3172 = vmul.f32 %v3169, %v3171
        %v3173 = vadd.f32 %v3172, 0.0036580483
        %v3174 = vmul.f32 %v3169, %v3173
        %v3175 = vadd.f32 %v3174, 0.05243302
        %v3176 = vmul.f32 %v3169, %v3175
        %v3177 = vadd.f32 %v3176, 0.18741608
        %v3178 = vmul.f32 %v3169, %v3177
        %v3179 = vadd.f32 %v3178, 1.1283791
        %v3180 = vmul.f32 %v2926, %v3179
        %v3181 = vmul.f32 %v3169, 3.8918573e-05
        %v3182 = vadd.f32 %v3181, 0.001143296
        %v3183 = vmul.f32 %v3169, %v3182
        %v3184 = vadd.f32 %v3183, 0.014752088
        %v3185 = vmul.f32 %v3169, %v3184
        %v3186 = vadd.f32 %v3185, 0.112945676
        %v3187 = vmul.f32 %v3169, %v3186
        %v3188 = vadd.f32 %v3187, 0.4994258
        %v3189 = vmul.f32 %v3169, %v3188
        %v3190 = vadd.f32 %v3189, 1.0
        %v3191 = vrcp.pop %v3190
        %v3192 = vmul.f32 %v3190, %v3191
        %v3193 = vsub.f32 1.0, %v3192
        %v3194 = vmul.f32 %v3191, %v3193
        %v3195 = vadd.f32 %v3191, %v3194
        %vm3196 = vweird.f32 %v3190
        %vm3197 = vweird.f32 %v3191
        %vm3198 = vmor %vm3196, %vm3197
        %v3199 = vsel %vm3198, %v3191, %v3195
        %v3200 = vand.u32 2147483647, %v3190
        %vm3201 = vcmp.eq.f32.partialorder %v3200, 8.507059e+37
        %v3202 = vand.u32 %v3190, 2147483648
        %v3203 = vor.u32 1.1754944e-38, %v3202
        %v3204 = vsel %vm3201, %v3203, %v3199
        %v3205 = vmul.f32 %v3180, %v3204
        %v3206 = vmin.f32 %v3205, 1.0
        %v3207 = vmax.f32 %v3206, -1.0
        %v3208 = vmul.f32 %v2927, %v2927
        %v3209 = vmin.f32 16.0, %v3208
        %v3210 = vmul.f32 %v3209, 2.1237322e-06
        %v3211 = vadd.f32 %v3210, 0.00028619796
        %v3212 = vmul.f32 %v3209, %v3211
        %v3213 = vadd.f32 %v3212, 0.0036580483
        %v3214 = vmul.f32 %v3209, %v3213
        %v3215 = vadd.f32 %v3214, 0.05243302
        %v3216 = vmul.f32 %v3209, %v3215
        %v3217 = vadd.f32 %v3216, 0.18741608
        %v3218 = vmul.f32 %v3209, %v3217
        %v3219 = vadd.f32 %v3218, 1.1283791
        %v3220 = vmul.f32 %v2927, %v3219
        %v3221 = vmul.f32 %v3209, 3.8918573e-05
        %v3222 = vadd.f32 %v3221, 0.001143296
        %v3223 = vmul.f32 %v3209, %v3222
        %v3224 = vadd.f32 %v3223, 0.014752088
        %v3225 = vmul.f32 %v3209, %v3224
        %v3226 = vadd.f32 %v3225, 0.112945676
        %v3227 = vmul.f32 %v3209, %v3226
        %v3228 = vadd.f32 %v3227, 0.4994258
        %v3229 = vmul.f32 %v3209, %v3228
        %v3230 = vadd.f32 %v3229, 1.0
        %v3231 = vrcp.pop %v3230
        %v3232 = vmul.f32 %v3230, %v3231
        %v3233 = vsub.f32 1.0, %v3232
        %v3234 = vmul.f32 %v3231, %v3233
        %v3235 = vadd.f32 %v3231, %v3234
        %vm3236 = vweird.f32 %v3230
        %vm3237 = vweird.f32 %v3231
        %vm3238 = vmor %vm3236, %vm3237
        %v3239 = vsel %vm3238, %v3231, %v3235
        %v3240 = vand.u32 2147483647, %v3230
        %vm3241 = vcmp.eq.f32.partialorder %v3240, 8.507059e+37
        %v3242 = vand.u32 %v3230, 2147483648
        %v3243 = vor.u32 1.1754944e-38, %v3242
        %v3244 = vsel %vm3241, %v3243, %v3239
        %v3245 = vmul.f32 %v3220, %v3244
        %v3246 = vmin.f32 %v3245, 1.0
        %v3247 = vmax.f32 %v3246, -1.0
        %v3248 = vadd.f32 %v2967, 1.0
        %v3249 = vadd.f32 %v3007, 1.0
        %v3250 = vadd.f32 %v3047, 1.0
        %v3251 = vadd.f32 %v3087, 1.0
        %v3252 = vadd.f32 %v3127, 1.0
        %v3253 = vadd.f32 %v3167, 1.0
        %v3254 = vadd.f32 %v3207, 1.0
        %v3255 = vadd.f32 %v3247, 1.0
        %v3256 = vmul.f32 %v2912, %v3248
        %v3257 = vmul.f32 %v2913, %v3249
        %v3258 = vmul.f32 %v2914, %v3250
        %v3259 = vmul.f32 %v2915, %v3251
        %v3260 = vmul.f32 %v2916, %v3252
        %v3261 = vmul.f32 %v2917, %v3253
        %v3262 = vmul.f32 %v2918, %v3254
        %v3263 = vmul.f32 %v2919, %v3255
        %v3264 = vpack.c.bf16 %v3256, %v3256
        %v3265 = vpack.c.bf16 %v3257, %v3257
        %v3266 = vpack.c.bf16 %v3258, %v3258
        %v3267 = vpack.c.bf16 %v3259, %v3259
        %v3268 = vpack.c.bf16 %v3260, %v3260
        %v3269 = vpack.c.bf16 %v3261, %v3261
        %v3270 = vpack.c.bf16 %v3262, %v3262
        %v3271 = vpack.c.bf16 %v3263, %v3263
        %v3272 = vld [vmem:[%s436] sm:$0xff]
        %v3273 = vld [vmem:[%s436 + $0x8] sm:$0xff]
        %v3274 = vld [vmem:[%s436 + $0x10] sm:$0xff]
        %v3275 = vld [vmem:[%s436 + $0x18] sm:$0xff]
        %v3276 = vld [vmem:[%s436 + $0x20] sm:$0xff]
        %v3277 = vld [vmem:[%s436 + $0x28] sm:$0xff]
        %v3278 = vld [vmem:[%s436 + $0x30] sm:$0xff]
        %v3279 = vld [vmem:[%s436 + $0x38] sm:$0xff]
        %v3280 = vld [vmem:[%s436 + $0x40] sm:$0xff]
        %v3281 = vld [vmem:[%s436 + $0x48] sm:$0xff]
        %v3282 = vld [vmem:[%s436 + $0x50] sm:$0xff]
        %v3283 = vld [vmem:[%s436 + $0x58] sm:$0xff]
        %v3284 = vld [vmem:[%s436 + $0x60] sm:$0xff]
        %v3285 = vld [vmem:[%s436 + $0x68] sm:$0xff]
        %v3286 = vld [vmem:[%s436 + $0x70] sm:$0xff]
        %v3287 = vld [vmem:[%s436 + $0x78] sm:$0xff]
        %v3288 = vld [vmem:[%s436 + $0x80] sm:$0xff]
        %v3289 = vld [vmem:[%s436 + $0x88] sm:$0xff]
        %v3290 = vld [vmem:[%s436 + $0x90] sm:$0xff]
        %v3291 = vld [vmem:[%s436 + $0x98] sm:$0xff]
        %v3292 = vld [vmem:[%s436 + $0xa0] sm:$0xff]
        %v3293 = vld [vmem:[%s436 + $0xa8] sm:$0xff]
        %v3294 = vld [vmem:[%s436 + $0xb0] sm:$0xff]
        %v3295 = vld [vmem:[%s436 + $0xb8] sm:$0xff]
        %v3296 = vld [vmem:[%s436 + $0xc0] sm:$0xff]
        %v3297 = vld [vmem:[%s436 + $0xc8] sm:$0xff]
        %v3298 = vld [vmem:[%s436 + $0xd0] sm:$0xff]
        %v3299 = vld [vmem:[%s436 + $0xd8] sm:$0xff]
        %v3300 = vld [vmem:[%s436 + $0xe0] sm:$0xff]
        %v3301 = vld [vmem:[%s436 + $0xe8] sm:$0xff]
        %v3302 = vld [vmem:[%s436 + $0xf0] sm:$0xff]
        %v3303 = vld [vmem:[%s436 + $0xf8] sm:$0xff]
        %v3304 = vld [vmem:[%s436 + $0x100] sm:$0xff]
        %v3305 = vld [vmem:[%s436 + $0x108] sm:$0xff]
        %v3306 = vld [vmem:[%s436 + $0x110] sm:$0xff]
        %v3307 = vld [vmem:[%s436 + $0x118] sm:$0xff]
        %v3308 = vld [vmem:[%s436 + $0x120] sm:$0xff]
        %v3309 = vld [vmem:[%s436 + $0x128] sm:$0xff]
        %v3310 = vld [vmem:[%s436 + $0x130] sm:$0xff]
        %v3311 = vld [vmem:[%s436 + $0x138] sm:$0xff]
        %v3312 = vld [vmem:[%s436 + $0x140] sm:$0xff]
        %v3313 = vld [vmem:[%s436 + $0x148] sm:$0xff]
        %v3314 = vld [vmem:[%s436 + $0x150] sm:$0xff]
        %v3315 = vld [vmem:[%s436 + $0x158] sm:$0xff]
        %v3316 = vld [vmem:[%s436 + $0x160] sm:$0xff]
        %v3317 = vld [vmem:[%s436 + $0x168] sm:$0xff]
        %v3318 = vld [vmem:[%s436 + $0x170] sm:$0xff]
        %v3319 = vld [vmem:[%s436 + $0x178] sm:$0xff]
        %v3320 = vld [vmem:[%s436 + $0x180] sm:$0xff]
        %v3321 = vld [vmem:[%s436 + $0x188] sm:$0xff]
        %v3322 = vld [vmem:[%s436 + $0x190] sm:$0xff]
        %v3323 = vld [vmem:[%s436 + $0x198] sm:$0xff]
        %v3324 = vld [vmem:[%s436 + $0x1a0] sm:$0xff]
        %v3325 = vld [vmem:[%s436 + $0x1a8] sm:$0xff]
        %v3326 = vld [vmem:[%s436 + $0x1b0] sm:$0xff]
        %v3327 = vld [vmem:[%s436 + $0x1b8] sm:$0xff]
        %v3328 = vld [vmem:[%s436 + $0x1c0] sm:$0xff]
        %v3329 = vld [vmem:[%s436 + $0x1c8] sm:$0xff]
        %v3330 = vld [vmem:[%s436 + $0x1d0] sm:$0xff]
        %v3331 = vld [vmem:[%s436 + $0x1d8] sm:$0xff]
        %v3332 = vld [vmem:[%s436 + $0x1e0] sm:$0xff]
        %v3333 = vld [vmem:[%s436 + $0x1e8] sm:$0xff]
        %v3334 = vld [vmem:[%s436 + $0x1f0] sm:$0xff]
        %v3335 = vld [vmem:[%s436 + $0x1f8] sm:$0xff]
        %v3336 = vld [vmem:[%s436 + $0x200] sm:$0xff]
        %v3337 = vld [vmem:[%s436 + $0x208] sm:$0xff]
        %v3338 = vld [vmem:[%s436 + $0x210] sm:$0xff]
        %v3339 = vld [vmem:[%s436 + $0x218] sm:$0xff]
        %v3340 = vld [vmem:[%s436 + $0x220] sm:$0xff]
        %v3341 = vld [vmem:[%s436 + $0x228] sm:$0xff]
        %v3342 = vld [vmem:[%s436 + $0x230] sm:$0xff]
        %v3343 = vld [vmem:[%s436 + $0x238] sm:$0xff]
        %v3344 = vld [vmem:[%s436 + $0x240] sm:$0xff]
        %v3345 = vld [vmem:[%s436 + $0x248] sm:$0xff]
        %v3346 = vld [vmem:[%s436 + $0x250] sm:$0xff]
        %v3347 = vld [vmem:[%s436 + $0x258] sm:$0xff]
        %v3348 = vld [vmem:[%s436 + $0x260] sm:$0xff]
        %v3349 = vld [vmem:[%s436 + $0x268] sm:$0xff]
        %v3350 = vld [vmem:[%s436 + $0x270] sm:$0xff]
        %v3351 = vld [vmem:[%s436 + $0x278] sm:$0xff]
        %v3352 = vld [vmem:[%s436 + $0x280] sm:$0xff]
        %v3353 = vld [vmem:[%s436 + $0x288] sm:$0xff]
        %v3354 = vld [vmem:[%s436 + $0x290] sm:$0xff]
        %v3355 = vld [vmem:[%s436 + $0x298] sm:$0xff]
        %v3356 = vld [vmem:[%s436 + $0x2a0] sm:$0xff]
        %v3357 = vld [vmem:[%s436 + $0x2a8] sm:$0xff]
        %v3358 = vld [vmem:[%s436 + $0x2b0] sm:$0xff]
        %v3359 = vld [vmem:[%s436 + $0x2b8] sm:$0xff]
        %v3360 = vld [vmem:[%s436 + $0x2c0] sm:$0xff]
        %v3361 = vld [vmem:[%s436 + $0x2c8] sm:$0xff]
        %v3362 = vld [vmem:[%s436 + $0x2d0] sm:$0xff]
        %v3363 = vld [vmem:[%s436 + $0x2d8] sm:$0xff]
        %v3364 = vld [vmem:[%s436 + $0x2e0] sm:$0xff]
        %v3365 = vld [vmem:[%s436 + $0x2e8] sm:$0xff]
        %v3366 = vld [vmem:[%s436 + $0x2f0] sm:$0xff]
        %v3367 = vld [vmem:[%s436 + $0x2f8] sm:$0xff]
        %v3368 = vld [vmem:[%s436 + $0x300] sm:$0xff]
        %v3369 = vld [vmem:[%s436 + $0x308] sm:$0xff]
        %v3370 = vld [vmem:[%s436 + $0x310] sm:$0xff]
        %v3371 = vld [vmem:[%s436 + $0x318] sm:$0xff]
        %v3372 = vld [vmem:[%s436 + $0x320] sm:$0xff]
        %v3373 = vld [vmem:[%s436 + $0x328] sm:$0xff]
        %v3374 = vld [vmem:[%s436 + $0x330] sm:$0xff]
        %v3375 = vld [vmem:[%s436 + $0x338] sm:$0xff]
        %v3376 = vld [vmem:[%s436 + $0x340] sm:$0xff]
        %v3377 = vld [vmem:[%s436 + $0x348] sm:$0xff]
        %v3378 = vld [vmem:[%s436 + $0x350] sm:$0xff]
        %v3379 = vld [vmem:[%s436 + $0x358] sm:$0xff]
        %v3380 = vld [vmem:[%s436 + $0x360] sm:$0xff]
        %v3381 = vld [vmem:[%s436 + $0x368] sm:$0xff]
        %v3382 = vld [vmem:[%s436 + $0x370] sm:$0xff]
        %v3383 = vld [vmem:[%s436 + $0x378] sm:$0xff]
        %v3384 = vld [vmem:[%s436 + $0x380] sm:$0xff]
        %v3385 = vld [vmem:[%s436 + $0x388] sm:$0xff]
        %v3386 = vld [vmem:[%s436 + $0x390] sm:$0xff]
        %v3387 = vld [vmem:[%s436 + $0x398] sm:$0xff]
        %v3388 = vld [vmem:[%s436 + $0x3a0] sm:$0xff]
        %v3389 = vld [vmem:[%s436 + $0x3a8] sm:$0xff]
        %v3390 = vld [vmem:[%s436 + $0x3b0] sm:$0xff]
        %v3391 = vld [vmem:[%s436 + $0x3b8] sm:$0xff]
        %v3392 = vld [vmem:[%s436 + $0x3c0] sm:$0xff]
        %v3393 = vld [vmem:[%s436 + $0x3c8] sm:$0xff]
        %v3394 = vld [vmem:[%s436 + $0x3d0] sm:$0xff]
        %v3395 = vld [vmem:[%s436 + $0x3d8] sm:$0xff]
        %v3396 = vld [vmem:[%s436 + $0x3e0] sm:$0xff]
        %v3397 = vld [vmem:[%s436 + $0x3e8] sm:$0xff]
        %v3398 = vld [vmem:[%s436 + $0x3f0] sm:$0xff]
        %v3399 = vld [vmem:[%s436 + $0x3f8] sm:$0xff]
        %v3528 = vunpack.c.l.b16 %v3272
        %v3529 = vunpack.c.h.b16 %v3272
        %v3530 = vunpack.c.l.b16 %v3273
        %v3531 = vunpack.c.h.b16 %v3273
        %v3532 = vunpack.c.l.b16 %v3274
        %v3533 = vunpack.c.h.b16 %v3274
        %v3534 = vunpack.c.l.b16 %v3275
        %v3535 = vunpack.c.h.b16 %v3275
        %v3536 = vunpack.c.l.b16 %v3276
        %v3537 = vunpack.c.h.b16 %v3276
        %v3538 = vunpack.c.l.b16 %v3277
        %v3539 = vunpack.c.h.b16 %v3277
        %v3540 = vunpack.c.l.b16 %v3278
        %v3541 = vunpack.c.h.b16 %v3278
        %v3542 = vunpack.c.l.b16 %v3279
        %v3543 = vunpack.c.h.b16 %v3279
        %v3544 = vunpack.c.l.b16 %v3280
        %v3545 = vunpack.c.h.b16 %v3280
        %v3546 = vunpack.c.l.b16 %v3281
        %v3547 = vunpack.c.h.b16 %v3281
        %v3548 = vunpack.c.l.b16 %v3282
        %v3549 = vunpack.c.h.b16 %v3282
        %v3550 = vunpack.c.l.b16 %v3283
        %v3551 = vunpack.c.h.b16 %v3283
        %v3552 = vunpack.c.l.b16 %v3284
        %v3553 = vunpack.c.h.b16 %v3284
        %v3554 = vunpack.c.l.b16 %v3285
        %v3555 = vunpack.c.h.b16 %v3285
        %v3556 = vunpack.c.l.b16 %v3286
        %v3557 = vunpack.c.h.b16 %v3286
        %v3558 = vunpack.c.l.b16 %v3287
        %v3559 = vunpack.c.h.b16 %v3287
        %v3560 = vunpack.c.l.b16 %v3288
        %v3561 = vunpack.c.h.b16 %v3288
        %v3562 = vunpack.c.l.b16 %v3289
        %v3563 = vunpack.c.h.b16 %v3289
        %v3564 = vunpack.c.l.b16 %v3290
        %v3565 = vunpack.c.h.b16 %v3290
        %v3566 = vunpack.c.l.b16 %v3291
        %v3567 = vunpack.c.h.b16 %v3291
        %v3568 = vunpack.c.l.b16 %v3292
        %v3569 = vunpack.c.h.b16 %v3292
        %v3570 = vunpack.c.l.b16 %v3293
        %v3571 = vunpack.c.h.b16 %v3293
        %v3572 = vunpack.c.l.b16 %v3294
        %v3573 = vunpack.c.h.b16 %v3294
        %v3574 = vunpack.c.l.b16 %v3295
        %v3575 = vunpack.c.h.b16 %v3295
        %v3576 = vunpack.c.l.b16 %v3296
        %v3577 = vunpack.c.h.b16 %v3296
        %v3578 = vunpack.c.l.b16 %v3297
        %v3579 = vunpack.c.h.b16 %v3297
        %v3580 = vunpack.c.l.b16 %v3298
        %v3581 = vunpack.c.h.b16 %v3298
        %v3582 = vunpack.c.l.b16 %v3299
        %v3583 = vunpack.c.h.b16 %v3299
        %v3584 = vunpack.c.l.b16 %v3300
        %v3585 = vunpack.c.h.b16 %v3300
        %v3586 = vunpack.c.l.b16 %v3301
        %v3587 = vunpack.c.h.b16 %v3301
        %v3588 = vunpack.c.l.b16 %v3302
        %v3589 = vunpack.c.h.b16 %v3302
        %v3590 = vunpack.c.l.b16 %v3303
        %v3591 = vunpack.c.h.b16 %v3303
        %v3592 = vunpack.c.l.b16 %v3304
        %v3593 = vunpack.c.h.b16 %v3304
        %v3594 = vunpack.c.l.b16 %v3305
        %v3595 = vunpack.c.h.b16 %v3305
        %v3596 = vunpack.c.l.b16 %v3306
        %v3597 = vunpack.c.h.b16 %v3306
        %v3598 = vunpack.c.l.b16 %v3307
        %v3599 = vunpack.c.h.b16 %v3307
        %v3600 = vunpack.c.l.b16 %v3308
        %v3601 = vunpack.c.h.b16 %v3308
        %v3602 = vunpack.c.l.b16 %v3309
        %v3603 = vunpack.c.h.b16 %v3309
        %v3604 = vunpack.c.l.b16 %v3310
        %v3605 = vunpack.c.h.b16 %v3310
        %v3606 = vunpack.c.l.b16 %v3311
        %v3607 = vunpack.c.h.b16 %v3311
        %v3608 = vunpack.c.l.b16 %v3312
        %v3609 = vunpack.c.h.b16 %v3312
        %v3610 = vunpack.c.l.b16 %v3313
        %v3611 = vunpack.c.h.b16 %v3313
        %v3612 = vunpack.c.l.b16 %v3314
        %v3613 = vunpack.c.h.b16 %v3314
        %v3614 = vunpack.c.l.b16 %v3315
        %v3615 = vunpack.c.h.b16 %v3315
        %v3616 = vunpack.c.l.b16 %v3316
        %v3617 = vunpack.c.h.b16 %v3316
        %v3618 = vunpack.c.l.b16 %v3317
        %v3619 = vunpack.c.h.b16 %v3317
        %v3620 = vunpack.c.l.b16 %v3318
        %v3621 = vunpack.c.h.b16 %v3318
        %v3622 = vunpack.c.l.b16 %v3319
        %v3623 = vunpack.c.h.b16 %v3319
        %v3624 = vunpack.c.l.b16 %v3320
        %v3625 = vunpack.c.h.b16 %v3320
        %v3626 = vunpack.c.l.b16 %v3321
        %v3627 = vunpack.c.h.b16 %v3321
        %v3628 = vunpack.c.l.b16 %v3322
        %v3629 = vunpack.c.h.b16 %v3322
        %v3630 = vunpack.c.l.b16 %v3323
        %v3631 = vunpack.c.h.b16 %v3323
        %v3632 = vunpack.c.l.b16 %v3324
        %v3633 = vunpack.c.h.b16 %v3324
        %v3634 = vunpack.c.l.b16 %v3325
        %v3635 = vunpack.c.h.b16 %v3325
        %v3636 = vunpack.c.l.b16 %v3326
        %v3637 = vunpack.c.h.b16 %v3326
        %v3638 = vunpack.c.l.b16 %v3327
        %v3639 = vunpack.c.h.b16 %v3327
        %v3640 = vunpack.c.l.b16 %v3328
        %v3641 = vunpack.c.h.b16 %v3328
        %v3642 = vunpack.c.l.b16 %v3329
        %v3643 = vunpack.c.h.b16 %v3329
        %v3644 = vunpack.c.l.b16 %v3330
        %v3645 = vunpack.c.h.b16 %v3330
        %v3646 = vunpack.c.l.b16 %v3331
        %v3647 = vunpack.c.h.b16 %v3331
        %v3648 = vunpack.c.l.b16 %v3332
        %v3649 = vunpack.c.h.b16 %v3332
        %v3650 = vunpack.c.l.b16 %v3333
        %v3651 = vunpack.c.h.b16 %v3333
        %v3652 = vunpack.c.l.b16 %v3334
        %v3653 = vunpack.c.h.b16 %v3334
        %v3654 = vunpack.c.l.b16 %v3335
        %v3655 = vunpack.c.h.b16 %v3335
        %v3656 = vunpack.c.l.b16 %v3336
        %v3657 = vunpack.c.h.b16 %v3336
        %v3658 = vunpack.c.l.b16 %v3337
        %v3659 = vunpack.c.h.b16 %v3337
        %v3660 = vunpack.c.l.b16 %v3338
        %v3661 = vunpack.c.h.b16 %v3338
        %v3662 = vunpack.c.l.b16 %v3339
        %v3663 = vunpack.c.h.b16 %v3339
        %v3664 = vunpack.c.l.b16 %v3340
        %v3665 = vunpack.c.h.b16 %v3340
        %v3666 = vunpack.c.l.b16 %v3341
        %v3667 = vunpack.c.h.b16 %v3341
        %v3668 = vunpack.c.l.b16 %v3342
        %v3669 = vunpack.c.h.b16 %v3342
        %v3670 = vunpack.c.l.b16 %v3343
        %v3671 = vunpack.c.h.b16 %v3343
        %v3672 = vunpack.c.l.b16 %v3344
        %v3673 = vunpack.c.h.b16 %v3344
        %v3674 = vunpack.c.l.b16 %v3345
        %v3675 = vunpack.c.h.b16 %v3345
        %v3676 = vunpack.c.l.b16 %v3346
        %v3677 = vunpack.c.h.b16 %v3346
        %v3678 = vunpack.c.l.b16 %v3347
        %v3679 = vunpack.c.h.b16 %v3347
        %v3680 = vunpack.c.l.b16 %v3348
        %v3681 = vunpack.c.h.b16 %v3348
        %v3682 = vunpack.c.l.b16 %v3349
        %v3683 = vunpack.c.h.b16 %v3349
        %v3684 = vunpack.c.l.b16 %v3350
        %v3685 = vunpack.c.h.b16 %v3350
        %v3686 = vunpack.c.l.b16 %v3351
        %v3687 = vunpack.c.h.b16 %v3351
        %v3688 = vunpack.c.l.b16 %v3352
        %v3689 = vunpack.c.h.b16 %v3352
        %v3690 = vunpack.c.l.b16 %v3353
        %v3691 = vunpack.c.h.b16 %v3353
        %v3692 = vunpack.c.l.b16 %v3354
        %v3693 = vunpack.c.h.b16 %v3354
        %v3694 = vunpack.c.l.b16 %v3355
        %v3695 = vunpack.c.h.b16 %v3355
        %v3696 = vunpack.c.l.b16 %v3356
        %v3697 = vunpack.c.h.b16 %v3356
        %v3698 = vunpack.c.l.b16 %v3357
        %v3699 = vunpack.c.h.b16 %v3357
        %v3700 = vunpack.c.l.b16 %v3358
        %v3701 = vunpack.c.h.b16 %v3358
        %v3702 = vunpack.c.l.b16 %v3359
        %v3703 = vunpack.c.h.b16 %v3359
        %v3704 = vunpack.c.l.b16 %v3360
        %v3705 = vunpack.c.h.b16 %v3360
        %v3706 = vunpack.c.l.b16 %v3361
        %v3707 = vunpack.c.h.b16 %v3361
        %v3708 = vunpack.c.l.b16 %v3362
        %v3709 = vunpack.c.h.b16 %v3362
        %v3710 = vunpack.c.l.b16 %v3363
        %v3711 = vunpack.c.h.b16 %v3363
        %v3712 = vunpack.c.l.b16 %v3364
        %v3713 = vunpack.c.h.b16 %v3364
        %v3714 = vunpack.c.l.b16 %v3365
        %v3715 = vunpack.c.h.b16 %v3365
        %v3716 = vunpack.c.l.b16 %v3366
        %v3717 = vunpack.c.h.b16 %v3366
        %v3718 = vunpack.c.l.b16 %v3367
        %v3719 = vunpack.c.h.b16 %v3367
        %v3720 = vunpack.c.l.b16 %v3368
        %v3721 = vunpack.c.h.b16 %v3368
        %v3722 = vunpack.c.l.b16 %v3369
        %v3723 = vunpack.c.h.b16 %v3369
        %v3724 = vunpack.c.l.b16 %v3370
        %v3725 = vunpack.c.h.b16 %v3370
        %v3726 = vunpack.c.l.b16 %v3371
        %v3727 = vunpack.c.h.b16 %v3371
        %v3728 = vunpack.c.l.b16 %v3372
        %v3729 = vunpack.c.h.b16 %v3372
        %v3730 = vunpack.c.l.b16 %v3373
        %v3731 = vunpack.c.h.b16 %v3373
        %v3732 = vunpack.c.l.b16 %v3374
        %v3733 = vunpack.c.h.b16 %v3374
        %v3734 = vunpack.c.l.b16 %v3375
        %v3735 = vunpack.c.h.b16 %v3375
        %v3736 = vunpack.c.l.b16 %v3376
        %v3737 = vunpack.c.h.b16 %v3376
        %v3738 = vunpack.c.l.b16 %v3377
        %v3739 = vunpack.c.h.b16 %v3377
        %v3740 = vunpack.c.l.b16 %v3378
        %v3741 = vunpack.c.h.b16 %v3378
        %v3742 = vunpack.c.l.b16 %v3379
        %v3743 = vunpack.c.h.b16 %v3379
        %v3744 = vunpack.c.l.b16 %v3380
        %v3745 = vunpack.c.h.b16 %v3380
        %v3746 = vunpack.c.l.b16 %v3381
        %v3747 = vunpack.c.h.b16 %v3381
        %v3748 = vunpack.c.l.b16 %v3382
        %v3749 = vunpack.c.h.b16 %v3382
        %v3750 = vunpack.c.l.b16 %v3383
        %v3751 = vunpack.c.h.b16 %v3383
        %v3752 = vunpack.c.l.b16 %v3384
        %v3753 = vunpack.c.h.b16 %v3384
        %v3754 = vunpack.c.l.b16 %v3385
        %v3755 = vunpack.c.h.b16 %v3385
        %v3756 = vunpack.c.l.b16 %v3386
        %v3757 = vunpack.c.h.b16 %v3386
        %v3758 = vunpack.c.l.b16 %v3387
        %v3759 = vunpack.c.h.b16 %v3387
        %v3760 = vunpack.c.l.b16 %v3388
        %v3761 = vunpack.c.h.b16 %v3388
        %v3762 = vunpack.c.l.b16 %v3389
        %v3763 = vunpack.c.h.b16 %v3389
        %v3764 = vunpack.c.l.b16 %v3390
        %v3765 = vunpack.c.h.b16 %v3390
        %v3766 = vunpack.c.l.b16 %v3391
        %v3767 = vunpack.c.h.b16 %v3391
        %v3768 = vunpack.c.l.b16 %v3392
        %v3769 = vunpack.c.h.b16 %v3392
        %v3770 = vunpack.c.l.b16 %v3393
        %v3771 = vunpack.c.h.b16 %v3393
        %v3772 = vunpack.c.l.b16 %v3394
        %v3773 = vunpack.c.h.b16 %v3394
        %v3774 = vunpack.c.l.b16 %v3395
        %v3775 = vunpack.c.h.b16 %v3395
        %v3776 = vunpack.c.l.b16 %v3396
        %v3777 = vunpack.c.h.b16 %v3396
        %v3778 = vunpack.c.l.b16 %v3397
        %v3779 = vunpack.c.h.b16 %v3397
        %v3780 = vunpack.c.l.b16 %v3398
        %v3781 = vunpack.c.h.b16 %v3398
        %v3782 = vunpack.c.l.b16 %v3399
        %v3783 = vunpack.c.h.b16 %v3399
        %v3784 = vpack.c.b16 %v3530, %v3528
        %v3785 = vpack.c.b16 %v3531, %v3529
        %v3786 = vpack.c.b16 %v3534, %v3532
        %v3787 = vpack.c.b16 %v3535, %v3533
        %v3788 = vpack.c.b16 %v3538, %v3536
        %v3789 = vpack.c.b16 %v3539, %v3537
        %v3790 = vpack.c.b16 %v3542, %v3540
        %v3791 = vpack.c.b16 %v3543, %v3541
        %v3792 = vpack.c.b16 %v3546, %v3544
        %v3793 = vpack.c.b16 %v3547, %v3545
        %v3794 = vpack.c.b16 %v3550, %v3548
        %v3795 = vpack.c.b16 %v3551, %v3549
        %v3796 = vpack.c.b16 %v3554, %v3552
        %v3797 = vpack.c.b16 %v3555, %v3553
        %v3798 = vpack.c.b16 %v3558, %v3556
        %v3799 = vpack.c.b16 %v3559, %v3557
        %v3800 = vpack.c.b16 %v3562, %v3560
        %v3801 = vpack.c.b16 %v3563, %v3561
        %v3802 = vpack.c.b16 %v3566, %v3564
        %v3803 = vpack.c.b16 %v3567, %v3565
        %v3804 = vpack.c.b16 %v3570, %v3568
        %v3805 = vpack.c.b16 %v3571, %v3569
        %v3806 = vpack.c.b16 %v3574, %v3572
        %v3807 = vpack.c.b16 %v3575, %v3573
        %v3808 = vpack.c.b16 %v3578, %v3576
        %v3809 = vpack.c.b16 %v3579, %v3577
        %v3810 = vpack.c.b16 %v3582, %v3580
        %v3811 = vpack.c.b16 %v3583, %v3581
        %v3812 = vpack.c.b16 %v3586, %v3584
        %v3813 = vpack.c.b16 %v3587, %v3585
        %v3814 = vpack.c.b16 %v3590, %v3588
        %v3815 = vpack.c.b16 %v3591, %v3589
        %v3816 = vpack.c.b16 %v3594, %v3592
        %v3817 = vpack.c.b16 %v3595, %v3593
        %v3818 = vpack.c.b16 %v3598, %v3596
        %v3819 = vpack.c.b16 %v3599, %v3597
        %v3820 = vpack.c.b16 %v3602, %v3600
        %v3821 = vpack.c.b16 %v3603, %v3601
        %v3822 = vpack.c.b16 %v3606, %v3604
        %v3823 = vpack.c.b16 %v3607, %v3605
        %v3824 = vpack.c.b16 %v3610, %v3608
        %v3825 = vpack.c.b16 %v3611, %v3609
        %v3826 = vpack.c.b16 %v3614, %v3612
        %v3827 = vpack.c.b16 %v3615, %v3613
        %v3828 = vpack.c.b16 %v3618, %v3616
        %v3829 = vpack.c.b16 %v3619, %v3617
        %v3830 = vpack.c.b16 %v3622, %v3620
        %v3831 = vpack.c.b16 %v3623, %v3621
        %v3832 = vpack.c.b16 %v3626, %v3624
        %v3833 = vpack.c.b16 %v3627, %v3625
        %v3834 = vpack.c.b16 %v3630, %v3628
        %v3835 = vpack.c.b16 %v3631, %v3629
        %v3836 = vpack.c.b16 %v3634, %v3632
        %v3837 = vpack.c.b16 %v3635, %v3633
        %v3838 = vpack.c.b16 %v3638, %v3636
        %v3839 = vpack.c.b16 %v3639, %v3637
        %v3840 = vpack.c.b16 %v3642, %v3640
        %v3841 = vpack.c.b16 %v3643, %v3641
        %v3842 = vpack.c.b16 %v3646, %v3644
        %v3843 = vpack.c.b16 %v3647, %v3645
        %v3844 = vpack.c.b16 %v3650, %v3648
        %v3845 = vpack.c.b16 %v3651, %v3649
        %v3846 = vpack.c.b16 %v3654, %v3652
        %v3847 = vpack.c.b16 %v3655, %v3653
        %v3848 = vpack.c.b16 %v3658, %v3656
        %v3849 = vpack.c.b16 %v3659, %v3657
        %v3850 = vpack.c.b16 %v3662, %v3660
        %v3851 = vpack.c.b16 %v3663, %v3661
        %v3852 = vpack.c.b16 %v3666, %v3664
        %v3853 = vpack.c.b16 %v3667, %v3665
        %v3854 = vpack.c.b16 %v3670, %v3668
        %v3855 = vpack.c.b16 %v3671, %v3669
        %v3856 = vpack.c.b16 %v3674, %v3672
        %v3857 = vpack.c.b16 %v3675, %v3673
        %v3858 = vpack.c.b16 %v3678, %v3676
        %v3859 = vpack.c.b16 %v3679, %v3677
        %v3860 = vpack.c.b16 %v3682, %v3680
        %v3861 = vpack.c.b16 %v3683, %v3681
        %v3862 = vpack.c.b16 %v3686, %v3684
        %v3863 = vpack.c.b16 %v3687, %v3685
        %v3864 = vpack.c.b16 %v3690, %v3688
        %v3865 = vpack.c.b16 %v3691, %v3689
        %v3866 = vpack.c.b16 %v3694, %v3692
        %v3867 = vpack.c.b16 %v3695, %v3693
        %v3868 = vpack.c.b16 %v3698, %v3696
        %v3869 = vpack.c.b16 %v3699, %v3697
        %v3870 = vpack.c.b16 %v3702, %v3700
        %v3871 = vpack.c.b16 %v3703, %v3701
        %v3872 = vpack.c.b16 %v3706, %v3704
        %v3873 = vpack.c.b16 %v3707, %v3705
        %v3874 = vpack.c.b16 %v3710, %v3708
        %v3875 = vpack.c.b16 %v3711, %v3709
        %v3876 = vpack.c.b16 %v3714, %v3712
        %v3877 = vpack.c.b16 %v3715, %v3713
        %v3878 = vpack.c.b16 %v3718, %v3716
        %v3879 = vpack.c.b16 %v3719, %v3717
        %v3880 = vpack.c.b16 %v3722, %v3720
        %v3881 = vpack.c.b16 %v3723, %v3721
        %v3882 = vpack.c.b16 %v3726, %v3724
        %v3883 = vpack.c.b16 %v3727, %v3725
        %v3884 = vpack.c.b16 %v3730, %v3728
        %v3885 = vpack.c.b16 %v3731, %v3729
        %v3886 = vpack.c.b16 %v3734, %v3732
        %v3887 = vpack.c.b16 %v3735, %v3733
        %v3888 = vpack.c.b16 %v3738, %v3736
        %v3889 = vpack.c.b16 %v3739, %v3737
        %v3890 = vpack.c.b16 %v3742, %v3740
        %v3891 = vpack.c.b16 %v3743, %v3741
        %v3892 = vpack.c.b16 %v3746, %v3744
        %v3893 = vpack.c.b16 %v3747, %v3745
        %v3894 = vpack.c.b16 %v3750, %v3748
        %v3895 = vpack.c.b16 %v3751, %v3749
        %v3896 = vpack.c.b16 %v3754, %v3752
        %v3897 = vpack.c.b16 %v3755, %v3753
        %v3898 = vpack.c.b16 %v3758, %v3756
        %v3899 = vpack.c.b16 %v3759, %v3757
        %v3900 = vpack.c.b16 %v3762, %v3760
        %v3901 = vpack.c.b16 %v3763, %v3761
        %v3902 = vpack.c.b16 %v3766, %v3764
        %v3903 = vpack.c.b16 %v3767, %v3765
        %v3904 = vpack.c.b16 %v3770, %v3768
        %v3905 = vpack.c.b16 %v3771, %v3769
        %v3906 = vpack.c.b16 %v3774, %v3772
        %v3907 = vpack.c.b16 %v3775, %v3773
        %v3908 = vpack.c.b16 %v3778, %v3776
        %v3909 = vpack.c.b16 %v3779, %v3777
        %v3910 = vpack.c.b16 %v3782, %v3780
        %v3911 = vpack.c.b16 %v3783, %v3781
        %4040 = vmatpush.bf16.msra.mxu0 %v3798
        %4041 = vmatpush.bf16.msra.mxu0 %v3796
        %4042 = vmatpush.bf16.msra.mxu0 %v3794
        %4043 = vmatpush.bf16.msra.mxu0 %v3792
        %4044 = vmatpush.bf16.msra.mxu0 %v3790
        %4045 = vmatpush.bf16.msra.mxu0 %v3788
        %4046 = vmatpush.bf16.msra.mxu0 %v3786
        %4047 = vmatpush.bf16.msra.mxu0 %v3784
        %4048 = vmatmul.bf16.gmra.mxu0 %v3264
        %v4049 = vpop.f32.mrf.mxu0
        %v4050 = vadd.f32 0.0, %v4049
        %v4051 = vpop.f32.mrf.mxu0
        %4052 = vdwg.mxu0
        %4053 = vmatpush.bf16.msra.mxu0 %v3814
        %4054 = vmatpush.bf16.msra.mxu0 %v3812
        %4055 = vmatpush.bf16.msra.mxu0 %v3810
        %4056 = vmatpush.bf16.msra.mxu0 %v3808
        %4057 = vmatpush.bf16.msra.mxu0 %v3806
        %4058 = vmatpush.bf16.msra.mxu0 %v3804
        %4059 = vmatpush.bf16.msra.mxu0 %v3802
        %4060 = vmatpush.bf16.msra.mxu0 %v3800
        %4061 = vmatmul.bf16.gmra.mxu0 %v3265
        %v4062 = vpop.f32.mrf.mxu0
        %v4063 = vadd.f32 %v4050, %v4062
        %v4064 = vpop.f32.mrf.mxu0
        %4065 = vdwg.mxu0
        %4066 = vmatpush.bf16.msra.mxu0 %v3830
        %4067 = vmatpush.bf16.msra.mxu0 %v3828
        %4068 = vmatpush.bf16.msra.mxu0 %v3826
        %4069 = vmatpush.bf16.msra.mxu0 %v3824
        %4070 = vmatpush.bf16.msra.mxu0 %v3822
        %4071 = vmatpush.bf16.msra.mxu0 %v3820
        %4072 = vmatpush.bf16.msra.mxu0 %v3818
        %4073 = vmatpush.bf16.msra.mxu0 %v3816
        %4074 = vmatmul.bf16.gmra.mxu0 %v3266
        %v4075 = vpop.f32.mrf.mxu0
        %v4076 = vadd.f32 %v4063, %v4075
        %v4077 = vpop.f32.mrf.mxu0
        %4078 = vdwg.mxu0
        %4079 = vmatpush.bf16.msra.mxu0 %v3846
        %4080 = vmatpush.bf16.msra.mxu0 %v3844
        %4081 = vmatpush.bf16.msra.mxu0 %v3842
        %4082 = vmatpush.bf16.msra.mxu0 %v3840
        %4083 = vmatpush.bf16.msra.mxu0 %v3838
        %4084 = vmatpush.bf16.msra.mxu0 %v3836
        %4085 = vmatpush.bf16.msra.mxu0 %v3834
        %4086 = vmatpush.bf16.msra.mxu0 %v3832
        %4087 = vmatmul.bf16.gmra.mxu0 %v3267
        %v4088 = vpop.f32.mrf.mxu0
        %v4089 = vadd.f32 %v4076, %v4088
        %v4090 = vpop.f32.mrf.mxu0
        %4091 = vdwg.mxu0
        %4092 = vmatpush.bf16.msra.mxu0 %v3862
        %4093 = vmatpush.bf16.msra.mxu0 %v3860
        %4094 = vmatpush.bf16.msra.mxu0 %v3858
        %4095 = vmatpush.bf16.msra.mxu0 %v3856
        %4096 = vmatpush.bf16.msra.mxu0 %v3854
        %4097 = vmatpush.bf16.msra.mxu0 %v3852
        %4098 = vmatpush.bf16.msra.mxu0 %v3850
        %4099 = vmatpush.bf16.msra.mxu0 %v3848
        %4100 = vmatmul.bf16.gmra.mxu0 %v3268
        %v4101 = vpop.f32.mrf.mxu0
        %v4102 = vadd.f32 %v4089, %v4101
        %v4103 = vpop.f32.mrf.mxu0
        %4104 = vdwg.mxu0
        %4105 = vmatpush.bf16.msra.mxu0 %v3878
        %4106 = vmatpush.bf16.msra.mxu0 %v3876
        %4107 = vmatpush.bf16.msra.mxu0 %v3874
        %4108 = vmatpush.bf16.msra.mxu0 %v3872
        %4109 = vmatpush.bf16.msra.mxu0 %v3870
        %4110 = vmatpush.bf16.msra.mxu0 %v3868
        %4111 = vmatpush.bf16.msra.mxu0 %v3866
        %4112 = vmatpush.bf16.msra.mxu0 %v3864
        %4113 = vmatmul.bf16.gmra.mxu0 %v3269
        %v4114 = vpop.f32.mrf.mxu0
        %v4115 = vadd.f32 %v4102, %v4114
        %v4116 = vpop.f32.mrf.mxu0
        %4117 = vdwg.mxu0
        %4118 = vmatpush.bf16.msra.mxu0 %v3894
        %4119 = vmatpush.bf16.msra.mxu0 %v3892
        %4120 = vmatpush.bf16.msra.mxu0 %v3890
        %4121 = vmatpush.bf16.msra.mxu0 %v3888
        %4122 = vmatpush.bf16.msra.mxu0 %v3886
        %4123 = vmatpush.bf16.msra.mxu0 %v3884
        %4124 = vmatpush.bf16.msra.mxu0 %v3882
        %4125 = vmatpush.bf16.msra.mxu0 %v3880
        %4126 = vmatmul.bf16.gmra.mxu0 %v3270
        %v4127 = vpop.f32.mrf.mxu0
        %v4128 = vadd.f32 %v4115, %v4127
        %v4129 = vpop.f32.mrf.mxu0
        %4130 = vdwg.mxu0
        %4131 = vmatpush.bf16.msra.mxu0 %v3910
        %4132 = vmatpush.bf16.msra.mxu0 %v3908
        %4133 = vmatpush.bf16.msra.mxu0 %v3906
        %4134 = vmatpush.bf16.msra.mxu0 %v3904
        %4135 = vmatpush.bf16.msra.mxu0 %v3902
        %4136 = vmatpush.bf16.msra.mxu0 %v3900
        %4137 = vmatpush.bf16.msra.mxu0 %v3898
        %4138 = vmatpush.bf16.msra.mxu0 %v3896
        %4139 = vmatmul.bf16.gmra.mxu0 %v3271
        %v4140 = vpop.f32.mrf.mxu0
        %v4141 = vadd.f32 %v4128, %v4140
        %v4142 = vpop.f32.mrf.mxu0
        %4143 = vdwg.mxu0
        %4144 = vmatpush.bf16.msra.mxu0 %v3799
        %4145 = vmatpush.bf16.msra.mxu0 %v3797
        %4146 = vmatpush.bf16.msra.mxu0 %v3795
        %4147 = vmatpush.bf16.msra.mxu0 %v3793
        %4148 = vmatpush.bf16.msra.mxu0 %v3791
        %4149 = vmatpush.bf16.msra.mxu0 %v3789
        %4150 = vmatpush.bf16.msra.mxu0 %v3787
        %4151 = vmatpush.bf16.msra.mxu0 %v3785
        %4152 = vmatmul.bf16.gmra.mxu0 %v3264
        %v4153 = vpop.f32.mrf.mxu0
        %v4154 = vadd.f32 0.0, %v4153
        %v4155 = vpop.f32.mrf.mxu0
        %4156 = vdwg.mxu0
        %4157 = vmatpush.bf16.msra.mxu0 %v3815
        %4158 = vmatpush.bf16.msra.mxu0 %v3813
        %4159 = vmatpush.bf16.msra.mxu0 %v3811
        %4160 = vmatpush.bf16.msra.mxu0 %v3809
        %4161 = vmatpush.bf16.msra.mxu0 %v3807
        %4162 = vmatpush.bf16.msra.mxu0 %v3805
        %4163 = vmatpush.bf16.msra.mxu0 %v3803
        %4164 = vmatpush.bf16.msra.mxu0 %v3801
        %4165 = vmatmul.bf16.gmra.mxu0 %v3265
        %v4166 = vpop.f32.mrf.mxu0
        %v4167 = vadd.f32 %v4154, %v4166
        %v4168 = vpop.f32.mrf.mxu0
        %4169 = vdwg.mxu0
        %4170 = vmatpush.bf16.msra.mxu0 %v3831
        %4171 = vmatpush.bf16.msra.mxu0 %v3829
        %4172 = vmatpush.bf16.msra.mxu0 %v3827
        %4173 = vmatpush.bf16.msra.mxu0 %v3825
        %4174 = vmatpush.bf16.msra.mxu0 %v3823
        %4175 = vmatpush.bf16.msra.mxu0 %v3821
        %4176 = vmatpush.bf16.msra.mxu0 %v3819
        %4177 = vmatpush.bf16.msra.mxu0 %v3817
        %4178 = vmatmul.bf16.gmra.mxu0 %v3266
        %v4179 = vpop.f32.mrf.mxu0
        %v4180 = vadd.f32 %v4167, %v4179
        %v4181 = vpop.f32.mrf.mxu0
        %4182 = vdwg.mxu0
        %4183 = vmatpush.bf16.msra.mxu0 %v3847
        %4184 = vmatpush.bf16.msra.mxu0 %v3845
        %4185 = vmatpush.bf16.msra.mxu0 %v3843
        %4186 = vmatpush.bf16.msra.mxu0 %v3841
        %4187 = vmatpush.bf16.msra.mxu0 %v3839
        %4188 = vmatpush.bf16.msra.mxu0 %v3837
        %4189 = vmatpush.bf16.msra.mxu0 %v3835
        %4190 = vmatpush.bf16.msra.mxu0 %v3833
        %4191 = vmatmul.bf16.gmra.mxu0 %v3267
        %v4192 = vpop.f32.mrf.mxu0
        %v4193 = vadd.f32 %v4180, %v4192
        %v4194 = vpop.f32.mrf.mxu0
        %4195 = vdwg.mxu0
        %4196 = vmatpush.bf16.msra.mxu0 %v3863
        %4197 = vmatpush.bf16.msra.mxu0 %v3861
        %4198 = vmatpush.bf16.msra.mxu0 %v3859
        %4199 = vmatpush.bf16.msra.mxu0 %v3857
        %4200 = vmatpush.bf16.msra.mxu0 %v3855
        %4201 = vmatpush.bf16.msra.mxu0 %v3853
        %4202 = vmatpush.bf16.msra.mxu0 %v3851
        %4203 = vmatpush.bf16.msra.mxu0 %v3849
        %4204 = vmatmul.bf16.gmra.mxu0 %v3268
        %v4205 = vpop.f32.mrf.mxu0
        %v4206 = vadd.f32 %v4193, %v4205
        %v4207 = vpop.f32.mrf.mxu0
        %4208 = vdwg.mxu0
        %4209 = vmatpush.bf16.msra.mxu0 %v3879
        %4210 = vmatpush.bf16.msra.mxu0 %v3877
        %4211 = vmatpush.bf16.msra.mxu0 %v3875
        %4212 = vmatpush.bf16.msra.mxu0 %v3873
        %4213 = vmatpush.bf16.msra.mxu0 %v3871
        %4214 = vmatpush.bf16.msra.mxu0 %v3869
        %4215 = vmatpush.bf16.msra.mxu0 %v3867
        %4216 = vmatpush.bf16.msra.mxu0 %v3865
        %4217 = vmatmul.bf16.gmra.mxu0 %v3269
        %v4218 = vpop.f32.mrf.mxu0
        %v4219 = vadd.f32 %v4206, %v4218
        %v4220 = vpop.f32.mrf.mxu0
        %4221 = vdwg.mxu0
        %4222 = vmatpush.bf16.msra.mxu0 %v3895
        %4223 = vmatpush.bf16.msra.mxu0 %v3893
        %4224 = vmatpush.bf16.msra.mxu0 %v3891
        %4225 = vmatpush.bf16.msra.mxu0 %v3889
        %4226 = vmatpush.bf16.msra.mxu0 %v3887
        %4227 = vmatpush.bf16.msra.mxu0 %v3885
        %4228 = vmatpush.bf16.msra.mxu0 %v3883
        %4229 = vmatpush.bf16.msra.mxu0 %v3881
        %4230 = vmatmul.bf16.gmra.mxu0 %v3270
        %v4231 = vpop.f32.mrf.mxu0
        %v4232 = vadd.f32 %v4219, %v4231
        %v4233 = vpop.f32.mrf.mxu0
        %4234 = vdwg.mxu0
        %4235 = vmatpush.bf16.msra.mxu0 %v3911
        %4236 = vmatpush.bf16.msra.mxu0 %v3909
        %4237 = vmatpush.bf16.msra.mxu0 %v3907
        %4238 = vmatpush.bf16.msra.mxu0 %v3905
        %4239 = vmatpush.bf16.msra.mxu0 %v3903
        %4240 = vmatpush.bf16.msra.mxu0 %v3901
        %4241 = vmatpush.bf16.msra.mxu0 %v3899
        %4242 = vmatpush.bf16.msra.mxu0 %v3897
        %4243 = vmatmul.bf16.gmra.mxu0 %v3271
        %v4244 = vpop.f32.mrf.mxu0
        %v4245 = vadd.f32 %v4232, %v4244
        %v4246 = vpop.f32.mrf.mxu0
        %4247 = vdwg.mxu0
        %v4248 = vadd.f32 %v1891, %v4141
        %v4249 = vadd.f32 %v1892, %v4245
        %v4250 = vperm.slane %v536, 6
        %v4251 = vperm.slane %v537, 6
        %v4252 = vadd.f32 %v4248, %v4250
        %v4253 = vadd.f32 %v4249, %v4251
        %4254 = vst [vmem:[%s524] sm:$0xff] %v4252
        %4255 = vst [vmem:[%s524 + $0x8] sm:$0xff] %v4253
        %p4256 = scmp.eq.s32.totalorder %s31, 1
        // Predicated region
        $region73: #{blip_base_forward.3} parent=55 // pred_check
          %p4257 = pneg %p4256
        $region74: #{blip_base_forward.3} parent=55 // pred_check_branch
          %4259 = sbr.rel (%p4257) target = $region76
        $region75: #{blip_base_forward.3} parent=55 // pred_region
          %v4260 = vld [vmem:[%s8] ss:$2 sm:$0x3]
          %s4261 = scalar_lea.vmem %s8, 1
          %v4262 = vld [vmem:[%s4261] ss:$2 sm:$0x3]
          %v4263 = vadd.f32 %v4252, %v4253
          %4264 = vadd.xlane.f32.xlu0 %v4263
          %v4265 = vpop.xlane.xlu0 %4264
          %v4266 = vmul.f32 %v4265, %v554
          %v4267 = vsub.f32 %v4252, %v4266
          %v4268 = vsub.f32 %v4253, %v4266
          %v4269 = vmul.f32 %v4267, %v4267
          %v4270 = vmul.f32 %v4268, %v4268
          %v4271 = vadd.f32 %v4269, %v4270
          %4272 = vadd.xlane.f32.xlu0 %v4271
          %v4273 = vpop.xlane.xlu0 %4272
          %v4274 = vmul.f32 %v4273, %v554
          %v4275 = vadd.f32 %v4274, 1e-06
          %v4276 = vrsqrt.pop %v4275
          %v4277 = vmul.f32 %v4276, %v4275
          %v4278 = vmul.f32 %v4277, %v4276
          %v4279 = vmul.f32 0.5, %v4278
          %v4280 = vsub.f32 1.5, %v4279
          %v4281 = vmul.f32 %v4276, %v4280
          %vm4282 = vweird.f32 %v4275
          %vm4283 = vweird.f32 %v4276
          %vm4284 = vmor %vm4282, %vm4283
          %v4285 = vsel %vm4284, %v4276, %v4281
          %v4286 = vmul.f32 %v4267, %v4285
          %v4287 = vmul.f32 %v4268, %v4285
          %v4289 = vperm.slane %v4260, 0
          %v4290 = vperm.slane %v4260, 1
          %v4293 = vmul.f32 %v4286, %v4289
          %v4294 = vmul.f32 %v4287, %v4290
          %v4296 = vperm.slane %v4262, 0
          %v4297 = vperm.slane %v4262, 1
          %v4300 = vadd.f32 %v4293, %v4296
          %v4301 = vadd.f32 %v4294, %v4297
          %4302 = vst [vmem:[%s524] sm:$0xff] %v4300
          %4303 = vst [vmem:[%s524 + $0x8] sm:$0xff] %v4301
        $region76: #{blip_base_forward.3} parent=55 // pred_fallthru
          _
        %p4304 = scmp.lt.s32.totalorder %s30, 1
        %s4305 = scalar_select %p4304, %s30, 1
        %s4306 = smul.addr %s4305, 2
        %s4307 = smul.addr %s4306, 8
        %s4308 = scalar_lea.vmem %s9, %s4307
        // Predicated region
        $region77: #{blip_base_forward.3} parent=55 // pred_check
          %p4309 = pneg %p280
        $region78: #{blip_base_forward.3} parent=55 // pred_check_branch
          %4311 = sbr.rel (%p4309) target = $region80
        $region79: #{blip_base_forward.3} parent=55 // pred_region
          _
        $region80: #{blip_base_forward.3} parent=55 // pred_fallthru
          _
      $region56: #{blip_base_forward.3} parent=5 // pred_fallthru
        _
      %p4312 = scmp.le.s32.totalorder 2, %s21
      // Predicated region
      $region81: #{blip_base_forward.3} parent=5 // pred_check
        %p4313 = pneg %p4312
      $region82: #{blip_base_forward.3} parent=5 // pred_check_branch
        %4315 = sbr.rel (%p4313) target = $region84
      $region83: #{blip_base_forward.3} parent=5 // pred_region
        %s4316 = ssub.s32 %s21, 2
        // Predicated region
        $region85: #{blip_base_forward.3} parent=83 // pred_check
          %p4317 = pneg %p286
        $region86: #{blip_base_forward.3} parent=83 // pred_check_branch
          %4319 = sbr.rel (%p4317) target = $region88
        $region87: #{blip_base_forward.3} parent=83 // pred_region
          %p4320 = scmp.lt.s32.totalorder %s32, 1
          %s4321 = scalar_select %p4320, %s32, 1
          %s4322 = smul.addr %s4321, 2
          %s4323 = smul.addr %s4322, 8
          %s4324 = scalar_lea.vmem %s9, %s4323
        $region88: #{blip_base_forward.3} parent=83 // pred_fallthru
          _
      $region84: #{blip_base_forward.3} parent=5 // pred_fallthru
        _
    $region6: #{blip_base_forward.3} parent=1 // loop_footer
      %s25 = sadd.s32 1, %s21
    $region7: #{blip_base_forward.3} parent=1 // loop_footer_branch
      %20 = sbr.rel target = $region3
    $region8: #{blip_base_forward.3} parent=1 // loop_exit
      _
    %4325 = vsyncpa [#allocation3], 1
    %s4326 = scalar_lea.sflag [#allocation3], 1
    %4327 = vsyncpa %s4326, 1
    %4328 = vsyncpa [#allocation5], 1
    %s4329 = scalar_lea.sflag [#allocation5], 1
    %4330 = vsyncpa %s4329, 1

</llo_original>
